<compile_context>
chip_gen: v6e
topology: v6e:2x2x1
jax: 0.10.0
libtpu: 0.0.40
codegen_flags: <defaults>
</compile_context>

<pallas_src>
import functools

import numpy as np
import jax
import jax.numpy as jnp
from jax.experimental import pallas as pl
from jax.experimental.pallas import tpu as pltpu


# ----------------------------------------------------------------------------
# Per-generation VMEM budgeting.
# ----------------------------------------------------------------------------
def _detect_vmem_capacity():
    try:
        info = pltpu.get_tpu_info()
        cap = getattr(info, "vmem_capacity_bytes", None)
        if cap:
            return int(cap)
    except Exception:
        pass
    return 64 * 1024 * 1024


_VMEM_CAP = _detect_vmem_capacity()
if _VMEM_CAP >= 96 * 1024 * 1024:          # v5e / v6e (128 MiB VMEM)
    VMEM_LIMIT = 96 * 1024 * 1024
    MM_BUDGET = 48 * 1024 * 1024
    DCONV_BUDGET = 48 * 1024 * 1024
else:                                      # v7x (64 MiB VMEM per TC) / unknown
    VMEM_LIMIT = 48 * 1024 * 1024
    MM_BUDGET = 20 * 1024 * 1024
    DCONV_BUDGET = 24 * 1024 * 1024


# ----------------------------------------------------------------------------
# Fused matmul kernel:  out = act( (A @ B) * scale + bias )
# A, B are bf16; accumulation + epilogue in f32.  Epilogue specialized statically.
# ----------------------------------------------------------------------------
def _mm_bn_lrelu_kernel(a_ref, b_ref, s_ref, c_ref, o_ref, acc_ref,
                        *, slope, has_scale, has_bias):
    k = pl.program_id(2)

    @pl.when(k == 0)
    def _():
        acc_ref[...] = jnp.zeros_like(acc_ref)

    acc_ref[...] += jnp.dot(a_ref[...], b_ref[...],
                            preferred_element_type=jnp.float32)

    @pl.when(k == pl.num_programs(2) - 1)
    def _():
        y = acc_ref[...]
        if has_scale:
            y = y * s_ref[...]
        if has_bias:
            y = y + c_ref[...]
        if slope != 1.0:
            y = jnp.maximum(y, slope * y)      # LeakyReLU for 0 < slope < 1
        o_ref[...] = y.astype(o_ref.dtype)


def _pick_tile(n, cands):
    for c in cands:
        if n % c == 0:
            return c
    return n


def _select_mm_tiles(M, K, N, out_bytes, budget=MM_BUDGET):
    tm = _pick_tile(M, (1024, 512, 256, 128, 64, 32, 16, 8))
    tn = _pick_tile(N, (512, 256, 128))
    tk = _pick_tile(K, (2048, 1024, 512, 256, 128))

    def ws(a, b, c):
        # double-buffered A/B/out (bf16 in, out_bytes out) + f32 accumulator
        return 2 * (a * c * 2 + c * b * 2 + a * b * out_bytes) + a * b * 4

    while ws(tm, tn, tk) > budget:
        if tk > 128 and K % (tk // 2) == 0:
            tk //= 2
        elif tm > 8 and M % (tm // 2) == 0:
            tm //= 2
        elif tn > 128 and N % (tn // 2) == 0:
            tn //= 2
        else:
            break
    return tm, tn, tk


@functools.partial(jax.jit, static_argnames=("tm", "tn", "tk", "slope",
                                             "has_scale", "has_bias", "out_dtype"))
def _fused_matmul_call(a, b, scale, bias, *, tm, tn, tk, slope,
                       has_scale, has_bias, out_dtype):
    M, K = a.shape
    N = b.shape[1]
    grid = (M // tm, N // tn, K // tk)
    return pl.pallas_call(
        functools.partial(_mm_bn_lrelu_kernel, slope=slope,
                          has_scale=has_scale, has_bias=has_bias),
        out_shape=jax.ShapeDtypeStruct((M, N), out_dtype),
        grid_spec=pltpu.PrefetchScalarGridSpec(
            num_scalar_prefetch=0,
            grid=grid,
            in_specs=[
                pl.BlockSpec((tm, tk), lambda i, j, k: (i, k)),
                pl.BlockSpec((tk, tn), lambda i, j, k: (k, j)),
                pl.BlockSpec((1, tn), lambda i, j, k: (0, j)),
                pl.BlockSpec((1, tn), lambda i, j, k: (0, j)),
            ],
            out_specs=pl.BlockSpec((tm, tn), lambda i, j, k: (i, j)),
            scratch_shapes=[pltpu.VMEM((tm, tn), jnp.float32)],
        ),
        compiler_params=pltpu.CompilerParams(
            dimension_semantics=("parallel", "parallel", "arbitrary"),
            vmem_limit_bytes=VMEM_LIMIT),
    )(a, b, scale, bias)


def fused_matmul(a, b, scale=None, bias=None, slope=1.0, out_dtype=jnp.float32):
    M, K = a.shape
    N = b.shape[1]
    has_scale = scale is not None
    has_bias = bias is not None
    scale = (scale.reshape(-1).astype(jnp.float32) if has_scale
             else jnp.ones((N,), jnp.float32))
    bias = (bias.reshape(-1).astype(jnp.float32) if has_bias
            else jnp.zeros((N,), jnp.float32))
    # Lane-dense outputs: pad narrow N (8 <= N, N % 128 != 0) up to a multiple of 128.
    # N < 8 (stem 3-channel convs) is left at the full dim: padding would multiply HBM
    # writeback bytes ~42x for the same number of stores.
    if N >= 8 and N % 128 != 0:
        Np = ((N + 127) // 128) * 128
        b = jnp.pad(b, ((0, 0), (0, Np - N)))
        scale = jnp.pad(scale, (0, Np - N), constant_values=1.0)
        bias = jnp.pad(bias, (0, Np - N))
    else:
        Np = N
    tm, tn, tk = _select_mm_tiles(M, K, Np, jnp.dtype(out_dtype).itemsize)
    assert M % tm == 0 and Np % tn == 0 and K % tk == 0, (M, K, Np, tm, tn, tk)
    y = _fused_matmul_call(
        a.astype(jnp.bfloat16), b.astype(jnp.bfloat16),
        scale.reshape(1, Np), bias.reshape(1, Np),
        tm=tm, tn=tn, tk=tk, slope=float(slope),
        has_scale=has_scale, has_bias=has_bias, out_dtype=out_dtype)
    return y[:, :N] if Np != N else y


# ----------------------------------------------------------------------------
# Direct 3x3 conv + folded BN + LeakyReLU(0.2) kernel, stride (sh, sw), sh/sw in {1,2}.
# Padded activation lives in HBM (memory_space=pl.ANY); each grid step DMAs a
# double-buffered halo row-band into VMEM.  Grid is (co_tile, band) with co OUTER so the
# weight tile stays resident across all bands.  dy taps are folded into K (3 matmuls).
# ----------------------------------------------------------------------------
def _dconv_kernel(x_hbm, w_ref, s_ref, c_ref, o_ref, xbuf, sem,
                  *, n_h, th, sh, sw, Wo, rows):
    b = pl.program_id(1)
    n_b = pl.num_programs(1)
    slot = b % 2

    def band_copy(idx, slot_):
        n = idx // n_h
        t = idx % n_h
        return pltpu.make_async_copy(
            x_hbm.at[n, pl.ds(t * th * sh, rows)],
            xbuf.at[slot_], sem.at[slot_])

    # Prime the double buffer at the first band of each co tile.
    # TODO(synk): priming assumes sequential grid execution; restructure (per-core flag
    # or pl.core_map) before marking the band axis parallel for v7x megacore.
    @pl.when(b == 0)
    def _():
        band_copy(0, 0).start()

    # Wait on the exact slice that was issued for this band, then prefetch the next.
    band_copy(b, slot).wait()

    @pl.when(b + 1 < n_b)
    def _():
        band_copy(b + 1, 1 - slot).start()

    x = xbuf[slot]                               # (rows, Wp, Ci) bf16
    ci = x.shape[-1]
    co_t = o_ref.shape[-1]
    span_h = (th - 1) * sh + 1

    if sw == 2:
        # Deinterleave even/odd columns once per band (unit-stride reshape + lane
        # slices), so every per-tap slice below is unit-stride / leading-axis only.
        half = x.shape[1] // 2
        xr = x.reshape(rows, half, 2 * ci)
        xe = xr[:, :, :ci]                       # columns 0, 2, 4, ...
        xo = xr[:, :, ci:]                       # columns 1, 3, 5, ...

    def tap(dy, dx):
        if sw == 1:
            return x[dy:dy + span_h:sh, dx:dx + Wo, :]
        src = xe if dx % 2 == 0 else xo
        c0 = dx // 2
        return src[dy:dy + span_h:sh, c0:c0 + Wo, :]

    # 3 matmuls with K = 3*Ci (dy taps concatenated along K) instead of 9 small-K taps.
    acc = jnp.zeros((th * Wo, co_t), jnp.float32)
    for dx in range(3):
        win = jnp.concatenate([tap(dy, dx) for dy in range(3)],
                              axis=-1).reshape(th * Wo, 3 * ci)
        acc = acc + jnp.dot(win, w_ref[dx], preferred_element_type=jnp.float32)

    y = acc * s_ref[...] + c_ref[...]
    y = jnp.maximum(y, 0.2 * y)                  # LeakyReLU(0.2)
    # TODO(synk): pack the store lane-dense (e.g. (th, Wo*co_t)) when co_t < 128.
    o_ref[...] = y.reshape(th, Wo, co_t).astype(o_ref.dtype)


def _divisors_desc(n):
    return [d for d in range(n, 0, -1) if n % d == 0]


def _dconv_tiles(Ho, Wo, Wp, Ci, Co, sh, budget):
    """Pick (th, co_t) so the direct-conv VMEM working set fits `budget`."""

    def ws(th, cot):
        rows = (th - 1) * sh + 3
        band = rows * Wp * Ci * 2
        return (2 * band                              # double-buffered halo band
                + 2 * band                            # in-kernel band value / deinterleave
                + 2 * 9 * Ci * cot * 2                # weight tile (pipeline buffers)
                + 2 * th * Wo * cot * 2               # output block (pipeline buffers)
                + th * Wo * (3 * Ci * 2 * 2 + cot * 4 * 2))   # tap windows + f32 acc

    th_opts = [d for d in _divisors_desc(Ho) if d * Wo <= 4096] or [1]
    th = th_opts[0]
    cot = Co
    co_opts = [d for d in _divisors_desc(Co) if d == Co or d % 128 == 0]
    while ws(th, cot) > budget:
        rows = (th - 1) * sh + 3
        w_bytes = 2 * 9 * Ci * cot * 2
        x_bytes = 4 * rows * Wp * Ci * 2
        smaller_co = [d for d in co_opts if d < cot]
        smaller_th = [d for d in _divisors_desc(Ho) if d < th]
        if w_bytes >= x_bytes and smaller_co:
            cot = smaller_co[0]
        elif smaller_th:
            th = smaller_th[0]
        elif smaller_co:
            cot = smaller_co[0]
        else:
            break
    return th, cot


@functools.partial(jax.jit, static_argnames=("sh", "sw", "th", "co_t"))
def _dconv_call(xp, w, scale, bias, *, sh, sw, th, co_t):
    N, Hp, Wp, Ci = xp.shape
    H = Hp - 2
    W = Wp - 2
    Co = w.shape[-1]
    Ho = (H - 1) // sh + 1
    Wo = (W - 1) // sw + 1
    n_h = Ho // th
    rows = (th - 1) * sh + 3
    n_co = Co // co_t
    grid = (n_co, N * n_h)                 # co outer: weights fetched once per co tile
    kernel = functools.partial(_dconv_kernel, n_h=n_h, th=th, sh=sh, sw=sw,
                               Wo=Wo, rows=rows)
    out = pl.pallas_call(
        kernel,
        out_shape=jax.ShapeDtypeStruct((N * Ho, Wo, Co), jnp.bfloat16),
        grid_spec=pltpu.PrefetchScalarGridSpec(
            num_scalar_prefetch=0,
            grid=grid,
            in_specs=[
                pl.BlockSpec(memory_space=pl.ANY),
                pl.BlockSpec((3, 3 * Ci, co_t), lambda co, b: (0, 0, co)),
                pl.BlockSpec((1, co_t), lambda co, b: (0, co)),
                pl.BlockSpec((1, co_t), lambda co, b: (0, co)),
            ],
            out_specs=pl.BlockSpec((th, Wo, co_t), lambda co, b: (b, 0, co)),
            scratch_shapes=[
                pltpu.VMEM((2, rows, Wp, Ci), jnp.bfloat16),
                pltpu.SemaphoreType.DMA((2,)),
            ],
        ),
        compiler_params=pltpu.CompilerParams(
            dimension_semantics=("arbitrary", "arbitrary"),
            vmem_limit_bytes=VMEM_LIMIT),
    )(xp, w, scale, bias)
    return out.reshape(N, Ho, Wo, Co)


def direct_conv_bn_lrelu(x, w, scale, bias, stride):
    # x: NHWC bf16, w: (3,3,Ci,Co); stride = (sh, sw), sh/sw in {1,2}
    N, H, W, Ci = x.shape
    Co = w.shape[-1]
    sh, sw = stride
    Ho = (H - 1) // sh + 1
    Wo = (W - 1) // sw + 1
    Wp = W + 2
    th, co_t = _dconv_tiles(Ho, Wo, Wp, Ci, Co, sh, DCONV_BUDGET)
    assert Ho % th == 0 and Co % co_t == 0
    # TODO(synk): fold the zero-padding into the halo DMA with in-kernel edge masking to
    # avoid this extra padded-activation HBM pass.
    xp = jnp.pad(x.astype(jnp.bfloat16), ((0, 0), (1, 1), (1, 1), (0, 0)))
    # Re-layout weights as (dx, dy*Ci, Co) to match the dy-along-K tap concatenation.
    w_r = jnp.transpose(w, (1, 0, 2, 3)).reshape(3, 3 * Ci, Co)
    return _dconv_call(xp, w_r.astype(jnp.bfloat16),
                       scale.reshape(1, Co).astype(jnp.float32),
                       bias.reshape(1, Co).astype(jnp.float32),
                       sh=sh, sw=sw, th=th, co_t=co_t)


# ----------------------------------------------------------------------------
# im2col path (only for tiny-channel convs, e.g. the C=3 stem), K = 9*Ci.
# ----------------------------------------------------------------------------
def im2col_conv_bn_lrelu(x, w, scale, bias, stride):
    N, H, W, Ci = x.shape
    Co = w.shape[-1]
    sh, sw = stride
    Ho = (H - 1) // sh + 1
    Wo = (W - 1) // sw + 1
    xp = jnp.pad(x.astype(jnp.bfloat16), ((0, 0), (1, 1), (1, 1), (0, 0)))
    cols = []
    for dy in range(3):
        for dx in range(3):
            cols.append(xp[:, dy:dy + (Ho - 1) * sh + 1:sh,
                           dx:dx + (Wo - 1) * sw + 1:sw, :])
    patches = jnp.concatenate(cols, axis=-1).reshape(N * Ho * Wo, 9 * Ci)
    y = fused_matmul(patches, w.reshape(9 * Ci, Co), scale, bias,
                     slope=0.2, out_dtype=jnp.bfloat16)
    return y.reshape(N, Ho, Wo, Co)


def apply_conv(x, w, s, b, stride):
    Ci = x.shape[-1]
    W = x.shape[2]
    sh, sw = stride
    # Tiny channel counts (the 3-channel stem) waste 3/128 lanes in the direct kernel.
    if Ci < 16 or (sw == 2 and W % 2 != 0):
        return im2col_conv_bn_lrelu(x, w, s, b, stride)
    return direct_conv_bn_lrelu(x, w, s, b, stride)


def apply_block(x, block):
    for (w, s, b), st in block:
        x = apply_conv(x, w, s, b, st)
    return x


def apply_reduce(x, blocks):
    for blk in blocks:
        x = apply_block(x, blk)
    return x


# ----------------------------------------------------------------------------
# Bilinear width-resize (align_corners=False).  Heights are unchanged in every call the
# model makes, so it reduces to a fixed (Win, Wout) matmul.
# ----------------------------------------------------------------------------
def _bilinear_w_matrix(win, wout):
    m = np.zeros((win, wout), np.float32)
    scale = win / wout
    for j in range(wout):
        src = max((j + 0.5) * scale - 0.5, 0.0)
        i0 = min(int(np.floor(src)), win - 1)
        i1 = min(i0 + 1, win - 1)
        w1 = src - i0
        m[i0, j] += 1.0 - w1
        m[i1, j] += w1
    return jnp.asarray(m)


def interp_width_to_nchw(x_nhwc, wout):
    B, H, Win, C = x_nhwc.shape
    mat = _bilinear_w_matrix(Win, wout)
    t = jnp.transpose(x_nhwc, (0, 1, 3, 2)).reshape(B * H * C, Win)
    r = fused_matmul(t, mat, slope=1.0,
                     out_dtype=jnp.float32).reshape(B, H, C, wout)
    return jnp.transpose(r, (0, 2, 1, 3))   # -> NCHW (B, C, H, wout)


# ----------------------------------------------------------------------------
# Fused bidirectional LSTM recurrence.  Both directions are folded into the row axis
# (rows [0:B] = forward at t, rows [B:2B] = backward at T-1-t), giving ONE recurrent
# matmul per step against [W_hh_f | W_hh_b] and better sublane utilisation for small B.
# h/c are carried in f32 VMEM scratch; 32 time steps per grid step.
# xg = x @ W_ih^T + b_ih + b_hh is precomputed with the fused matmul kernel.
# ----------------------------------------------------------------------------
def _bilstm_kernel(xg_ref, whh_ref, of_ref, ob_ref, h_scr, c_scr, *, tc, Hd, B):
    step = pl.program_id(0)

    @pl.when(step == 0)
    def _():
        h_scr[...] = jnp.zeros_like(h_scr)
        c_scr[...] = jnp.zeros_like(c_scr)

    w = whh_ref[...]                       # (Hd, 8Hd) bf16 = [W_hh_f | W_hh_b]

    for k in range(tc):
        hprev = h_scr[...]                 # (2B, Hd) f32
        g_lin = jnp.dot(hprev.astype(w.dtype), w,
                        preferred_element_type=jnp.float32)      # (2B, 8Hd)
        g = xg_ref[k] + jnp.concatenate(
            [g_lin[:B, :4 * Hd], g_lin[B:, 4 * Hd:]], axis=0)    # (2B, 4Hd)
        i_g = jax.nn.sigmoid(g[:, 0:Hd])
        f_g = jax.nn.sigmoid(g[:, Hd:2 * Hd])
        g_g = jnp.tanh(g[:, 2 * Hd:3 * Hd])
        o_g = jax.nn.sigmoid(g[:, 3 * Hd:4 * Hd])
        c_new = f_g * c_scr[...] + i_g * g_g
        h_new = o_g * jnp.tanh(c_new)
        h_scr[...] = h_new
        c_scr[...] = c_new
        of_ref[k] = h_new[:B].astype(of_ref.dtype)
        ob_ref[tc - 1 - k] = h_new[B:].astype(ob_ref.dtype)
    # TODO(synk): on v7x the two directions could run on separate TensorCores
    # (pl.core_map) for ~2x on the latency-bound recurrence.


@functools.partial(jax.jit, static_argnames=("tc",))
def _bilstm_call(xg_comb, whh, *, tc):
    T, B2, G = xg_comb.shape               # B2 = 2*B, G = 4*Hd
    B = B2 // 2
    Hd = G // 4
    nT = T // tc
    kernel = functools.partial(_bilstm_kernel, tc=tc, Hd=Hd, B=B)
    return pl.pallas_call(
        kernel,
        out_shape=(jax.ShapeDtypeStruct((T, B, Hd), jnp.float32),
                   jax.ShapeDtypeStruct((T, B, Hd), jnp.float32)),
        grid_spec=pltpu.PrefetchScalarGridSpec(
            num_scalar_prefetch=0,
            grid=(nT,),
            in_specs=[
                pl.BlockSpec((tc, B2, G), lambda i: (i, 0, 0)),
                pl.BlockSpec((Hd, 2 * G), lambda i: (0, 0)),
            ],
            out_specs=[
                pl.BlockSpec((tc, B, Hd), lambda i: (i, 0, 0)),
                pl.BlockSpec((tc, B, Hd), lambda i: (nT - 1 - i, 0, 0)),
            ],
            scratch_shapes=[pltpu.VMEM((B2, Hd), jnp.float32),
                            pltpu.VMEM((B2, Hd), jnp.float32)],
        ),
        compiler_params=pltpu.CompilerParams(
            dimension_semantics=("arbitrary",),   # sequential: h/c carried in scratch
            vmem_limit_bytes=VMEM_LIMIT),
    )(xg_comb, whh)


def lstm_forward(x, lstm_params):
    # x: (T, B, D) f32
    T, B, _ = x.shape
    inp = x
    for layer in lstm_params:
        pf, pb = layer
        Hd = pf["w_hh"].shape[0]
        wih = jnp.concatenate([pf["w_ih"], pb["w_ih"]], axis=1)          # (Din, 8H)
        bias = jnp.concatenate([pf["b_ih"] + pf["b_hh"],
                                pb["b_ih"] + pb["b_hh"]])                # (8H,)
        Din = inp.shape[-1]
        xg = fused_matmul(inp.reshape(T * B, Din), wih, bias=bias, slope=1.0,
                          out_dtype=jnp.float32).reshape(T, B, 8 * Hd)
        # Fold direction into the row axis: rows [:B] = forward gates at time t,
        # rows [B:] = backward gates at time T-1-t.
        xg_comb = jnp.concatenate([xg[:, :, :4 * Hd],
                                   xg[::-1, :, 4 * Hd:]], axis=1)        # (T, 2B, 4H)
        whh = jnp.concatenate([pf["w_hh"], pb["w_hh"]],
                              axis=1).astype(jnp.bfloat16)               # (H, 8H)
        tc = max(d for d in range(1, min(32, T) + 1) if T % d == 0)
        out_f, out_b = _bilstm_call(xg_comb, whh, tc=tc)
        inp = jnp.concatenate([out_f, out_b], axis=-1)                   # (T, B, 2H)
        # TODO(synk): nn.LSTM inter-layer dropout(0.5) is train-only; identity in eval.
    return inp


# ----------------------------------------------------------------------------
# Parameter init (deterministic, synthetic; the module's weights_init is not given).
# BatchNorm eval-mode stats are folded into per-channel (scale, bias).
# ----------------------------------------------------------------------------
def init_conv(key, ci, co):
    k1, k2, k3, k4, k5 = jax.random.split(key, 5)
    w = jax.random.normal(k1, (3, 3, ci, co), jnp.float32) * np.sqrt(2.0 / (9 * ci))
    gamma = 1.0 + 0.1 * jax.random.normal(k2, (co,), jnp.float32)
    beta = 0.1 * jax.random.normal(k3, (co,), jnp.float32)
    rmean = 0.1 * jax.random.normal(k4, (co,), jnp.float32)
    rvar = jax.random.uniform(k5, (co,), jnp.float32, minval=0.5, maxval=1.5)
    s = gamma / jnp.sqrt(rvar + 1e-5)
    b = beta - rmean * s
    return (w, s, b)


def init_block(key, ci, co, last_stride):
    ks = jax.random.split(key, 3)
    return [(init_conv(ks[0], ci, ci), (1, 1)),
            (init_conv(ks[1], ci, ci), (1, 1)),
            (init_conv(ks[2], ci, co), last_stride)]


def init_reduce(key, cin):
    ks = jax.random.split(key, 4)
    io = [(cin, cin // 2), (cin // 2, cin // 2),
          (cin // 2, cin // 4), (cin // 4, cin // 8)]
    return [init_block(k, a, b, (2, 1)) for k, (a, b) in zip(ks, io)]


def _ceil_half(h):
    return (h - 1) // 2 + 1


def _reduce_height(h):
    for _ in range(4):
        h = _ceil_half(h)
    return h


def init_horizon_params(key, h0, c0):
    keys = jax.random.split(key, 16)
    P = {}
    P["block0"] = init_block(keys[0], 3, c0, (2, 2))
    P["block1"] = init_block(keys[1], c0, 2 * c0, (2, 2))
    P["block2"] = init_block(keys[2], 2 * c0, 4 * c0, (2, 2))
    P["block3"] = init_block(keys[3], 4 * c0, 8 * c0, (2, 2))
    P["block4"] = init_block(keys[4], 8 * c0, 16 * c0, (2, 2))
    P["reduce1"] = init_reduce(keys[5], 2 * c0)
    P["reduce2"] = init_reduce(keys[6], 4 * c0)
    P["reduce3"] = init_reduce(keys[7], 8 * c0)
    P["reduce4"] = init_reduce(keys[8], 16 * c0)

    # Per-scale flattened feature sizes (C*H of each reduce output); at the canonical
    # (B,3,512,1024) input each one is 256 and the total is 1024 as in the spec.
    hs = []
    h = h0
    for _ in range(5):
        h = _ceil_half(h)
        hs.append(h)
    feat = sum(((2 ** k) * c0 // 8) * _reduce_height(hs[k]) for k in range(1, 5))
    Hd = feat // 2

    lstm = []
    kidx = 9
    for layer in range(2):
        in_size = feat if layer == 0 else 2 * Hd
        dirs = []
        for _d in range(2):
            k1, k2, k3, k4 = jax.random.split(keys[kidx], 4)
            kidx += 1
            std = 1.0 / np.sqrt(Hd)
            dirs.append({
                "w_ih": jax.random.uniform(k1, (in_size, 4 * Hd), jnp.float32, -std, std),
                "w_hh": jax.random.uniform(k2, (Hd, 4 * Hd), jnp.float32, -std, std),
                "b_ih": jax.random.uniform(k3, (4 * Hd,), jnp.float32, -std, std),
                "b_hh": jax.random.uniform(k4, (4 * Hd,), jnp.float32, -std, std),
            })
        lstm.append(dirs)
    P["lstm"] = lstm

    k1, k2 = jax.random.split(keys[13], 2)
    lim = 1.0 / np.sqrt(2 * Hd)
    P["linear_w"] = jax.random.uniform(k1, (2 * Hd, 12), jnp.float32, -lim, lim)
    P["linear_b"] = jax.random.uniform(k2, (12,), jnp.float32, -lim, lim)
    return P


# ----------------------------------------------------------------------------
# Forward pass (matches HorizonBase.forward, eval mode)
# ----------------------------------------------------------------------------
def feature_extract(x, P):
    B = x.shape[0]
    inter = apply_block(x, P["block0"])
    inter_128 = apply_block(inter, P["block1"])
    inter_64 = apply_block(inter_128, P["block2"])
    inter_32 = apply_block(inter_64, P["block3"])
    inter_16 = apply_block(inter_32, P["block4"])
    r1 = apply_reduce(inter_128, P["reduce1"])   # NHWC
    r2 = apply_reduce(inter_64, P["reduce2"])
    r3 = apply_reduce(inter_32, P["reduce3"])
    r4 = apply_reduce(inter_16, P["reduce4"])

    T = r1.shape[2]                               # common width (= W_in // 4)
    feats = []
    for r in (r1, r2, r3, r4):
        _, Hh, Wh, Ch = r.shape
        if Wh == T:
            # torch .view semantics on NCHW: flatten (C, H) -> feature dim.
            f = jnp.transpose(r, (0, 3, 1, 2)).reshape(B, Ch * Hh, T).astype(jnp.float32)
        else:
            # F.interpolate only resizes width here (heights already match).
            f = interp_width_to_nchw(r, T).reshape(B, Ch * Hh, T)
        feats.append(f)
    feature = jnp.concatenate(feats, axis=1)      # (B, F, T)
    return jnp.transpose(feature, (2, 0, 1))      # (T, B, F)


def horizon_base_forward(x_nchw, P):
    B = x_nchw.shape[0]
    x = jnp.transpose(x_nchw, (0, 2, 3, 1)).astype(jnp.bfloat16)   # NCHW -> NHWC bf16
    feature = feature_extract(x, P)                                # (T, B, F) f32
    T = feature.shape[0]
    out = lstm_forward(feature, P["lstm"])                         # (T, B, 2H)
    # self.drop_out: eval-mode identity.
    D2 = out.shape[-1]
    y = fused_matmul(out.reshape(T * B, D2), P["linear_w"],
                     bias=P["linear_b"], slope=0.2,
                     out_dtype=jnp.float32)                        # Linear + LeakyReLU
    y = y.reshape(T, B, 3, 4)
    return jnp.transpose(y, (1, 2, 0, 3))                          # (B, 3, T, 4)


if __name__ == "__main__":
    key = jax.random.PRNGKey(0)
    kp, kx = jax.random.split(key)
    # Small test shape consistent with the module's forward (parameterized version of
    # the canonical (B,3,512,1024) / 128-base-channel configuration).
    B, H0, W0, C0 = 2, 128, 128, 16
    params = init_horizon_params(kp, h0=H0, c0=C0)
    x = jax.random.normal(kx, (B, 3, H0, W0), jnp.float32)
    out = horizon_base_forward(x, params)
    out = jax.block_until_ready(out)
    T = W0 // 4
    assert out.shape == (B, 3, T, 4), out.shape
    assert bool(jnp.isfinite(out).all())
    print("KERNEL_OK")
</pallas_src>

<mosaic_0001>
module attributes {stable_mosaic.version = 11 : i64} {
  func.func @_mm_bn_lrelu_kernel(%arg0: i32, %arg1: i32, %arg2: i32, %arg3: memref<1024x27xbf16, #tpu.memory_space<vmem>>, %arg4: memref<27x3xbf16, #tpu.memory_space<vmem>>, %arg5: memref<1x3xf32, #tpu.memory_space<vmem>>, %arg6: memref<1x3xf32, #tpu.memory_space<vmem>>, %arg7: memref<1024x3xbf16, #tpu.memory_space<vmem>>, %arg8: memref<1024x3xf32, #tpu.memory_space<vmem>>) attributes {dimension_semantics = [#tpu.dimension_semantics<parallel>, #tpu.dimension_semantics<parallel>, #tpu.dimension_semantics<arbitrary>], iteration_bounds = array<i64: 32, 1, 1>, scalar_prefetch = 0 : i64, scratch_operands = 1 : i64, tpu.core_type = #tpu.core_type<tc>, window_params = [{transform_indices = @transform_0, window_bounds = array<i64: 1024, 27>}, {transform_indices = @transform_1, window_bounds = array<i64: 27, 3>}, {transform_indices = @transform_2, window_bounds = array<i64: 1, 3>}, {transform_indices = @transform_3, window_bounds = array<i64: 1, 3>}, {transform_indices = @transform_4, window_bounds = array<i64: 1024, 3>}]} {
    %c0_i32 = arith.constant 0 : i32
    %0 = arith.cmpi eq, %arg2, %c0_i32 : i32
    %1 = arith.extui %0 : i1 to i32
    %c0_i32_0 = arith.constant 0 : i32
    %2 = arith.cmpi ne, %1, %c0_i32_0 : i32
    scf.if %2 {
      %cst_10 = arith.constant 0.000000e+00 : f32
      %12 = vector.broadcast %cst_10 : f32 to vector<1024x3xf32>
      %c0_11 = arith.constant 0 : index
      %c0_12 = arith.constant 0 : index
      %13 = vector.load %arg8[%c0_11, %c0_12] : memref<1024x3xf32, #tpu.memory_space<vmem>>, vector<1024x3xf32>
      tpu.vector_store %arg8[%c0_11, %c0_12], %12 {strides = array<i32>} : memref<1024x3xf32, #tpu.memory_space<vmem>>, vector<1024x3xf32>,
    } else {
    }
    %c0 = arith.constant 0 : index
    %c0_1 = arith.constant 0 : index
    %3 = vector.load %arg8[%c0, %c0_1] : memref<1024x3xf32, #tpu.memory_space<vmem>>, vector<1024x3xf32>
    %c0_2 = arith.constant 0 : index
    %c0_3 = arith.constant 0 : index
    %4 = vector.load %arg3[%c0_2, %c0_3] : memref<1024x27xbf16, #tpu.memory_space<vmem>>, vector<1024x27xbf16>
    %c0_4 = arith.constant 0 : index
    %c0_5 = arith.constant 0 : index
    %5 = vector.load %arg4[%c0_4, %c0_5] : memref<27x3xbf16, #tpu.memory_space<vmem>>, vector<27x3xbf16>
    %cst = arith.constant dense<0.000000e+00> : vector<1024x3xf32>
    %6 = tpu.matmul %4, %5, %cst {dimension_numbers = #tpu.dot_dimension_numbers<[1], [0], [0], [1], [0, 0, 1, 1], [], []>} : vector<1024x27xbf16>, vector<27x3xbf16>, vector<1024x3xf32> -> vector<1024x3xf32>
    %7 = arith.addf %3, %6 : vector<1024x3xf32>
    %c0_6 = arith.constant 0 : index
    %c0_7 = arith.constant 0 : index
    %8 = vector.load %arg8[%c0_6, %c0_7] : memref<1024x3xf32, #tpu.memory_space<vmem>>, vector<1024x3xf32>
    tpu.vector_store %arg8[%c0_6, %c0_7], %7 {strides = array<i32>} : memref<1024x3xf32, #tpu.memory_space<vmem>>, vector<1024x3xf32>,
    %c0_i32_8 = arith.constant 0 : i32
    %9 = arith.cmpi eq, %arg2, %c0_i32_8 : i32
    %10 = arith.extui %9 : i1 to i32
    %c0_i32_9 = arith.constant 0 : i32
    %11 = arith.cmpi ne, %10, %c0_i32_9 : i32
    scf.if %11 {
      %c0_10 = arith.constant 0 : index
      %c0_11 = arith.constant 0 : index
      %12 = vector.load %arg8[%c0_10, %c0_11] : memref<1024x3xf32, #tpu.memory_space<vmem>>, vector<1024x3xf32>
      %c0_12 = arith.constant 0 : index
      %c0_13 = arith.constant 0 : index
      %13 = vector.load %arg5[%c0_12, %c0_13] : memref<1x3xf32, #tpu.memory_space<vmem>>, vector<1x3xf32>
      %14 = vector.broadcast %13 : vector<1x3xf32> to vector<1024x3xf32>
      %15 = arith.mulf %12, %14 : vector<1024x3xf32>
      %c0_14 = arith.constant 0 : index
      %c0_15 = arith.constant 0 : index
      %16 = vector.load %arg6[%c0_14, %c0_15] : memref<1x3xf32, #tpu.memory_space<vmem>>, vector<1x3xf32>
      %17 = vector.broadcast %16 : vector<1x3xf32> to vector<1024x3xf32>
      %18 = arith.addf %15, %17 : vector<1024x3xf32>
      %cst_16 = arith.constant 2.000000e-01 : f32
      %19 = vector.broadcast %cst_16 : f32 to vector<1024x3xf32>
      %20 = arith.mulf %19, %18 : vector<1024x3xf32>
      %21 = arith.maximumf %18, %20 : vector<1024x3xf32>
      %22 = arith.truncf %21 : vector<1024x3xf32> to vector<1024x3xbf16>
      %c0_17 = arith.constant 0 : index
      %c0_18 = arith.constant 0 : index
      %23 = vector.load %arg7[%c0_17, %c0_18] : memref<1024x3xbf16, #tpu.memory_space<vmem>>, vector<1024x3xbf16>
      tpu.vector_store %arg7[%c0_17, %c0_18], %22 {strides = array<i32>} : memref<1024x3xbf16, #tpu.memory_space<vmem>>, vector<1024x3xbf16>,
    } else {
    }
    return
  }
  func.func @transform_0(%arg0: i32, %arg1: i32, %arg2: i32) -> (i32, i32) {
    %c0_i32 = arith.constant 0 : i32
    return %arg0, %arg2 : i32, i32
  }
  func.func @transform_1(%arg0: i32, %arg1: i32, %arg2: i32) -> (i32, i32) {
    %c0_i32 = arith.constant 0 : i32
    return %arg2, %arg1 : i32, i32
  }
  func.func @transform_2(%arg0: i32, %arg1: i32, %arg2: i32) -> (i32, i32) {
    %c0_i32 = arith.constant 0 : i32
    %c0_i32_0 = arith.constant 0 : i32
    return %c0_i32, %arg1 : i32, i32
  }
  func.func @transform_3(%arg0: i32, %arg1: i32, %arg2: i32) -> (i32, i32) {
    %c0_i32 = arith.constant 0 : i32
    %c0_i32_0 = arith.constant 0 : i32
    return %c0_i32, %arg1 : i32, i32
  }
  func.func @transform_4(%arg0: i32, %arg1: i32, %arg2: i32) -> (i32, i32) {
    %c0_i32 = arith.constant 0 : i32
    return %arg0, %arg1 : i32, i32
  }
}

</mosaic_0001>

<llo_original>
// kernel: _fused_matmul_call.1
$region0: #{_fused_matmul_call.1}
  #allocation0 [shape = 'u32[]', space=smem, size = 0x4, offset = 0x4, fixed_abs, tag = 'smem constant byte address 0x4 - core index']
  #allocation1 [shape = 'u32[144,128]{1,0:T(1,128)}', space=vmem, size = 0x12000, scoped, tag = 'internal scratch']
  #allocation2 [shape = 'f32[1024,3]{1,0:T(8,128)}', space=vmem, size = 0x80000, scoped, tag = 'scratch operand']
  %s0 = inlined_call_operand.vmem [shape: bf16[32768,27], index: 0, kind: input, shape index: {}]
  %s1 = inlined_call_operand.vmem [shape: bf16[27,3], index: 1, kind: input, shape index: {}]
  %s2 = inlined_call_operand.vmem [shape: f32[1,3], index: 2, kind: input, shape index: {}]
  %s3 = inlined_call_operand.vmem [shape: f32[1,3], index: 3, kind: input, shape index: {}]
  %s4 = inlined_call_operand.vmem [shape: bf16[32768,3], index: 4, kind: output, shape index: {}]
  %s5 = sld [smem:[#allocation0]]
  $region57: #{_fused_matmul_call.1} parent=0
    _
  %s7 = ssub.s32 1, %s5
  %s8 = scalar_select 0, %s7, %s5
  loop: start=0, step=1, limit=34
  $region2: #{_fused_matmul_call.1} parent=0 // loop_pre_header
    _
  $region3: #{_fused_matmul_call.1} parent=0 // loop_header
    %s10 = sphi 0, %s14
    %p11 = scmp.ge.s32.totalorder %s10, 34
    %s17 = sphi 0, %s36
    %s18 = sphi 0, %s32
    %s19 = sphi 0, %s28
    %s20 = sphi 0, %s17
    %s21 = sphi 0, %s18
    %s22 = sphi 0, %s19
    %s23 = sphi 0, %s20
    %s24 = sphi 0, %s21
    %s25 = sphi 0, %s22
    %s41 = sphi 0, %s43
    %s44 = sphi 0, %s41
    %s45 = sphi 0, %s44
    %s61 = sphi 0, %s45
    %s69 = sphi 0, %s71
    %s72 = sphi 0, %s69
    %s73 = sphi 0, %s72
    %s89 = sphi 0, %s73
    %s95 = sphi 0, %s97
    %s98 = sphi 0, %s95
    %s99 = sphi 0, %s98
    %s115 = sphi 0, %s99
    %s121 = sphi 0, %s123
    %s124 = sphi 0, %s121
    %s125 = sphi 0, %s124
    %s141 = sphi 0, %s125
    %s149 = sphi 0, %s151
    %s152 = sphi 0, %s149
    %s153 = sphi 0, %s152
    %s169 = sphi 0, %s153
  $region4: #{_fused_matmul_call.1} parent=0 // loop_header_branch
    %13 = sbr.rel (%p11) target = $region8
  $region5: #{_fused_matmul_call.1} parent=0 // loop_body
    %s15 = ssub.s32 %s10, 1
    %s16 = ssub.s32 %s10, 2
    %s26 = sadd.s32 1, %s19
    %p27 = scmp.ge.s32.totalorder %s26, 1
    %s28 = scalar_select %p27, 0, %s26
    %s29 = sadd.s32 1, %s18
    %s30 = scalar_select %p27, %s29, %s18
    %p31 = scmp.ge.s32.totalorder %s30, 1
    %s32 = scalar_select %p31, 0, %s30
    %s33 = sadd.s32 1, %s17
    %s34 = scalar_select %p31, %s33, %s17
    %p35 = scmp.ge.s32.totalorder %s34, 32
    %s36 = scalar_select %p35, 0, %s34
    %s37 = ssub.s32 %s17, %s36
    %s38 = ssub.s32 %s19, %s28
    %s39 = sor.u32 %s37, %s38
    %p40 = scmp.eq.s32.totalorder %s39, 0
    %s42 = sadd.s32 %s41, 1
    %s43 = scalar_select %p40, %s41, %s42
    %p46 = pneg %p40
    %p47 = scmp.eq.s32.totalorder %s10, 31
    %p48 = por %p46, %p47
    %p49 = scmp.ne.s32.totalorder %s41, %s44
    %p50 = scmp.eq.s32.totalorder %s10, 0
    %p51 = por %p49, %p50
    %p52 = scmp.ne.s32.totalorder %s41, %s44
    %p53 = scmp.eq.s32.totalorder %s15, 31
    %p54 = por %p52, %p53
    %p55 = scmp.ne.s32.totalorder %s44, %s45
    %p56 = scmp.eq.s32.totalorder %s15, 0
    %p57 = por %p55, %p56
    %p58 = scmp.ne.s32.totalorder %s44, %s45
    %p59 = scmp.eq.s32.totalorder %s16, 31
    %p60 = por %p58, %p59
    %p62 = scmp.ne.s32.totalorder %s45, %s61
    %p63 = scmp.eq.s32.totalorder %s16, 0
    %p64 = por %p62, %p63
    %s65 = ssub.s32 %s19, %s28
    %s66 = ssub.s32 %s18, %s32
    %s67 = sor.u32 %s65, %s66
    %p68 = scmp.eq.s32.totalorder %s67, 0
    %s70 = sadd.s32 %s69, 1
    %s71 = scalar_select %p68, %s69, %s70
    %p74 = pneg %p68
    %p75 = scmp.eq.s32.totalorder %s10, 31
    %p76 = por %p74, %p75
    %p77 = scmp.ne.s32.totalorder %s69, %s72
    %p78 = scmp.eq.s32.totalorder %s10, 0
    %p79 = por %p77, %p78
    %p80 = scmp.ne.s32.totalorder %s69, %s72
    %p81 = scmp.eq.s32.totalorder %s15, 31
    %p82 = por %p80, %p81
    %p83 = scmp.ne.s32.totalorder %s72, %s73
    %p84 = scmp.eq.s32.totalorder %s15, 0
    %p85 = por %p83, %p84
    %p86 = scmp.ne.s32.totalorder %s72, %s73
    %p87 = scmp.eq.s32.totalorder %s16, 31
    %p88 = por %p86, %p87
    %p90 = scmp.ne.s32.totalorder %s73, %s89
    %p91 = scmp.eq.s32.totalorder %s16, 0
    %p92 = por %p90, %p91
    %s93 = ssub.s32 %s18, %s32
    %p94 = scmp.eq.s32.totalorder %s93, 0
    %s96 = sadd.s32 %s95, 1
    %s97 = scalar_select %p94, %s95, %s96
    %p100 = pneg %p94
    %p101 = scmp.eq.s32.totalorder %s10, 31
    %p102 = por %p100, %p101
    %p103 = scmp.ne.s32.totalorder %s95, %s98
    %p104 = scmp.eq.s32.totalorder %s10, 0
    %p105 = por %p103, %p104
    %p106 = scmp.ne.s32.totalorder %s95, %s98
    %p107 = scmp.eq.s32.totalorder %s15, 31
    %p108 = por %p106, %p107
    %p109 = scmp.ne.s32.totalorder %s98, %s99
    %p110 = scmp.eq.s32.totalorder %s15, 0
    %p111 = por %p109, %p110
    %p112 = scmp.ne.s32.totalorder %s98, %s99
    %p113 = scmp.eq.s32.totalorder %s16, 31
    %p114 = por %p112, %p113
    %p116 = scmp.ne.s32.totalorder %s99, %s115
    %p117 = scmp.eq.s32.totalorder %s16, 0
    %p118 = por %p116, %p117
    %s119 = ssub.s32 %s18, %s32
    %p120 = scmp.eq.s32.totalorder %s119, 0
    %s122 = sadd.s32 %s121, 1
    %s123 = scalar_select %p120, %s121, %s122
    %p126 = pneg %p120
    %p127 = scmp.eq.s32.totalorder %s10, 31
    %p128 = por %p126, %p127
    %p129 = scmp.ne.s32.totalorder %s121, %s124
    %p130 = scmp.eq.s32.totalorder %s10, 0
    %p131 = por %p129, %p130
    %p132 = scmp.ne.s32.totalorder %s121, %s124
    %p133 = scmp.eq.s32.totalorder %s15, 31
    %p134 = por %p132, %p133
    %p135 = scmp.ne.s32.totalorder %s124, %s125
    %p136 = scmp.eq.s32.totalorder %s15, 0
    %p137 = por %p135, %p136
    %p138 = scmp.ne.s32.totalorder %s124, %s125
    %p139 = scmp.eq.s32.totalorder %s16, 31
    %p140 = por %p138, %p139
    %p142 = scmp.ne.s32.totalorder %s125, %s141
    %p143 = scmp.eq.s32.totalorder %s16, 0
    %p144 = por %p142, %p143
    %s145 = ssub.s32 %s17, %s36
    %s146 = ssub.s32 %s18, %s32
    %s147 = sor.u32 %s145, %s146
    %p148 = scmp.eq.s32.totalorder %s147, 0
    %s150 = sadd.s32 %s149, 1
    %s151 = scalar_select %p148, %s149, %s150
    %p154 = pneg %p148
    %p155 = scmp.eq.s32.totalorder %s10, 31
    %p156 = por %p154, %p155
    %p157 = scmp.ne.s32.totalorder %s149, %s152
    %p158 = scmp.eq.s32.totalorder %s10, 0
    %p159 = por %p157, %p158
    %p160 = scmp.ne.s32.totalorder %s149, %s152
    %p161 = scmp.eq.s32.totalorder %s15, 31
    %p162 = por %p160, %p161
    %p163 = scmp.ne.s32.totalorder %s152, %s153
    %p164 = scmp.eq.s32.totalorder %s15, 0
    %p165 = por %p163, %p164
    %p166 = scmp.ne.s32.totalorder %s152, %s153
    %p167 = scmp.eq.s32.totalorder %s16, 31
    %p168 = por %p166, %p167
    %p170 = scmp.ne.s32.totalorder %s153, %s169
    %p171 = scmp.eq.s32.totalorder %s16, 0
    %p172 = por %p170, %p171
    %p173 = scmp.le.s32.totalorder 1, %s10
    %p174 = scmp.lt.s32.totalorder %s10, 33
    %p175 = pnand %p173, %p174
    %p176 = pneg %p175
    // Predicated region
    $region9: #{_fused_matmul_call.1} parent=5 // pred_check
      _
    $region10: #{_fused_matmul_call.1} parent=5 // pred_check_branch
      %178 = sbr.rel (%p175) target = $region12
    $region11: #{_fused_matmul_call.1} parent=5 // pred_region
      %s179 = ssub.s32 %s10, 1
      // Predicated region
      $region13: #{_fused_matmul_call.1} parent=11 // pred_check
        %p180 = pneg %p85
      $region14: #{_fused_matmul_call.1} parent=11 // pred_check_branch
        %182 = sbr.rel (%p180) target = $region16
      $region15: #{_fused_matmul_call.1} parent=11 // pred_region
        %s183 = smul.u32 4, %s22
        %p184 = scmp.lt.s32.totalorder %s183, 3
        %s185 = scalar_select %p184, %s183, 3
        %p186 = scmp.lt.s32.totalorder %s21, 0
        %s187 = scalar_select %p186, %s21, 0
        %s188 = sadd.s32 %s187, %s185
        %s189 = smul.addr %s188, 4
        %s190 = scalar_lea.vmem %s1, %s189
        %s191 = smul.u32 4, %s22
      $region16: #{_fused_matmul_call.1} parent=11 // pred_fallthru
        _
      // Predicated region
      $region17: #{_fused_matmul_call.1} parent=11 // pred_check
        %p192 = pneg %p111
      $region18: #{_fused_matmul_call.1} parent=11 // pred_check_branch
        %194 = sbr.rel (%p192) target = $region20
      $region19: #{_fused_matmul_call.1} parent=11 // pred_region
        %p195 = scmp.lt.s32.totalorder %s21, 0
        %s196 = scalar_select %p195, %s21, 0
        %s197 = scalar_lea.vmem %s2, %s196
      $region20: #{_fused_matmul_call.1} parent=11 // pred_fallthru
        _
      // Predicated region
      $region21: #{_fused_matmul_call.1} parent=11 // pred_check
        %p198 = pneg %p137
      $region22: #{_fused_matmul_call.1} parent=11 // pred_check_branch
        %200 = sbr.rel (%p198) target = $region24
      $region23: #{_fused_matmul_call.1} parent=11 // pred_region
        %p201 = scmp.lt.s32.totalorder %s21, 0
        %s202 = scalar_select %p201, %s21, 0
        %s203 = scalar_lea.vmem %s3, %s202
      $region24: #{_fused_matmul_call.1} parent=11 // pred_fallthru
        _
    $region12: #{_fused_matmul_call.1} parent=5 // pred_fallthru
      _
    %p204 = scmp.lt.s32.totalorder %s10, 32
    // Predicated region
    $region25: #{_fused_matmul_call.1} parent=5 // pred_check
      %p205 = pneg %p204
    $region26: #{_fused_matmul_call.1} parent=5 // pred_check_branch
      %207 = sbr.rel (%p205) target = $region28
    $region27: #{_fused_matmul_call.1} parent=5 // pred_region
      // Predicated region
      $region29: #{_fused_matmul_call.1} parent=27 // pred_check
        %p208 = pneg %p51
      $region30: #{_fused_matmul_call.1} parent=27 // pred_check_branch
        %210 = sbr.rel (%p208) target = $region32
      $region31: #{_fused_matmul_call.1} parent=27 // pred_region
        %s211 = smul.u32 128, %s17
        %p212 = scmp.lt.s32.totalorder %s211, 4095
        %s213 = scalar_select %p212, %s211, 4095
        %p214 = scmp.lt.s32.totalorder %s19, 0
        %s215 = scalar_select %p214, %s19, 0
        %s216 = sadd.s32 %s215, %s213
        %s217 = smul.addr %s216, 4
        %s218 = scalar_lea.vmem %s0, %s217
        %s219 = smul.u32 128, %s17
      $region32: #{_fused_matmul_call.1} parent=27 // pred_fallthru
        _
    $region28: #{_fused_matmul_call.1} parent=5 // pred_fallthru
      _
    %p220 = scmp.le.s32.totalorder 1, %s10
    %p221 = scmp.lt.s32.totalorder %s10, 33
    %p222 = pnand %p220, %p221
    %p223 = pneg %p222
    // Predicated region
    $region33: #{_fused_matmul_call.1} parent=5 // pred_check
      _
    $region34: #{_fused_matmul_call.1} parent=5 // pred_check_branch
      %225 = sbr.rel (%p222) target = $region36
    $region35: #{_fused_matmul_call.1} parent=5 // pred_region
      %s226 = ssub.s32 %s10, 1
      %s227 = smul.u32 128, %s20
      %p228 = scmp.lt.s32.totalorder %s227, 4095
      %s229 = scalar_select %p228, %s227, 4095
      %p230 = scmp.lt.s32.totalorder %s22, 0
      %s231 = scalar_select %p230, %s22, 0
      %s232 = sadd.s32 %s231, %s229
      %s233 = smul.addr %s232, 4
      %s234 = scalar_lea.vmem %s0, %s233
      %p235 = pneg %p57
      %p236 = pneg %p54
      %s237 = smul.u32 4, %s22
      %p238 = scmp.lt.s32.totalorder %s237, 3
      %s239 = scalar_select %p238, %s237, 3
      %p240 = scmp.lt.s32.totalorder %s21, 0
      %s241 = scalar_select %p240, %s21, 0
      %s242 = sadd.s32 %s241, %s239
      %s243 = smul.addr %s242, 4
      %s244 = scalar_lea.vmem %s1, %s243
      %p245 = pneg %p85
      %p246 = pneg %p82
      %p247 = scmp.lt.s32.totalorder %s21, 0
      %s248 = scalar_select %p247, %s21, 0
      %s249 = scalar_lea.vmem %s2, %s248
      %p250 = pneg %p111
      %p251 = pneg %p108
      %p252 = scmp.lt.s32.totalorder %s21, 0
      %s253 = scalar_select %p252, %s21, 0
      %s254 = scalar_lea.vmem %s3, %s253
      %p255 = pneg %p137
      %p256 = pneg %p134
      %p257 = pneg %p165
      %p258 = pneg %p162
      %s259 = smul.u32 128, %s20
      %p260 = scmp.lt.s32.totalorder %s259, 4095
      %s261 = scalar_select %p260, %s259, 4095
      %p262 = scmp.lt.s32.totalorder %s21, 0
      %s263 = scalar_select %p262, %s21, 0
      %s264 = sadd.s32 %s263, %s261
      %s265 = smul.addr %s264, 4
      %s266 = scalar_lea.vmem %s4, %s265
      %s267 = smul.u32 128, %s20
      %p268 = scmp.lt.s32.totalorder %s267, 4095
      %s269 = scalar_select %p268, %s267, 4095
      %p270 = scmp.lt.s32.totalorder %s22, 0
      %s271 = scalar_select %p270, %s22, 0
      %s272 = sadd.s32 %s271, %s269
      %s273 = smul.addr %s272, 4
      %s274 = scalar_lea.vmem %s0, %s273
      %s275 = smul.u32 128, %s20
      %s276 = smul.u32 4, %s22
      %p277 = scmp.lt.s32.totalorder %s276, 3
      %s278 = scalar_select %p277, %s276, 3
      %p279 = scmp.lt.s32.totalorder %s21, 0
      %s280 = scalar_select %p279, %s21, 0
      %s281 = sadd.s32 %s280, %s278
      %s282 = smul.addr %s281, 4
      %s283 = scalar_lea.vmem %s1, %s282
      %s284 = smul.u32 4, %s22
      %p285 = scmp.lt.s32.totalorder %s21, 0
      %s286 = scalar_select %p285, %s21, 0
      %s287 = scalar_lea.vmem %s2, %s286
      %p288 = scmp.lt.s32.totalorder %s21, 0
      %s289 = scalar_select %p288, %s21, 0
      %s290 = scalar_lea.vmem %s3, %s289
      %s291 = smul.u32 128, %s20
      %p292 = scmp.lt.s32.totalorder %s291, 4095
      %s293 = scalar_select %p292, %s291, 4095
      %p294 = scmp.lt.s32.totalorder %s21, 0
      %s295 = scalar_select %p294, %s21, 0
      %s296 = sadd.s32 %s295, %s293
      %s297 = smul.addr %s296, 4
      %s298 = scalar_lea.vmem %s4, %s297
      %s299 = smul.u32 128, %s20
      %p301 = scmp.eq.s32.totalorder %s22, 0
      // Predicated region
      $region37: #{_fused_matmul_call.1} parent=35 // pred_check
        %p302 = pneg %p301
      $region38: #{_fused_matmul_call.1} parent=35 // pred_check_branch
        %304 = sbr.rel (%p302) target = $region40
      $region39: #{_fused_matmul_call.1} parent=35 // pred_region
        %vm305 = vcmask 23552
        %306 = vst.msk [vmem:[#allocation2] sm:$0xff] %vm305, 0.0
        %307 = vst.msk [vmem:[#allocation2 + $0x8] sm:$0xff] %vm305, 0.0
        %308 = vst.msk [vmem:[#allocation2 + $0x10] sm:$0xff] %vm305, 0.0
        %309 = vst.msk [vmem:[#allocation2 + $0x18] sm:$0xff] %vm305, 0.0
        %310 = vst.msk [vmem:[#allocation2 + $0x20] sm:$0xff] %vm305, 0.0
        %311 = vst.msk [vmem:[#allocation2 + $0x28] sm:$0xff] %vm305, 0.0
        %312 = vst.msk [vmem:[#allocation2 + $0x30] sm:$0xff] %vm305, 0.0
        %313 = vst.msk [vmem:[#allocation2 + $0x38] sm:$0xff] %vm305, 0.0
        %314 = vst.msk [vmem:[#allocation2 + $0x40] sm:$0xff] %vm305, 0.0
        %315 = vst.msk [vmem:[#allocation2 + $0x48] sm:$0xff] %vm305, 0.0
        %316 = vst.msk [vmem:[#allocation2 + $0x50] sm:$0xff] %vm305, 0.0
        %317 = vst.msk [vmem:[#allocation2 + $0x58] sm:$0xff] %vm305, 0.0
        %318 = vst.msk [vmem:[#allocation2 + $0x60] sm:$0xff] %vm305, 0.0
        %319 = vst.msk [vmem:[#allocation2 + $0x68] sm:$0xff] %vm305, 0.0
        %320 = vst.msk [vmem:[#allocation2 + $0x70] sm:$0xff] %vm305, 0.0
        %321 = vst.msk [vmem:[#allocation2 + $0x78] sm:$0xff] %vm305, 0.0
        %322 = vst.msk [vmem:[#allocation2 + $0x80] sm:$0xff] %vm305, 0.0
        %323 = vst.msk [vmem:[#allocation2 + $0x88] sm:$0xff] %vm305, 0.0
        %324 = vst.msk [vmem:[#allocation2 + $0x90] sm:$0xff] %vm305, 0.0
        %325 = vst.msk [vmem:[#allocation2 + $0x98] sm:$0xff] %vm305, 0.0
        %326 = vst.msk [vmem:[#allocation2 + $0xa0] sm:$0xff] %vm305, 0.0
        %327 = vst.msk [vmem:[#allocation2 + $0xa8] sm:$0xff] %vm305, 0.0
        %328 = vst.msk [vmem:[#allocation2 + $0xb0] sm:$0xff] %vm305, 0.0
        %329 = vst.msk [vmem:[#allocation2 + $0xb8] sm:$0xff] %vm305, 0.0
        %330 = vst.msk [vmem:[#allocation2 + $0xc0] sm:$0xff] %vm305, 0.0
        %331 = vst.msk [vmem:[#allocation2 + $0xc8] sm:$0xff] %vm305, 0.0
        %332 = vst.msk [vmem:[#allocation2 + $0xd0] sm:$0xff] %vm305, 0.0
        %333 = vst.msk [vmem:[#allocation2 + $0xd8] sm:$0xff] %vm305, 0.0
        %334 = vst.msk [vmem:[#allocation2 + $0xe0] sm:$0xff] %vm305, 0.0
        %335 = vst.msk [vmem:[#allocation2 + $0xe8] sm:$0xff] %vm305, 0.0
        %336 = vst.msk [vmem:[#allocation2 + $0xf0] sm:$0xff] %vm305, 0.0
        %337 = vst.msk [vmem:[#allocation2 + $0xf8] sm:$0xff] %vm305, 0.0
        %338 = vst.msk [vmem:[#allocation2 + $0x100] sm:$0xff] %vm305, 0.0
        %339 = vst.msk [vmem:[#allocation2 + $0x108] sm:$0xff] %vm305, 0.0
        %340 = vst.msk [vmem:[#allocation2 + $0x110] sm:$0xff] %vm305, 0.0
        %341 = vst.msk [vmem:[#allocation2 + $0x118] sm:$0xff] %vm305, 0.0
        %342 = vst.msk [vmem:[#allocation2 + $0x120] sm:$0xff] %vm305, 0.0
        %343 = vst.msk [vmem:[#allocation2 + $0x128] sm:$0xff] %vm305, 0.0
        %344 = vst.msk [vmem:[#allocation2 + $0x130] sm:$0xff] %vm305, 0.0
        %345 = vst.msk [vmem:[#allocation2 + $0x138] sm:$0xff] %vm305, 0.0
        %346 = vst.msk [vmem:[#allocation2 + $0x140] sm:$0xff] %vm305, 0.0
        %347 = vst.msk [vmem:[#allocation2 + $0x148] sm:$0xff] %vm305, 0.0
        %348 = vst.msk [vmem:[#allocation2 + $0x150] sm:$0xff] %vm305, 0.0
        %349 = vst.msk [vmem:[#allocation2 + $0x158] sm:$0xff] %vm305, 0.0
        %350 = vst.msk [vmem:[#allocation2 + $0x160] sm:$0xff] %vm305, 0.0
        %351 = vst.msk [vmem:[#allocation2 + $0x168] sm:$0xff] %vm305, 0.0
        %352 = vst.msk [vmem:[#allocation2 + $0x170] sm:$0xff] %vm305, 0.0
        %353 = vst.msk [vmem:[#allocation2 + $0x178] sm:$0xff] %vm305, 0.0
        %354 = vst.msk [vmem:[#allocation2 + $0x180] sm:$0xff] %vm305, 0.0
        %355 = vst.msk [vmem:[#allocation2 + $0x188] sm:$0xff] %vm305, 0.0
        %356 = vst.msk [vmem:[#allocation2 + $0x190] sm:$0xff] %vm305, 0.0
        %357 = vst.msk [vmem:[#allocation2 + $0x198] sm:$0xff] %vm305, 0.0
        %358 = vst.msk [vmem:[#allocation2 + $0x1a0] sm:$0xff] %vm305, 0.0
        %359 = vst.msk [vmem:[#allocation2 + $0x1a8] sm:$0xff] %vm305, 0.0
        %360 = vst.msk [vmem:[#allocation2 + $0x1b0] sm:$0xff] %vm305, 0.0
        %361 = vst.msk [vmem:[#allocation2 + $0x1b8] sm:$0xff] %vm305, 0.0
        %362 = vst.msk [vmem:[#allocation2 + $0x1c0] sm:$0xff] %vm305, 0.0
        %363 = vst.msk [vmem:[#allocation2 + $0x1c8] sm:$0xff] %vm305, 0.0
        %364 = vst.msk [vmem:[#allocation2 + $0x1d0] sm:$0xff] %vm305, 0.0
        %365 = vst.msk [vmem:[#allocation2 + $0x1d8] sm:$0xff] %vm305, 0.0
        %366 = vst.msk [vmem:[#allocation2 + $0x1e0] sm:$0xff] %vm305, 0.0
        %367 = vst.msk [vmem:[#allocation2 + $0x1e8] sm:$0xff] %vm305, 0.0
        %368 = vst.msk [vmem:[#allocation2 + $0x1f0] sm:$0xff] %vm305, 0.0
        %369 = vst.msk [vmem:[#allocation2 + $0x1f8] sm:$0xff] %vm305, 0.0
        %370 = vst.msk [vmem:[#allocation2 + $0x200] sm:$0xff] %vm305, 0.0
        %371 = vst.msk [vmem:[#allocation2 + $0x208] sm:$0xff] %vm305, 0.0
        %372 = vst.msk [vmem:[#allocation2 + $0x210] sm:$0xff] %vm305, 0.0
        %373 = vst.msk [vmem:[#allocation2 + $0x218] sm:$0xff] %vm305, 0.0
        %374 = vst.msk [vmem:[#allocation2 + $0x220] sm:$0xff] %vm305, 0.0
        %375 = vst.msk [vmem:[#allocation2 + $0x228] sm:$0xff] %vm305, 0.0
        %376 = vst.msk [vmem:[#allocation2 + $0x230] sm:$0xff] %vm305, 0.0
        %377 = vst.msk [vmem:[#allocation2 + $0x238] sm:$0xff] %vm305, 0.0
        %378 = vst.msk [vmem:[#allocation2 + $0x240] sm:$0xff] %vm305, 0.0
        %379 = vst.msk [vmem:[#allocation2 + $0x248] sm:$0xff] %vm305, 0.0
        %380 = vst.msk [vmem:[#allocation2 + $0x250] sm:$0xff] %vm305, 0.0
        %381 = vst.msk [vmem:[#allocation2 + $0x258] sm:$0xff] %vm305, 0.0
        %382 = vst.msk [vmem:[#allocation2 + $0x260] sm:$0xff] %vm305, 0.0
        %383 = vst.msk [vmem:[#allocation2 + $0x268] sm:$0xff] %vm305, 0.0
        %384 = vst.msk [vmem:[#allocation2 + $0x270] sm:$0xff] %vm305, 0.0
        %385 = vst.msk [vmem:[#allocation2 + $0x278] sm:$0xff] %vm305, 0.0
        %386 = vst.msk [vmem:[#allocation2 + $0x280] sm:$0xff] %vm305, 0.0
        %387 = vst.msk [vmem:[#allocation2 + $0x288] sm:$0xff] %vm305, 0.0
        %388 = vst.msk [vmem:[#allocation2 + $0x290] sm:$0xff] %vm305, 0.0
        %389 = vst.msk [vmem:[#allocation2 + $0x298] sm:$0xff] %vm305, 0.0
        %390 = vst.msk [vmem:[#allocation2 + $0x2a0] sm:$0xff] %vm305, 0.0
        %391 = vst.msk [vmem:[#allocation2 + $0x2a8] sm:$0xff] %vm305, 0.0
        %392 = vst.msk [vmem:[#allocation2 + $0x2b0] sm:$0xff] %vm305, 0.0
        %393 = vst.msk [vmem:[#allocation2 + $0x2b8] sm:$0xff] %vm305, 0.0
        %394 = vst.msk [vmem:[#allocation2 + $0x2c0] sm:$0xff] %vm305, 0.0
        %395 = vst.msk [vmem:[#allocation2 + $0x2c8] sm:$0xff] %vm305, 0.0
        %396 = vst.msk [vmem:[#allocation2 + $0x2d0] sm:$0xff] %vm305, 0.0
        %397 = vst.msk [vmem:[#allocation2 + $0x2d8] sm:$0xff] %vm305, 0.0
        %398 = vst.msk [vmem:[#allocation2 + $0x2e0] sm:$0xff] %vm305, 0.0
        %399 = vst.msk [vmem:[#allocation2 + $0x2e8] sm:$0xff] %vm305, 0.0
        %400 = vst.msk [vmem:[#allocation2 + $0x2f0] sm:$0xff] %vm305, 0.0
        %401 = vst.msk [vmem:[#allocation2 + $0x2f8] sm:$0xff] %vm305, 0.0
        %402 = vst.msk [vmem:[#allocation2 + $0x300] sm:$0xff] %vm305, 0.0
        %403 = vst.msk [vmem:[#allocation2 + $0x308] sm:$0xff] %vm305, 0.0
        %404 = vst.msk [vmem:[#allocation2 + $0x310] sm:$0xff] %vm305, 0.0
        %405 = vst.msk [vmem:[#allocation2 + $0x318] sm:$0xff] %vm305, 0.0
        %406 = vst.msk [vmem:[#allocation2 + $0x320] sm:$0xff] %vm305, 0.0
        %407 = vst.msk [vmem:[#allocation2 + $0x328] sm:$0xff] %vm305, 0.0
        %408 = vst.msk [vmem:[#allocation2 + $0x330] sm:$0xff] %vm305, 0.0
        %409 = vst.msk [vmem:[#allocation2 + $0x338] sm:$0xff] %vm305, 0.0
        %410 = vst.msk [vmem:[#allocation2 + $0x340] sm:$0xff] %vm305, 0.0
        %411 = vst.msk [vmem:[#allocation2 + $0x348] sm:$0xff] %vm305, 0.0
        %412 = vst.msk [vmem:[#allocation2 + $0x350] sm:$0xff] %vm305, 0.0
        %413 = vst.msk [vmem:[#allocation2 + $0x358] sm:$0xff] %vm305, 0.0
        %414 = vst.msk [vmem:[#allocation2 + $0x360] sm:$0xff] %vm305, 0.0
        %415 = vst.msk [vmem:[#allocation2 + $0x368] sm:$0xff] %vm305, 0.0
        %416 = vst.msk [vmem:[#allocation2 + $0x370] sm:$0xff] %vm305, 0.0
        %417 = vst.msk [vmem:[#allocation2 + $0x378] sm:$0xff] %vm305, 0.0
        %418 = vst.msk [vmem:[#allocation2 + $0x380] sm:$0xff] %vm305, 0.0
        %419 = vst.msk [vmem:[#allocation2 + $0x388] sm:$0xff] %vm305, 0.0
        %420 = vst.msk [vmem:[#allocation2 + $0x390] sm:$0xff] %vm305, 0.0
        %421 = vst.msk [vmem:[#allocation2 + $0x398] sm:$0xff] %vm305, 0.0
        %422 = vst.msk [vmem:[#allocation2 + $0x3a0] sm:$0xff] %vm305, 0.0
        %423 = vst.msk [vmem:[#allocation2 + $0x3a8] sm:$0xff] %vm305, 0.0
        %424 = vst.msk [vmem:[#allocation2 + $0x3b0] sm:$0xff] %vm305, 0.0
        %425 = vst.msk [vmem:[#allocation2 + $0x3b8] sm:$0xff] %vm305, 0.0
        %426 = vst.msk [vmem:[#allocation2 + $0x3c0] sm:$0xff] %vm305, 0.0
        %427 = vst.msk [vmem:[#allocation2 + $0x3c8] sm:$0xff] %vm305, 0.0
        %428 = vst.msk [vmem:[#allocation2 + $0x3d0] sm:$0xff] %vm305, 0.0
        %429 = vst.msk [vmem:[#allocation2 + $0x3d8] sm:$0xff] %vm305, 0.0
        %430 = vst.msk [vmem:[#allocation2 + $0x3e0] sm:$0xff] %vm305, 0.0
        %431 = vst.msk [vmem:[#allocation2 + $0x3e8] sm:$0xff] %vm305, 0.0
        %432 = vst.msk [vmem:[#allocation2 + $0x3f0] sm:$0xff] %vm305, 0.0
        %433 = vst.msk [vmem:[#allocation2 + $0x3f8] sm:$0xff] %vm305, 0.0
      $region40: #{_fused_matmul_call.1} parent=35 // pred_fallthru
        _
      %v434 = vld [vmem:[#allocation2] sm:$0xff]
      %v435 = vld [vmem:[#allocation2 + $0x8] sm:$0xff]
      %v436 = vld [vmem:[#allocation2 + $0x10] sm:$0xff]
      %v437 = vld [vmem:[#allocation2 + $0x18] sm:$0xff]
      %v438 = vld [vmem:[#allocation2 + $0x20] sm:$0xff]
      %v439 = vld [vmem:[#allocation2 + $0x28] sm:$0xff]
      %v440 = vld [vmem:[#allocation2 + $0x30] sm:$0xff]
      %v441 = vld [vmem:[#allocation2 + $0x38] sm:$0xff]
      %v442 = vld [vmem:[#allocation2 + $0x40] sm:$0xff]
      %v443 = vld [vmem:[#allocation2 + $0x48] sm:$0xff]
      %v444 = vld [vmem:[#allocation2 + $0x50] sm:$0xff]
      %v445 = vld [vmem:[#allocation2 + $0x58] sm:$0xff]
      %v446 = vld [vmem:[#allocation2 + $0x60] sm:$0xff]
      %v447 = vld [vmem:[#allocation2 + $0x68] sm:$0xff]
      %v448 = vld [vmem:[#allocation2 + $0x70] sm:$0xff]
      %v449 = vld [vmem:[#allocation2 + $0x78] sm:$0xff]
      %v450 = vld [vmem:[#allocation2 + $0x80] sm:$0xff]
      %v451 = vld [vmem:[#allocation2 + $0x88] sm:$0xff]
      %v452 = vld [vmem:[#allocation2 + $0x90] sm:$0xff]
      %v453 = vld [vmem:[#allocation2 + $0x98] sm:$0xff]
      %v454 = vld [vmem:[#allocation2 + $0xa0] sm:$0xff]
      %v455 = vld [vmem:[#allocation2 + $0xa8] sm:$0xff]
      %v456 = vld [vmem:[#allocation2 + $0xb0] sm:$0xff]
      %v457 = vld [vmem:[#allocation2 + $0xb8] sm:$0xff]
      %v458 = vld [vmem:[#allocation2 + $0xc0] sm:$0xff]
      %v459 = vld [vmem:[#allocation2 + $0xc8] sm:$0xff]
      %v460 = vld [vmem:[#allocation2 + $0xd0] sm:$0xff]
      %v461 = vld [vmem:[#allocation2 + $0xd8] sm:$0xff]
      %v462 = vld [vmem:[#allocation2 + $0xe0] sm:$0xff]
      %v463 = vld [vmem:[#allocation2 + $0xe8] sm:$0xff]
      %v464 = vld [vmem:[#allocation2 + $0xf0] sm:$0xff]
      %v465 = vld [vmem:[#allocation2 + $0xf8] sm:$0xff]
      %v466 = vld [vmem:[#allocation2 + $0x100] sm:$0xff]
      %v467 = vld [vmem:[#allocation2 + $0x108] sm:$0xff]
      %v468 = vld [vmem:[#allocation2 + $0x110] sm:$0xff]
      %v469 = vld [vmem:[#allocation2 + $0x118] sm:$0xff]
      %v470 = vld [vmem:[#allocation2 + $0x120] sm:$0xff]
      %v471 = vld [vmem:[#allocation2 + $0x128] sm:$0xff]
      %v472 = vld [vmem:[#allocation2 + $0x130] sm:$0xff]
      %v473 = vld [vmem:[#allocation2 + $0x138] sm:$0xff]
      %v474 = vld [vmem:[#allocation2 + $0x140] sm:$0xff]
      %v475 = vld [vmem:[#allocation2 + $0x148] sm:$0xff]
      %v476 = vld [vmem:[#allocation2 + $0x150] sm:$0xff]
      %v477 = vld [vmem:[#allocation2 + $0x158] sm:$0xff]
      %v478 = vld [vmem:[#allocation2 + $0x160] sm:$0xff]
      %v479 = vld [vmem:[#allocation2 + $0x168] sm:$0xff]
      %v480 = vld [vmem:[#allocation2 + $0x170] sm:$0xff]
      %v481 = vld [vmem:[#allocation2 + $0x178] sm:$0xff]
      %v482 = vld [vmem:[#allocation2 + $0x180] sm:$0xff]
      %v483 = vld [vmem:[#allocation2 + $0x188] sm:$0xff]
      %v484 = vld [vmem:[#allocation2 + $0x190] sm:$0xff]
      %v485 = vld [vmem:[#allocation2 + $0x198] sm:$0xff]
      %v486 = vld [vmem:[#allocation2 + $0x1a0] sm:$0xff]
      %v487 = vld [vmem:[#allocation2 + $0x1a8] sm:$0xff]
      %v488 = vld [vmem:[#allocation2 + $0x1b0] sm:$0xff]
      %v489 = vld [vmem:[#allocation2 + $0x1b8] sm:$0xff]
      %v490 = vld [vmem:[#allocation2 + $0x1c0] sm:$0xff]
      %v491 = vld [vmem:[#allocation2 + $0x1c8] sm:$0xff]
      %v492 = vld [vmem:[#allocation2 + $0x1d0] sm:$0xff]
      %v493 = vld [vmem:[#allocation2 + $0x1d8] sm:$0xff]
      %v494 = vld [vmem:[#allocation2 + $0x1e0] sm:$0xff]
      %v495 = vld [vmem:[#allocation2 + $0x1e8] sm:$0xff]
      %v496 = vld [vmem:[#allocation2 + $0x1f0] sm:$0xff]
      %v497 = vld [vmem:[#allocation2 + $0x1f8] sm:$0xff]
      %v498 = vld [vmem:[#allocation2 + $0x200] sm:$0xff]
      %v499 = vld [vmem:[#allocation2 + $0x208] sm:$0xff]
      %v500 = vld [vmem:[#allocation2 + $0x210] sm:$0xff]
      %v501 = vld [vmem:[#allocation2 + $0x218] sm:$0xff]
      %v502 = vld [vmem:[#allocation2 + $0x220] sm:$0xff]
      %v503 = vld [vmem:[#allocation2 + $0x228] sm:$0xff]
      %v504 = vld [vmem:[#allocation2 + $0x230] sm:$0xff]
      %v505 = vld [vmem:[#allocation2 + $0x238] sm:$0xff]
      %v506 = vld [vmem:[#allocation2 + $0x240] sm:$0xff]
      %v507 = vld [vmem:[#allocation2 + $0x248] sm:$0xff]
      %v508 = vld [vmem:[#allocation2 + $0x250] sm:$0xff]
      %v509 = vld [vmem:[#allocation2 + $0x258] sm:$0xff]
      %v510 = vld [vmem:[#allocation2 + $0x260] sm:$0xff]
      %v511 = vld [vmem:[#allocation2 + $0x268] sm:$0xff]
      %v512 = vld [vmem:[#allocation2 + $0x270] sm:$0xff]
      %v513 = vld [vmem:[#allocation2 + $0x278] sm:$0xff]
      %v514 = vld [vmem:[#allocation2 + $0x280] sm:$0xff]
      %v515 = vld [vmem:[#allocation2 + $0x288] sm:$0xff]
      %v516 = vld [vmem:[#allocation2 + $0x290] sm:$0xff]
      %v517 = vld [vmem:[#allocation2 + $0x298] sm:$0xff]
      %v518 = vld [vmem:[#allocation2 + $0x2a0] sm:$0xff]
      %v519 = vld [vmem:[#allocation2 + $0x2a8] sm:$0xff]
      %v520 = vld [vmem:[#allocation2 + $0x2b0] sm:$0xff]
      %v521 = vld [vmem:[#allocation2 + $0x2b8] sm:$0xff]
      %v522 = vld [vmem:[#allocation2 + $0x2c0] sm:$0xff]
      %v523 = vld [vmem:[#allocation2 + $0x2c8] sm:$0xff]
      %v524 = vld [vmem:[#allocation2 + $0x2d0] sm:$0xff]
      %v525 = vld [vmem:[#allocation2 + $0x2d8] sm:$0xff]
      %v526 = vld [vmem:[#allocation2 + $0x2e0] sm:$0xff]
      %v527 = vld [vmem:[#allocation2 + $0x2e8] sm:$0xff]
      %v528 = vld [vmem:[#allocation2 + $0x2f0] sm:$0xff]
      %v529 = vld [vmem:[#allocation2 + $0x2f8] sm:$0xff]
      %v530 = vld [vmem:[#allocation2 + $0x300] sm:$0xff]
      %v531 = vld [vmem:[#allocation2 + $0x308] sm:$0xff]
      %v532 = vld [vmem:[#allocation2 + $0x310] sm:$0xff]
      %v533 = vld [vmem:[#allocation2 + $0x318] sm:$0xff]
      %v534 = vld [vmem:[#allocation2 + $0x320] sm:$0xff]
      %v535 = vld [vmem:[#allocation2 + $0x328] sm:$0xff]
      %v536 = vld [vmem:[#allocation2 + $0x330] sm:$0xff]
      %v537 = vld [vmem:[#allocation2 + $0x338] sm:$0xff]
      %v538 = vld [vmem:[#allocation2 + $0x340] sm:$0xff]
      %v539 = vld [vmem:[#allocation2 + $0x348] sm:$0xff]
      %v540 = vld [vmem:[#allocation2 + $0x350] sm:$0xff]
      %v541 = vld [vmem:[#allocation2 + $0x358] sm:$0xff]
      %v542 = vld [vmem:[#allocation2 + $0x360] sm:$0xff]
      %v543 = vld [vmem:[#allocation2 + $0x368] sm:$0xff]
      %v544 = vld [vmem:[#allocation2 + $0x370] sm:$0xff]
      %v545 = vld [vmem:[#allocation2 + $0x378] sm:$0xff]
      %v546 = vld [vmem:[#allocation2 + $0x380] sm:$0xff]
      %v547 = vld [vmem:[#allocation2 + $0x388] sm:$0xff]
      %v548 = vld [vmem:[#allocation2 + $0x390] sm:$0xff]
      %v549 = vld [vmem:[#allocation2 + $0x398] sm:$0xff]
      %v550 = vld [vmem:[#allocation2 + $0x3a0] sm:$0xff]
      %v551 = vld [vmem:[#allocation2 + $0x3a8] sm:$0xff]
      %v552 = vld [vmem:[#allocation2 + $0x3b0] sm:$0xff]
      %v553 = vld [vmem:[#allocation2 + $0x3b8] sm:$0xff]
      %v554 = vld [vmem:[#allocation2 + $0x3c0] sm:$0xff]
      %v555 = vld [vmem:[#allocation2 + $0x3c8] sm:$0xff]
      %v556 = vld [vmem:[#allocation2 + $0x3d0] sm:$0xff]
      %v557 = vld [vmem:[#allocation2 + $0x3d8] sm:$0xff]
      %v558 = vld [vmem:[#allocation2 + $0x3e0] sm:$0xff]
      %v559 = vld [vmem:[#allocation2 + $0x3e8] sm:$0xff]
      %v560 = vld [vmem:[#allocation2 + $0x3f0] sm:$0xff]
      %v561 = vld [vmem:[#allocation2 + $0x3f8] sm:$0xff]
      %v562 = vld [vmem:[%s274] sm:$0xf]
      %v563 = vld [vmem:[%s274 + $0x4] sm:$0xf]
      %v564 = vld [vmem:[%s274 + $0x8] sm:$0xf]
      %v565 = vld [vmem:[%s274 + $0xc] sm:$0xf]
      %v566 = vld [vmem:[%s274 + $0x10] sm:$0xf]
      %v567 = vld [vmem:[%s274 + $0x14] sm:$0xf]
      %v568 = vld [vmem:[%s274 + $0x18] sm:$0xf]
      %v569 = vld [vmem:[%s274 + $0x1c] sm:$0xf]
      %v570 = vld [vmem:[%s274 + $0x20] sm:$0xf]
      %v571 = vld [vmem:[%s274 + $0x24] sm:$0xf]
      %v572 = vld [vmem:[%s274 + $0x28] sm:$0xf]
      %v573 = vld [vmem:[%s274 + $0x2c] sm:$0xf]
      %v574 = vld [vmem:[%s274 + $0x30] sm:$0xf]
      %v575 = vld [vmem:[%s274 + $0x34] sm:$0xf]
      %v576 = vld [vmem:[%s274 + $0x38] sm:$0xf]
      %v577 = vld [vmem:[%s274 + $0x3c] sm:$0xf]
      %v578 = vld [vmem:[%s274 + $0x40] sm:$0xf]
      %v579 = vld [vmem:[%s274 + $0x44] sm:$0xf]
      %v580 = vld [vmem:[%s274 + $0x48] sm:$0xf]
      %v581 = vld [vmem:[%s274 + $0x4c] sm:$0xf]
      %v582 = vld [vmem:[%s274 + $0x50] sm:$0xf]
      %v583 = vld [vmem:[%s274 + $0x54] sm:$0xf]
      %v584 = vld [vmem:[%s274 + $0x58] sm:$0xf]
      %v585 = vld [vmem:[%s274 + $0x5c] sm:$0xf]
      %v586 = vld [vmem:[%s274 + $0x60] sm:$0xf]
      %v587 = vld [vmem:[%s274 + $0x64] sm:$0xf]
      %v588 = vld [vmem:[%s274 + $0x68] sm:$0xf]
      %v589 = vld [vmem:[%s274 + $0x6c] sm:$0xf]
      %v590 = vld [vmem:[%s274 + $0x70] sm:$0xf]
      %v591 = vld [vmem:[%s274 + $0x74] sm:$0xf]
      %v592 = vld [vmem:[%s274 + $0x78] sm:$0xf]
      %v593 = vld [vmem:[%s274 + $0x7c] sm:$0xf]
      %v594 = vld [vmem:[%s274 + $0x80] sm:$0xf]
      %v595 = vld [vmem:[%s274 + $0x84] sm:$0xf]
      %v596 = vld [vmem:[%s274 + $0x88] sm:$0xf]
      %v597 = vld [vmem:[%s274 + $0x8c] sm:$0xf]
      %v598 = vld [vmem:[%s274 + $0x90] sm:$0xf]
      %v599 = vld [vmem:[%s274 + $0x94] sm:$0xf]
      %v600 = vld [vmem:[%s274 + $0x98] sm:$0xf]
      %v601 = vld [vmem:[%s274 + $0x9c] sm:$0xf]
      %v602 = vld [vmem:[%s274 + $0xa0] sm:$0xf]
      %v603 = vld [vmem:[%s274 + $0xa4] sm:$0xf]
      %v604 = vld [vmem:[%s274 + $0xa8] sm:$0xf]
      %v605 = vld [vmem:[%s274 + $0xac] sm:$0xf]
      %v606 = vld [vmem:[%s274 + $0xb0] sm:$0xf]
      %v607 = vld [vmem:[%s274 + $0xb4] sm:$0xf]
      %v608 = vld [vmem:[%s274 + $0xb8] sm:$0xf]
      %v609 = vld [vmem:[%s274 + $0xbc] sm:$0xf]
      %v610 = vld [vmem:[%s274 + $0xc0] sm:$0xf]
      %v611 = vld [vmem:[%s274 + $0xc4] sm:$0xf]
      %v612 = vld [vmem:[%s274 + $0xc8] sm:$0xf]
      %v613 = vld [vmem:[%s274 + $0xcc] sm:$0xf]
      %v614 = vld [vmem:[%s274 + $0xd0] sm:$0xf]
      %v615 = vld [vmem:[%s274 + $0xd4] sm:$0xf]
      %v616 = vld [vmem:[%s274 + $0xd8] sm:$0xf]
      %v617 = vld [vmem:[%s274 + $0xdc] sm:$0xf]
      %v618 = vld [vmem:[%s274 + $0xe0] sm:$0xf]
      %v619 = vld [vmem:[%s274 + $0xe4] sm:$0xf]
      %v620 = vld [vmem:[%s274 + $0xe8] sm:$0xf]
      %v621 = vld [vmem:[%s274 + $0xec] sm:$0xf]
      %v622 = vld [vmem:[%s274 + $0xf0] sm:$0xf]
      %v623 = vld [vmem:[%s274 + $0xf4] sm:$0xf]
      %v624 = vld [vmem:[%s274 + $0xf8] sm:$0xf]
      %v625 = vld [vmem:[%s274 + $0xfc] sm:$0xf]
      %v626 = vld [vmem:[%s274 + $0x100] sm:$0xf]
      %v627 = vld [vmem:[%s274 + $0x104] sm:$0xf]
      %v628 = vld [vmem:[%s274 + $0x108] sm:$0xf]
      %v629 = vld [vmem:[%s274 + $0x10c] sm:$0xf]
      %v630 = vld [vmem:[%s274 + $0x110] sm:$0xf]
      %v631 = vld [vmem:[%s274 + $0x114] sm:$0xf]
      %v632 = vld [vmem:[%s274 + $0x118] sm:$0xf]
      %v633 = vld [vmem:[%s274 + $0x11c] sm:$0xf]
      %v634 = vld [vmem:[%s274 + $0x120] sm:$0xf]
      %v635 = vld [vmem:[%s274 + $0x124] sm:$0xf]
      %v636 = vld [vmem:[%s274 + $0x128] sm:$0xf]
      %v637 = vld [vmem:[%s274 + $0x12c] sm:$0xf]
      %v638 = vld [vmem:[%s274 + $0x130] sm:$0xf]
      %v639 = vld [vmem:[%s274 + $0x134] sm:$0xf]
      %v640 = vld [vmem:[%s274 + $0x138] sm:$0xf]
      %v641 = vld [vmem:[%s274 + $0x13c] sm:$0xf]
      %v642 = vld [vmem:[%s274 + $0x140] sm:$0xf]
      %v643 = vld [vmem:[%s274 + $0x144] sm:$0xf]
      %v644 = vld [vmem:[%s274 + $0x148] sm:$0xf]
      %v645 = vld [vmem:[%s274 + $0x14c] sm:$0xf]
      %v646 = vld [vmem:[%s274 + $0x150] sm:$0xf]
      %v647 = vld [vmem:[%s274 + $0x154] sm:$0xf]
      %v648 = vld [vmem:[%s274 + $0x158] sm:$0xf]
      %v649 = vld [vmem:[%s274 + $0x15c] sm:$0xf]
      %v650 = vld [vmem:[%s274 + $0x160] sm:$0xf]
      %v651 = vld [vmem:[%s274 + $0x164] sm:$0xf]
      %v652 = vld [vmem:[%s274 + $0x168] sm:$0xf]
      %v653 = vld [vmem:[%s274 + $0x16c] sm:$0xf]
      %v654 = vld [vmem:[%s274 + $0x170] sm:$0xf]
      %v655 = vld [vmem:[%s274 + $0x174] sm:$0xf]
      %v656 = vld [vmem:[%s274 + $0x178] sm:$0xf]
      %v657 = vld [vmem:[%s274 + $0x17c] sm:$0xf]
      %v658 = vld [vmem:[%s274 + $0x180] sm:$0xf]
      %v659 = vld [vmem:[%s274 + $0x184] sm:$0xf]
      %v660 = vld [vmem:[%s274 + $0x188] sm:$0xf]
      %v661 = vld [vmem:[%s274 + $0x18c] sm:$0xf]
      %v662 = vld [vmem:[%s274 + $0x190] sm:$0xf]
      %v663 = vld [vmem:[%s274 + $0x194] sm:$0xf]
      %v664 = vld [vmem:[%s274 + $0x198] sm:$0xf]
      %v665 = vld [vmem:[%s274 + $0x19c] sm:$0xf]
      %v666 = vld [vmem:[%s274 + $0x1a0] sm:$0xf]
      %v667 = vld [vmem:[%s274 + $0x1a4] sm:$0xf]
      %v668 = vld [vmem:[%s274 + $0x1a8] sm:$0xf]
      %v669 = vld [vmem:[%s274 + $0x1ac] sm:$0xf]
      %v670 = vld [vmem:[%s274 + $0x1b0] sm:$0xf]
      %v671 = vld [vmem:[%s274 + $0x1b4] sm:$0xf]
      %v672 = vld [vmem:[%s274 + $0x1b8] sm:$0xf]
      %v673 = vld [vmem:[%s274 + $0x1bc] sm:$0xf]
      %v674 = vld [vmem:[%s274 + $0x1c0] sm:$0xf]
      %v675 = vld [vmem:[%s274 + $0x1c4] sm:$0xf]
      %v676 = vld [vmem:[%s274 + $0x1c8] sm:$0xf]
      %v677 = vld [vmem:[%s274 + $0x1cc] sm:$0xf]
      %v678 = vld [vmem:[%s274 + $0x1d0] sm:$0xf]
      %v679 = vld [vmem:[%s274 + $0x1d4] sm:$0xf]
      %v680 = vld [vmem:[%s274 + $0x1d8] sm:$0xf]
      %v681 = vld [vmem:[%s274 + $0x1dc] sm:$0xf]
      %v682 = vld [vmem:[%s274 + $0x1e0] sm:$0xf]
      %v683 = vld [vmem:[%s274 + $0x1e4] sm:$0xf]
      %v684 = vld [vmem:[%s274 + $0x1e8] sm:$0xf]
      %v685 = vld [vmem:[%s274 + $0x1ec] sm:$0xf]
      %v686 = vld [vmem:[%s274 + $0x1f0] sm:$0xf]
      %v687 = vld [vmem:[%s274 + $0x1f4] sm:$0xf]
      %v688 = vld [vmem:[%s274 + $0x1f8] sm:$0xf]
      %v689 = vld [vmem:[%s274 + $0x1fc] sm:$0xf]
      %v690 = vld [vmem:[%s283] sm:$0xf]
      %v691 = vld [vmem:[%s283 + $0x4] sm:$0xf]
      %v692 = vld [vmem:[%s283 + $0x8] sm:$0xf]
      %v693 = vld [vmem:[%s283 + $0xc] sm:$0x3]
      %v822 = vunpack.c.l.b16 %v562
      %v823 = vunpack.c.l.b16 %v563
      %v824 = vunpack.c.l.b16 %v564
      %v825 = vunpack.c.l.b16 %v565
      %v826 = vunpack.c.l.b16 %v566
      %v827 = vunpack.c.l.b16 %v567
      %v828 = vunpack.c.l.b16 %v568
      %v829 = vunpack.c.l.b16 %v569
      %v830 = vunpack.c.l.b16 %v570
      %v831 = vunpack.c.l.b16 %v571
      %v832 = vunpack.c.l.b16 %v572
      %v833 = vunpack.c.l.b16 %v573
      %v834 = vunpack.c.l.b16 %v574
      %v835 = vunpack.c.l.b16 %v575
      %v836 = vunpack.c.l.b16 %v576
      %v837 = vunpack.c.l.b16 %v577
      %v838 = vunpack.c.l.b16 %v578
      %v839 = vunpack.c.l.b16 %v579
      %v840 = vunpack.c.l.b16 %v580
      %v841 = vunpack.c.l.b16 %v581
      %v842 = vunpack.c.l.b16 %v582
      %v843 = vunpack.c.l.b16 %v583
      %v844 = vunpack.c.l.b16 %v584
      %v845 = vunpack.c.l.b16 %v585
      %v846 = vunpack.c.l.b16 %v586
      %v847 = vunpack.c.l.b16 %v587
      %v848 = vunpack.c.l.b16 %v588
      %v849 = vunpack.c.l.b16 %v589
      %v850 = vunpack.c.l.b16 %v590
      %v851 = vunpack.c.l.b16 %v591
      %v852 = vunpack.c.l.b16 %v592
      %v853 = vunpack.c.l.b16 %v593
      %v854 = vunpack.c.l.b16 %v594
      %v855 = vunpack.c.l.b16 %v595
      %v856 = vunpack.c.l.b16 %v596
      %v857 = vunpack.c.l.b16 %v597
      %v858 = vunpack.c.l.b16 %v598
      %v859 = vunpack.c.l.b16 %v599
      %v860 = vunpack.c.l.b16 %v600
      %v861 = vunpack.c.l.b16 %v601
      %v862 = vunpack.c.l.b16 %v602
      %v863 = vunpack.c.l.b16 %v603
      %v864 = vunpack.c.l.b16 %v604
      %v865 = vunpack.c.l.b16 %v605
      %v866 = vunpack.c.l.b16 %v606
      %v867 = vunpack.c.l.b16 %v607
      %v868 = vunpack.c.l.b16 %v608
      %v869 = vunpack.c.l.b16 %v609
      %v870 = vunpack.c.l.b16 %v610
      %v871 = vunpack.c.l.b16 %v611
      %v872 = vunpack.c.l.b16 %v612
      %v873 = vunpack.c.l.b16 %v613
      %v874 = vunpack.c.l.b16 %v614
      %v875 = vunpack.c.l.b16 %v615
      %v876 = vunpack.c.l.b16 %v616
      %v877 = vunpack.c.l.b16 %v617
      %v878 = vunpack.c.l.b16 %v618
      %v879 = vunpack.c.l.b16 %v619
      %v880 = vunpack.c.l.b16 %v620
      %v881 = vunpack.c.l.b16 %v621
      %v882 = vunpack.c.l.b16 %v622
      %v883 = vunpack.c.l.b16 %v623
      %v884 = vunpack.c.l.b16 %v624
      %v885 = vunpack.c.l.b16 %v625
      %v886 = vunpack.c.l.b16 %v626
      %v887 = vunpack.c.l.b16 %v627
      %v888 = vunpack.c.l.b16 %v628
      %v889 = vunpack.c.l.b16 %v629
      %v890 = vunpack.c.l.b16 %v630
      %v891 = vunpack.c.l.b16 %v631
      %v892 = vunpack.c.l.b16 %v632
      %v893 = vunpack.c.l.b16 %v633
      %v894 = vunpack.c.l.b16 %v634
      %v895 = vunpack.c.l.b16 %v635
      %v896 = vunpack.c.l.b16 %v636
      %v897 = vunpack.c.l.b16 %v637
      %v898 = vunpack.c.l.b16 %v638
      %v899 = vunpack.c.l.b16 %v639
      %v900 = vunpack.c.l.b16 %v640
      %v901 = vunpack.c.l.b16 %v641
      %v902 = vunpack.c.l.b16 %v642
      %v903 = vunpack.c.l.b16 %v643
      %v904 = vunpack.c.l.b16 %v644
      %v905 = vunpack.c.l.b16 %v645
      %v906 = vunpack.c.l.b16 %v646
      %v907 = vunpack.c.l.b16 %v647
      %v908 = vunpack.c.l.b16 %v648
      %v909 = vunpack.c.l.b16 %v649
      %v910 = vunpack.c.l.b16 %v650
      %v911 = vunpack.c.l.b16 %v651
      %v912 = vunpack.c.l.b16 %v652
      %v913 = vunpack.c.l.b16 %v653
      %v914 = vunpack.c.l.b16 %v654
      %v915 = vunpack.c.l.b16 %v655
      %v916 = vunpack.c.l.b16 %v656
      %v917 = vunpack.c.l.b16 %v657
      %v918 = vunpack.c.l.b16 %v658
      %v919 = vunpack.c.l.b16 %v659
      %v920 = vunpack.c.l.b16 %v660
      %v921 = vunpack.c.l.b16 %v661
      %v922 = vunpack.c.l.b16 %v662
      %v923 = vunpack.c.l.b16 %v663
      %v924 = vunpack.c.l.b16 %v664
      %v925 = vunpack.c.l.b16 %v665
      %v926 = vunpack.c.l.b16 %v666
      %v927 = vunpack.c.l.b16 %v667
      %v928 = vunpack.c.l.b16 %v668
      %v929 = vunpack.c.l.b16 %v669
      %v930 = vunpack.c.l.b16 %v670
      %v931 = vunpack.c.l.b16 %v671
      %v932 = vunpack.c.l.b16 %v672
      %v933 = vunpack.c.l.b16 %v673
      %v934 = vunpack.c.l.b16 %v674
      %v935 = vunpack.c.l.b16 %v675
      %v936 = vunpack.c.l.b16 %v676
      %v937 = vunpack.c.l.b16 %v677
      %v938 = vunpack.c.l.b16 %v678
      %v939 = vunpack.c.l.b16 %v679
      %v940 = vunpack.c.l.b16 %v680
      %v941 = vunpack.c.l.b16 %v681
      %v942 = vunpack.c.l.b16 %v682
      %v943 = vunpack.c.l.b16 %v683
      %v944 = vunpack.c.l.b16 %v684
      %v945 = vunpack.c.l.b16 %v685
      %v946 = vunpack.c.l.b16 %v686
      %v947 = vunpack.c.l.b16 %v687
      %v948 = vunpack.c.l.b16 %v688
      %v949 = vunpack.c.l.b16 %v689
      %v950 = vpack.c.b16 %v823, %v822
      %v951 = vpack.c.b16 %v825, %v824
      %v952 = vpack.c.b16 %v827, %v826
      %v953 = vpack.c.b16 %v829, %v828
      %v954 = vpack.c.b16 %v831, %v830
      %v955 = vpack.c.b16 %v833, %v832
      %v956 = vpack.c.b16 %v835, %v834
      %v957 = vpack.c.b16 %v837, %v836
      %v958 = vpack.c.b16 %v839, %v838
      %v959 = vpack.c.b16 %v841, %v840
      %v960 = vpack.c.b16 %v843, %v842
      %v961 = vpack.c.b16 %v845, %v844
      %v962 = vpack.c.b16 %v847, %v846
      %v963 = vpack.c.b16 %v849, %v848
      %v964 = vpack.c.b16 %v851, %v850
      %v965 = vpack.c.b16 %v853, %v852
      %v966 = vpack.c.b16 %v855, %v854
      %v967 = vpack.c.b16 %v857, %v856
      %v968 = vpack.c.b16 %v859, %v858
      %v969 = vpack.c.b16 %v861, %v860
      %v970 = vpack.c.b16 %v863, %v862
      %v971 = vpack.c.b16 %v865, %v864
      %v972 = vpack.c.b16 %v867, %v866
      %v973 = vpack.c.b16 %v869, %v868
      %v974 = vpack.c.b16 %v871, %v870
      %v975 = vpack.c.b16 %v873, %v872
      %v976 = vpack.c.b16 %v875, %v874
      %v977 = vpack.c.b16 %v877, %v876
      %v978 = vpack.c.b16 %v879, %v878
      %v979 = vpack.c.b16 %v881, %v880
      %v980 = vpack.c.b16 %v883, %v882
      %v981 = vpack.c.b16 %v885, %v884
      %v982 = vpack.c.b16 %v887, %v886
      %v983 = vpack.c.b16 %v889, %v888
      %v984 = vpack.c.b16 %v891, %v890
      %v985 = vpack.c.b16 %v893, %v892
      %v986 = vpack.c.b16 %v895, %v894
      %v987 = vpack.c.b16 %v897, %v896
      %v988 = vpack.c.b16 %v899, %v898
      %v989 = vpack.c.b16 %v901, %v900
      %v990 = vpack.c.b16 %v903, %v902
      %v991 = vpack.c.b16 %v905, %v904
      %v992 = vpack.c.b16 %v907, %v906
      %v993 = vpack.c.b16 %v909, %v908
      %v994 = vpack.c.b16 %v911, %v910
      %v995 = vpack.c.b16 %v913, %v912
      %v996 = vpack.c.b16 %v915, %v914
      %v997 = vpack.c.b16 %v917, %v916
      %v998 = vpack.c.b16 %v919, %v918
      %v999 = vpack.c.b16 %v921, %v920
      %v1000 = vpack.c.b16 %v923, %v922
      %v1001 = vpack.c.b16 %v925, %v924
      %v1002 = vpack.c.b16 %v927, %v926
      %v1003 = vpack.c.b16 %v929, %v928
      %v1004 = vpack.c.b16 %v931, %v930
      %v1005 = vpack.c.b16 %v933, %v932
      %v1006 = vpack.c.b16 %v935, %v934
      %v1007 = vpack.c.b16 %v937, %v936
      %v1008 = vpack.c.b16 %v939, %v938
      %v1009 = vpack.c.b16 %v941, %v940
      %v1010 = vpack.c.b16 %v943, %v942
      %v1011 = vpack.c.b16 %v945, %v944
      %v1012 = vpack.c.b16 %v947, %v946
      %v1013 = vpack.c.b16 %v949, %v948
      %v1018 = vunpack.c.l.b16 %v690
      %v1019 = vunpack.c.l.b16 %v691
      %v1020 = vunpack.c.l.b16 %v692
      %v1021 = vunpack.c.l.b16 %v693
      %v1022 = vpack.c.b16 %v1019, %v1018
      %v1023 = vpack.c.b16 %v1021, %v1020
      %vm1025 = vcmask 220160
      %v1027 = vsel %vm1025, %v950, 0
      %v1030 = vsel %vm1025, %v951, 0
      %v1033 = vsel %vm1025, %v952, 0
      %v1036 = vsel %vm1025, %v953, 0
      %v1039 = vsel %vm1025, %v954, 0
      %v1042 = vsel %vm1025, %v955, 0
      %v1045 = vsel %vm1025, %v956, 0
      %v1048 = vsel %vm1025, %v957, 0
      %v1051 = vsel %vm1025, %v958, 0
      %v1054 = vsel %vm1025, %v959, 0
      %v1057 = vsel %vm1025, %v960, 0
      %v1060 = vsel %vm1025, %v961, 0
      %v1063 = vsel %vm1025, %v962, 0
      %v1066 = vsel %vm1025, %v963, 0
      %v1069 = vsel %vm1025, %v964, 0
      %v1072 = vsel %vm1025, %v965, 0
      %v1075 = vsel %vm1025, %v966, 0
      %v1078 = vsel %vm1025, %v967, 0
      %v1081 = vsel %vm1025, %v968, 0
      %v1084 = vsel %vm1025, %v969, 0
      %v1087 = vsel %vm1025, %v970, 0
      %v1090 = vsel %vm1025, %v971, 0
      %v1093 = vsel %vm1025, %v972, 0
      %v1096 = vsel %vm1025, %v973, 0
      %v1099 = vsel %vm1025, %v974, 0
      %v1102 = vsel %vm1025, %v975, 0
      %v1105 = vsel %vm1025, %v976, 0
      %v1108 = vsel %vm1025, %v977, 0
      %v1111 = vsel %vm1025, %v978, 0
      %v1114 = vsel %vm1025, %v979, 0
      %v1117 = vsel %vm1025, %v980, 0
      %v1120 = vsel %vm1025, %v981, 0
      %v1123 = vsel %vm1025, %v982, 0
      %v1126 = vsel %vm1025, %v983, 0
      %v1129 = vsel %vm1025, %v984, 0
      %v1132 = vsel %vm1025, %v985, 0
      %v1135 = vsel %vm1025, %v986, 0
      %v1138 = vsel %vm1025, %v987, 0
      %v1141 = vsel %vm1025, %v988, 0
      %v1144 = vsel %vm1025, %v989, 0
      %v1147 = vsel %vm1025, %v990, 0
      %v1150 = vsel %vm1025, %v991, 0
      %v1153 = vsel %vm1025, %v992, 0
      %v1156 = vsel %vm1025, %v993, 0
      %v1159 = vsel %vm1025, %v994, 0
      %v1162 = vsel %vm1025, %v995, 0
      %v1165 = vsel %vm1025, %v996, 0
      %v1168 = vsel %vm1025, %v997, 0
      %v1171 = vsel %vm1025, %v998, 0
      %v1174 = vsel %vm1025, %v999, 0
      %v1177 = vsel %vm1025, %v1000, 0
      %v1180 = vsel %vm1025, %v1001, 0
      %v1183 = vsel %vm1025, %v1002, 0
      %v1186 = vsel %vm1025, %v1003, 0
      %v1189 = vsel %vm1025, %v1004, 0
      %v1192 = vsel %vm1025, %v1005, 0
      %v1195 = vsel %vm1025, %v1006, 0
      %v1198 = vsel %vm1025, %v1007, 0
      %v1201 = vsel %vm1025, %v1008, 0
      %v1204 = vsel %vm1025, %v1009, 0
      %v1207 = vsel %vm1025, %v1010, 0
      %v1210 = vsel %vm1025, %v1011, 0
      %v1213 = vsel %vm1025, %v1012, 0
      %v1216 = vsel %vm1025, %v1013, 0
      %vm1218 = vcmask 1044480
      %vm1219 = vcmask 1045504
      %v1220 = vsel %vm1218, 4294967295, 65535
      %v1221 = vsel %vm1219, %v1220, 0
      %v1223 = vand.u32 %v1023, %v1221
      %1225 = vmatprep.subr.bf16.mxu0 0
      %1226 = vmatpush1.bf16.msra.mxu0 0
      %1227 = vmatprep.subr.bf16.mxu0 0
      %1228 = vmatpush1.bf16.msra.mxu0 0
      %1229 = vmatprep.subr.bf16.mxu0 0
      %1230 = vmatpush1.bf16.msra.mxu0 0
      %1231 = vmatprep.subr.bf16.mxu0 0
      %1232 = vmatpush1.bf16.msra.mxu0 0
      %1233 = vmatprep.subr.bf16.mxu0 0
      %1234 = vmatpush1.bf16.msra.mxu0 0
      %1235 = vmatprep.subr.bf16.mxu0 0
      %1236 = vmatpush1.bf16.msra.mxu0 0
      %1237 = vmatprep.subr.bf16.mxu0 0
      %1238 = vmatpush1.bf16.msra.mxu0 %v1223
      %1239 = vmatprep.subr.bf16.mxu0 0
      %1240 = vmatpush1.bf16.msra.mxu0 %v1022
      %1241 = vmatprep.subr.bf16.mxu0 0
      %1242 = vmatpush2.bf16.msra.mxu0 0
      %1243 = vmatprep.subr.bf16.mxu0 0
      %1244 = vmatpush2.bf16.msra.mxu0 0
      %1245 = vmatprep.subr.bf16.mxu0 0
      %1246 = vmatpush2.bf16.msra.mxu0 0
      %1247 = vmatprep.subr.bf16.mxu0 0
      %1248 = vmatpush2.bf16.msra.mxu0 0
      %1249 = vmatprep.subr.bf16.mxu0 0
      %1250 = vmatpush2.bf16.msra.mxu0 0
      %1251 = vmatprep.subr.bf16.mxu0 0
      %1252 = vmatpush2.bf16.msra.mxu0 0
      %1253 = vmatprep.subr.bf16.mxu0 0
      %1254 = vmatpush2.bf16.msra.mxu0 0
      %1255 = vmatprep.subr.bf16.mxu0 0
      %1256 = vmatpush2.bf16.msra.mxu0 0
      %1257 = vmatprep.mubr.bf16.mxu0 0
      %1258 = vmatmul.mubr.bf16.gmra.mxu0 %v1027
      %v1259 = vpop.f32.mrf.mxu0
      %v1260 = vadd.f32 0.0, %v1259
      %v1261 = vpop.f32.mrf.mxu0
      %v1262 = vpop.f32.mrf.mxu0
      %v1263 = vadd.f32 0.0, %v1262
      %v1264 = vpop.f32.mrf.mxu0
      %1265 = vmatprep.mubr.bf16.mxu0 0
      %1266 = vmatmul.mubr.bf16.gmra.mxu0 %v1030
      %v1267 = vpop.f32.mrf.mxu0
      %v1268 = vadd.f32 0.0, %v1267
      %v1269 = vpop.f32.mrf.mxu0
      %v1270 = vpop.f32.mrf.mxu0
      %v1271 = vadd.f32 0.0, %v1270
      %v1272 = vpop.f32.mrf.mxu0
      %1273 = vmatprep.mubr.bf16.mxu0 0
      %1274 = vmatmul.mubr.bf16.gmra.mxu0 %v1033
      %v1275 = vpop.f32.mrf.mxu0
      %v1276 = vadd.f32 0.0, %v1275
      %v1277 = vpop.f32.mrf.mxu0
      %v1278 = vpop.f32.mrf.mxu0
      %v1279 = vadd.f32 0.0, %v1278
      %v1280 = vpop.f32.mrf.mxu0
      %1281 = vmatprep.mubr.bf16.mxu0 0
      %1282 = vmatmul.mubr.bf16.gmra.mxu0 %v1036
      %v1283 = vpop.f32.mrf.mxu0
      %v1284 = vadd.f32 0.0, %v1283
      %v1285 = vpop.f32.mrf.mxu0
      %v1286 = vpop.f32.mrf.mxu0
      %v1287 = vadd.f32 0.0, %v1286
      %v1288 = vpop.f32.mrf.mxu0
      %1289 = vmatprep.mubr.bf16.mxu0 0
      %1290 = vmatmul.mubr.bf16.gmra.mxu0 %v1039
      %v1291 = vpop.f32.mrf.mxu0
      %v1292 = vadd.f32 0.0, %v1291
      %v1293 = vpop.f32.mrf.mxu0
      %v1294 = vpop.f32.mrf.mxu0
      %v1295 = vadd.f32 0.0, %v1294
      %v1296 = vpop.f32.mrf.mxu0
      %1297 = vmatprep.mubr.bf16.mxu0 0
      %1298 = vmatmul.mubr.bf16.gmra.mxu0 %v1042
      %v1299 = vpop.f32.mrf.mxu0
      %v1300 = vadd.f32 0.0, %v1299
      %v1301 = vpop.f32.mrf.mxu0
      %v1302 = vpop.f32.mrf.mxu0
      %v1303 = vadd.f32 0.0, %v1302
      %v1304 = vpop.f32.mrf.mxu0
      %1305 = vmatprep.mubr.bf16.mxu0 0
      %1306 = vmatmul.mubr.bf16.gmra.mxu0 %v1045
      %v1307 = vpop.f32.mrf.mxu0
      %v1308 = vadd.f32 0.0, %v1307
      %v1309 = vpop.f32.mrf.mxu0
      %v1310 = vpop.f32.mrf.mxu0
      %v1311 = vadd.f32 0.0, %v1310
      %v1312 = vpop.f32.mrf.mxu0
      %1313 = vmatprep.mubr.bf16.mxu0 0
      %1314 = vmatmul.mubr.bf16.gmra.mxu0 %v1048
      %v1315 = vpop.f32.mrf.mxu0
      %v1316 = vadd.f32 0.0, %v1315
      %v1317 = vpop.f32.mrf.mxu0
      %v1318 = vpop.f32.mrf.mxu0
      %v1319 = vadd.f32 0.0, %v1318
      %v1320 = vpop.f32.mrf.mxu0
      %1321 = vmatprep.mubr.bf16.mxu0 0
      %1322 = vmatmul.mubr.bf16.gmra.mxu0 %v1051
      %v1323 = vpop.f32.mrf.mxu0
      %v1324 = vadd.f32 0.0, %v1323
      %v1325 = vpop.f32.mrf.mxu0
      %v1326 = vpop.f32.mrf.mxu0
      %v1327 = vadd.f32 0.0, %v1326
      %v1328 = vpop.f32.mrf.mxu0
      %1329 = vmatprep.mubr.bf16.mxu0 0
      %1330 = vmatmul.mubr.bf16.gmra.mxu0 %v1054
      %v1331 = vpop.f32.mrf.mxu0
      %v1332 = vadd.f32 0.0, %v1331
      %v1333 = vpop.f32.mrf.mxu0
      %v1334 = vpop.f32.mrf.mxu0
      %v1335 = vadd.f32 0.0, %v1334
      %v1336 = vpop.f32.mrf.mxu0
      %1337 = vmatprep.mubr.bf16.mxu0 0
      %1338 = vmatmul.mubr.bf16.gmra.mxu0 %v1057
      %v1339 = vpop.f32.mrf.mxu0
      %v1340 = vadd.f32 0.0, %v1339
      %v1341 = vpop.f32.mrf.mxu0
      %v1342 = vpop.f32.mrf.mxu0
      %v1343 = vadd.f32 0.0, %v1342
      %v1344 = vpop.f32.mrf.mxu0
      %1345 = vmatprep.mubr.bf16.mxu0 0
      %1346 = vmatmul.mubr.bf16.gmra.mxu0 %v1060
      %v1347 = vpop.f32.mrf.mxu0
      %v1348 = vadd.f32 0.0, %v1347
      %v1349 = vpop.f32.mrf.mxu0
      %v1350 = vpop.f32.mrf.mxu0
      %v1351 = vadd.f32 0.0, %v1350
      %v1352 = vpop.f32.mrf.mxu0
      %1353 = vmatprep.mubr.bf16.mxu0 0
      %1354 = vmatmul.mubr.bf16.gmra.mxu0 %v1063
      %v1355 = vpop.f32.mrf.mxu0
      %v1356 = vadd.f32 0.0, %v1355
      %v1357 = vpop.f32.mrf.mxu0
      %v1358 = vpop.f32.mrf.mxu0
      %v1359 = vadd.f32 0.0, %v1358
      %v1360 = vpop.f32.mrf.mxu0
      %1361 = vmatprep.mubr.bf16.mxu0 0
      %1362 = vmatmul.mubr.bf16.gmra.mxu0 %v1066
      %v1363 = vpop.f32.mrf.mxu0
      %v1364 = vadd.f32 0.0, %v1363
      %v1365 = vpop.f32.mrf.mxu0
      %v1366 = vpop.f32.mrf.mxu0
      %v1367 = vadd.f32 0.0, %v1366
      %v1368 = vpop.f32.mrf.mxu0
      %1369 = vmatprep.mubr.bf16.mxu0 0
      %1370 = vmatmul.mubr.bf16.gmra.mxu0 %v1069
      %v1371 = vpop.f32.mrf.mxu0
      %v1372 = vadd.f32 0.0, %v1371
      %v1373 = vpop.f32.mrf.mxu0
      %v1374 = vpop.f32.mrf.mxu0
      %v1375 = vadd.f32 0.0, %v1374
      %v1376 = vpop.f32.mrf.mxu0
      %1377 = vmatprep.mubr.bf16.mxu0 0
      %1378 = vmatmul.mubr.bf16.gmra.mxu0 %v1072
      %v1379 = vpop.f32.mrf.mxu0
      %v1380 = vadd.f32 0.0, %v1379
      %v1381 = vpop.f32.mrf.mxu0
      %v1382 = vpop.f32.mrf.mxu0
      %v1383 = vadd.f32 0.0, %v1382
      %v1384 = vpop.f32.mrf.mxu0
      %1385 = vmatprep.mubr.bf16.mxu0 0
      %1386 = vmatmul.mubr.bf16.gmra.mxu0 %v1075
      %v1387 = vpop.f32.mrf.mxu0
      %v1388 = vadd.f32 0.0, %v1387
      %v1389 = vpop.f32.mrf.mxu0
      %v1390 = vpop.f32.mrf.mxu0
      %v1391 = vadd.f32 0.0, %v1390
      %v1392 = vpop.f32.mrf.mxu0
      %1393 = vmatprep.mubr.bf16.mxu0 0
      %1394 = vmatmul.mubr.bf16.gmra.mxu0 %v1078
      %v1395 = vpop.f32.mrf.mxu0
      %v1396 = vadd.f32 0.0, %v1395
      %v1397 = vpop.f32.mrf.mxu0
      %v1398 = vpop.f32.mrf.mxu0
      %v1399 = vadd.f32 0.0, %v1398
      %v1400 = vpop.f32.mrf.mxu0
      %1401 = vmatprep.mubr.bf16.mxu0 0
      %1402 = vmatmul.mubr.bf16.gmra.mxu0 %v1081
      %v1403 = vpop.f32.mrf.mxu0
      %v1404 = vadd.f32 0.0, %v1403
      %v1405 = vpop.f32.mrf.mxu0
      %v1406 = vpop.f32.mrf.mxu0
      %v1407 = vadd.f32 0.0, %v1406
      %v1408 = vpop.f32.mrf.mxu0
      %1409 = vmatprep.mubr.bf16.mxu0 0
      %1410 = vmatmul.mubr.bf16.gmra.mxu0 %v1084
      %v1411 = vpop.f32.mrf.mxu0
      %v1412 = vadd.f32 0.0, %v1411
      %v1413 = vpop.f32.mrf.mxu0
      %v1414 = vpop.f32.mrf.mxu0
      %v1415 = vadd.f32 0.0, %v1414
      %v1416 = vpop.f32.mrf.mxu0
      %1417 = vmatprep.mubr.bf16.mxu0 0
      %1418 = vmatmul.mubr.bf16.gmra.mxu0 %v1087
      %v1419 = vpop.f32.mrf.mxu0
      %v1420 = vadd.f32 0.0, %v1419
      %v1421 = vpop.f32.mrf.mxu0
      %v1422 = vpop.f32.mrf.mxu0
      %v1423 = vadd.f32 0.0, %v1422
      %v1424 = vpop.f32.mrf.mxu0
      %1425 = vmatprep.mubr.bf16.mxu0 0
      %1426 = vmatmul.mubr.bf16.gmra.mxu0 %v1090
      %v1427 = vpop.f32.mrf.mxu0
      %v1428 = vadd.f32 0.0, %v1427
      %v1429 = vpop.f32.mrf.mxu0
      %v1430 = vpop.f32.mrf.mxu0
      %v1431 = vadd.f32 0.0, %v1430
      %v1432 = vpop.f32.mrf.mxu0
      %1433 = vmatprep.mubr.bf16.mxu0 0
      %1434 = vmatmul.mubr.bf16.gmra.mxu0 %v1093
      %v1435 = vpop.f32.mrf.mxu0
      %v1436 = vadd.f32 0.0, %v1435
      %v1437 = vpop.f32.mrf.mxu0
      %v1438 = vpop.f32.mrf.mxu0
      %v1439 = vadd.f32 0.0, %v1438
      %v1440 = vpop.f32.mrf.mxu0
      %1441 = vmatprep.mubr.bf16.mxu0 0
      %1442 = vmatmul.mubr.bf16.gmra.mxu0 %v1096
      %v1443 = vpop.f32.mrf.mxu0
      %v1444 = vadd.f32 0.0, %v1443
      %v1445 = vpop.f32.mrf.mxu0
      %v1446 = vpop.f32.mrf.mxu0
      %v1447 = vadd.f32 0.0, %v1446
      %v1448 = vpop.f32.mrf.mxu0
      %1449 = vmatprep.mubr.bf16.mxu0 0
      %1450 = vmatmul.mubr.bf16.gmra.mxu0 %v1099
      %v1451 = vpop.f32.mrf.mxu0
      %v1452 = vadd.f32 0.0, %v1451
      %v1453 = vpop.f32.mrf.mxu0
      %v1454 = vpop.f32.mrf.mxu0
      %v1455 = vadd.f32 0.0, %v1454
      %v1456 = vpop.f32.mrf.mxu0
      %1457 = vmatprep.mubr.bf16.mxu0 0
      %1458 = vmatmul.mubr.bf16.gmra.mxu0 %v1102
      %v1459 = vpop.f32.mrf.mxu0
      %v1460 = vadd.f32 0.0, %v1459
      %v1461 = vpop.f32.mrf.mxu0
      %v1462 = vpop.f32.mrf.mxu0
      %v1463 = vadd.f32 0.0, %v1462
      %v1464 = vpop.f32.mrf.mxu0
      %1465 = vmatprep.mubr.bf16.mxu0 0
      %1466 = vmatmul.mubr.bf16.gmra.mxu0 %v1105
      %v1467 = vpop.f32.mrf.mxu0
      %v1468 = vadd.f32 0.0, %v1467
      %v1469 = vpop.f32.mrf.mxu0
      %v1470 = vpop.f32.mrf.mxu0
      %v1471 = vadd.f32 0.0, %v1470
      %v1472 = vpop.f32.mrf.mxu0
      %1473 = vmatprep.mubr.bf16.mxu0 0
      %1474 = vmatmul.mubr.bf16.gmra.mxu0 %v1108
      %v1475 = vpop.f32.mrf.mxu0
      %v1476 = vadd.f32 0.0, %v1475
      %v1477 = vpop.f32.mrf.mxu0
      %v1478 = vpop.f32.mrf.mxu0
      %v1479 = vadd.f32 0.0, %v1478
      %v1480 = vpop.f32.mrf.mxu0
      %1481 = vmatprep.mubr.bf16.mxu0 0
      %1482 = vmatmul.mubr.bf16.gmra.mxu0 %v1111
      %v1483 = vpop.f32.mrf.mxu0
      %v1484 = vadd.f32 0.0, %v1483
      %v1485 = vpop.f32.mrf.mxu0
      %v1486 = vpop.f32.mrf.mxu0
      %v1487 = vadd.f32 0.0, %v1486
      %v1488 = vpop.f32.mrf.mxu0
      %1489 = vmatprep.mubr.bf16.mxu0 0
      %1490 = vmatmul.mubr.bf16.gmra.mxu0 %v1114
      %v1491 = vpop.f32.mrf.mxu0
      %v1492 = vadd.f32 0.0, %v1491
      %v1493 = vpop.f32.mrf.mxu0
      %v1494 = vpop.f32.mrf.mxu0
      %v1495 = vadd.f32 0.0, %v1494
      %v1496 = vpop.f32.mrf.mxu0
      %1497 = vmatprep.mubr.bf16.mxu0 0
      %1498 = vmatmul.mubr.bf16.gmra.mxu0 %v1117
      %v1499 = vpop.f32.mrf.mxu0
      %v1500 = vadd.f32 0.0, %v1499
      %v1501 = vpop.f32.mrf.mxu0
      %v1502 = vpop.f32.mrf.mxu0
      %v1503 = vadd.f32 0.0, %v1502
      %v1504 = vpop.f32.mrf.mxu0
      %1505 = vmatprep.mubr.bf16.mxu0 0
      %1506 = vmatmul.mubr.bf16.gmra.mxu0 %v1120
      %v1507 = vpop.f32.mrf.mxu0
      %v1508 = vadd.f32 0.0, %v1507
      %v1509 = vpop.f32.mrf.mxu0
      %v1510 = vpop.f32.mrf.mxu0
      %v1511 = vadd.f32 0.0, %v1510
      %v1512 = vpop.f32.mrf.mxu0
      %1513 = vmatprep.mubr.bf16.mxu0 0
      %1514 = vmatmul.mubr.bf16.gmra.mxu0 %v1123
      %v1515 = vpop.f32.mrf.mxu0
      %v1516 = vadd.f32 0.0, %v1515
      %v1517 = vpop.f32.mrf.mxu0
      %v1518 = vpop.f32.mrf.mxu0
      %v1519 = vadd.f32 0.0, %v1518
      %v1520 = vpop.f32.mrf.mxu0
      %1521 = vmatprep.mubr.bf16.mxu0 0
      %1522 = vmatmul.mubr.bf16.gmra.mxu0 %v1126
      %v1523 = vpop.f32.mrf.mxu0
      %v1524 = vadd.f32 0.0, %v1523
      %v1525 = vpop.f32.mrf.mxu0
      %v1526 = vpop.f32.mrf.mxu0
      %v1527 = vadd.f32 0.0, %v1526
      %v1528 = vpop.f32.mrf.mxu0
      %1529 = vmatprep.mubr.bf16.mxu0 0
      %1530 = vmatmul.mubr.bf16.gmra.mxu0 %v1129
      %v1531 = vpop.f32.mrf.mxu0
      %v1532 = vadd.f32 0.0, %v1531
      %v1533 = vpop.f32.mrf.mxu0
      %v1534 = vpop.f32.mrf.mxu0
      %v1535 = vadd.f32 0.0, %v1534
      %v1536 = vpop.f32.mrf.mxu0
      %1537 = vmatprep.mubr.bf16.mxu0 0
      %1538 = vmatmul.mubr.bf16.gmra.mxu0 %v1132
      %v1539 = vpop.f32.mrf.mxu0
      %v1540 = vadd.f32 0.0, %v1539
      %v1541 = vpop.f32.mrf.mxu0
      %v1542 = vpop.f32.mrf.mxu0
      %v1543 = vadd.f32 0.0, %v1542
      %v1544 = vpop.f32.mrf.mxu0
      %1545 = vmatprep.mubr.bf16.mxu0 0
      %1546 = vmatmul.mubr.bf16.gmra.mxu0 %v1135
      %v1547 = vpop.f32.mrf.mxu0
      %v1548 = vadd.f32 0.0, %v1547
      %v1549 = vpop.f32.mrf.mxu0
      %v1550 = vpop.f32.mrf.mxu0
      %v1551 = vadd.f32 0.0, %v1550
      %v1552 = vpop.f32.mrf.mxu0
      %1553 = vmatprep.mubr.bf16.mxu0 0
      %1554 = vmatmul.mubr.bf16.gmra.mxu0 %v1138
      %v1555 = vpop.f32.mrf.mxu0
      %v1556 = vadd.f32 0.0, %v1555
      %v1557 = vpop.f32.mrf.mxu0
      %v1558 = vpop.f32.mrf.mxu0
      %v1559 = vadd.f32 0.0, %v1558
      %v1560 = vpop.f32.mrf.mxu0
      %1561 = vmatprep.mubr.bf16.mxu0 0
      %1562 = vmatmul.mubr.bf16.gmra.mxu0 %v1141
      %v1563 = vpop.f32.mrf.mxu0
      %v1564 = vadd.f32 0.0, %v1563
      %v1565 = vpop.f32.mrf.mxu0
      %v1566 = vpop.f32.mrf.mxu0
      %v1567 = vadd.f32 0.0, %v1566
      %v1568 = vpop.f32.mrf.mxu0
      %1569 = vmatprep.mubr.bf16.mxu0 0
      %1570 = vmatmul.mubr.bf16.gmra.mxu0 %v1144
      %v1571 = vpop.f32.mrf.mxu0
      %v1572 = vadd.f32 0.0, %v1571
      %v1573 = vpop.f32.mrf.mxu0
      %v1574 = vpop.f32.mrf.mxu0
      %v1575 = vadd.f32 0.0, %v1574
      %v1576 = vpop.f32.mrf.mxu0
      %1577 = vmatprep.mubr.bf16.mxu0 0
      %1578 = vmatmul.mubr.bf16.gmra.mxu0 %v1147
      %v1579 = vpop.f32.mrf.mxu0
      %v1580 = vadd.f32 0.0, %v1579
      %v1581 = vpop.f32.mrf.mxu0
      %v1582 = vpop.f32.mrf.mxu0
      %v1583 = vadd.f32 0.0, %v1582
      %v1584 = vpop.f32.mrf.mxu0
      %1585 = vmatprep.mubr.bf16.mxu0 0
      %1586 = vmatmul.mubr.bf16.gmra.mxu0 %v1150
      %v1587 = vpop.f32.mrf.mxu0
      %v1588 = vadd.f32 0.0, %v1587
      %v1589 = vpop.f32.mrf.mxu0
      %v1590 = vpop.f32.mrf.mxu0
      %v1591 = vadd.f32 0.0, %v1590
      %v1592 = vpop.f32.mrf.mxu0
      %1593 = vmatprep.mubr.bf16.mxu0 0
      %1594 = vmatmul.mubr.bf16.gmra.mxu0 %v1153
      %v1595 = vpop.f32.mrf.mxu0
      %v1596 = vadd.f32 0.0, %v1595
      %v1597 = vpop.f32.mrf.mxu0
      %v1598 = vpop.f32.mrf.mxu0
      %v1599 = vadd.f32 0.0, %v1598
      %v1600 = vpop.f32.mrf.mxu0
      %1601 = vmatprep.mubr.bf16.mxu0 0
      %1602 = vmatmul.mubr.bf16.gmra.mxu0 %v1156
      %v1603 = vpop.f32.mrf.mxu0
      %v1604 = vadd.f32 0.0, %v1603
      %v1605 = vpop.f32.mrf.mxu0
      %v1606 = vpop.f32.mrf.mxu0
      %v1607 = vadd.f32 0.0, %v1606
      %v1608 = vpop.f32.mrf.mxu0
      %1609 = vmatprep.mubr.bf16.mxu0 0
      %1610 = vmatmul.mubr.bf16.gmra.mxu0 %v1159
      %v1611 = vpop.f32.mrf.mxu0
      %v1612 = vadd.f32 0.0, %v1611
      %v1613 = vpop.f32.mrf.mxu0
      %v1614 = vpop.f32.mrf.mxu0
      %v1615 = vadd.f32 0.0, %v1614
      %v1616 = vpop.f32.mrf.mxu0
      %1617 = vmatprep.mubr.bf16.mxu0 0
      %1618 = vmatmul.mubr.bf16.gmra.mxu0 %v1162
      %v1619 = vpop.f32.mrf.mxu0
      %v1620 = vadd.f32 0.0, %v1619
      %v1621 = vpop.f32.mrf.mxu0
      %v1622 = vpop.f32.mrf.mxu0
      %v1623 = vadd.f32 0.0, %v1622
      %v1624 = vpop.f32.mrf.mxu0
      %1625 = vmatprep.mubr.bf16.mxu0 0
      %1626 = vmatmul.mubr.bf16.gmra.mxu0 %v1165
      %v1627 = vpop.f32.mrf.mxu0
      %v1628 = vadd.f32 0.0, %v1627
      %v1629 = vpop.f32.mrf.mxu0
      %v1630 = vpop.f32.mrf.mxu0
      %v1631 = vadd.f32 0.0, %v1630
      %v1632 = vpop.f32.mrf.mxu0
      %1633 = vmatprep.mubr.bf16.mxu0 0
      %1634 = vmatmul.mubr.bf16.gmra.mxu0 %v1168
      %v1635 = vpop.f32.mrf.mxu0
      %v1636 = vadd.f32 0.0, %v1635
      %v1637 = vpop.f32.mrf.mxu0
      %v1638 = vpop.f32.mrf.mxu0
      %v1639 = vadd.f32 0.0, %v1638
      %v1640 = vpop.f32.mrf.mxu0
      %1641 = vmatprep.mubr.bf16.mxu0 0
      %1642 = vmatmul.mubr.bf16.gmra.mxu0 %v1171
      %v1643 = vpop.f32.mrf.mxu0
      %v1644 = vadd.f32 0.0, %v1643
      %v1645 = vpop.f32.mrf.mxu0
      %v1646 = vpop.f32.mrf.mxu0
      %v1647 = vadd.f32 0.0, %v1646
      %v1648 = vpop.f32.mrf.mxu0
      %1649 = vmatprep.mubr.bf16.mxu0 0
      %1650 = vmatmul.mubr.bf16.gmra.mxu0 %v1174
      %v1651 = vpop.f32.mrf.mxu0
      %v1652 = vadd.f32 0.0, %v1651
      %v1653 = vpop.f32.mrf.mxu0
      %v1654 = vpop.f32.mrf.mxu0
      %v1655 = vadd.f32 0.0, %v1654
      %v1656 = vpop.f32.mrf.mxu0
      %1657 = vmatprep.mubr.bf16.mxu0 0
      %1658 = vmatmul.mubr.bf16.gmra.mxu0 %v1177
      %v1659 = vpop.f32.mrf.mxu0
      %v1660 = vadd.f32 0.0, %v1659
      %v1661 = vpop.f32.mrf.mxu0
      %v1662 = vpop.f32.mrf.mxu0
      %v1663 = vadd.f32 0.0, %v1662
      %v1664 = vpop.f32.mrf.mxu0
      %1665 = vmatprep.mubr.bf16.mxu0 0
      %1666 = vmatmul.mubr.bf16.gmra.mxu0 %v1180
      %v1667 = vpop.f32.mrf.mxu0
      %v1668 = vadd.f32 0.0, %v1667
      %v1669 = vpop.f32.mrf.mxu0
      %v1670 = vpop.f32.mrf.mxu0
      %v1671 = vadd.f32 0.0, %v1670
      %v1672 = vpop.f32.mrf.mxu0
      %1673 = vmatprep.mubr.bf16.mxu0 0
      %1674 = vmatmul.mubr.bf16.gmra.mxu0 %v1183
      %v1675 = vpop.f32.mrf.mxu0
      %v1676 = vadd.f32 0.0, %v1675
      %v1677 = vpop.f32.mrf.mxu0
      %v1678 = vpop.f32.mrf.mxu0
      %v1679 = vadd.f32 0.0, %v1678
      %v1680 = vpop.f32.mrf.mxu0
      %1681 = vmatprep.mubr.bf16.mxu0 0
      %1682 = vmatmul.mubr.bf16.gmra.mxu0 %v1186
      %v1683 = vpop.f32.mrf.mxu0
      %v1684 = vadd.f32 0.0, %v1683
      %v1685 = vpop.f32.mrf.mxu0
      %v1686 = vpop.f32.mrf.mxu0
      %v1687 = vadd.f32 0.0, %v1686
      %v1688 = vpop.f32.mrf.mxu0
      %1689 = vmatprep.mubr.bf16.mxu0 0
      %1690 = vmatmul.mubr.bf16.gmra.mxu0 %v1189
      %v1691 = vpop.f32.mrf.mxu0
      %v1692 = vadd.f32 0.0, %v1691
      %v1693 = vpop.f32.mrf.mxu0
      %v1694 = vpop.f32.mrf.mxu0
      %v1695 = vadd.f32 0.0, %v1694
      %v1696 = vpop.f32.mrf.mxu0
      %1697 = vmatprep.mubr.bf16.mxu0 0
      %1698 = vmatmul.mubr.bf16.gmra.mxu0 %v1192
      %v1699 = vpop.f32.mrf.mxu0
      %v1700 = vadd.f32 0.0, %v1699
      %v1701 = vpop.f32.mrf.mxu0
      %v1702 = vpop.f32.mrf.mxu0
      %v1703 = vadd.f32 0.0, %v1702
      %v1704 = vpop.f32.mrf.mxu0
      %1705 = vmatprep.mubr.bf16.mxu0 0
      %1706 = vmatmul.mubr.bf16.gmra.mxu0 %v1195
      %v1707 = vpop.f32.mrf.mxu0
      %v1708 = vadd.f32 0.0, %v1707
      %v1709 = vpop.f32.mrf.mxu0
      %v1710 = vpop.f32.mrf.mxu0
      %v1711 = vadd.f32 0.0, %v1710
      %v1712 = vpop.f32.mrf.mxu0
      %1713 = vmatprep.mubr.bf16.mxu0 0
      %1714 = vmatmul.mubr.bf16.gmra.mxu0 %v1198
      %v1715 = vpop.f32.mrf.mxu0
      %v1716 = vadd.f32 0.0, %v1715
      %v1717 = vpop.f32.mrf.mxu0
      %v1718 = vpop.f32.mrf.mxu0
      %v1719 = vadd.f32 0.0, %v1718
      %v1720 = vpop.f32.mrf.mxu0
      %1721 = vmatprep.mubr.bf16.mxu0 0
      %1722 = vmatmul.mubr.bf16.gmra.mxu0 %v1201
      %v1723 = vpop.f32.mrf.mxu0
      %v1724 = vadd.f32 0.0, %v1723
      %v1725 = vpop.f32.mrf.mxu0
      %v1726 = vpop.f32.mrf.mxu0
      %v1727 = vadd.f32 0.0, %v1726
      %v1728 = vpop.f32.mrf.mxu0
      %1729 = vmatprep.mubr.bf16.mxu0 0
      %1730 = vmatmul.mubr.bf16.gmra.mxu0 %v1204
      %v1731 = vpop.f32.mrf.mxu0
      %v1732 = vadd.f32 0.0, %v1731
      %v1733 = vpop.f32.mrf.mxu0
      %v1734 = vpop.f32.mrf.mxu0
      %v1735 = vadd.f32 0.0, %v1734
      %v1736 = vpop.f32.mrf.mxu0
      %1737 = vmatprep.mubr.bf16.mxu0 0
      %1738 = vmatmul.mubr.bf16.gmra.mxu0 %v1207
      %v1739 = vpop.f32.mrf.mxu0
      %v1740 = vadd.f32 0.0, %v1739
      %v1741 = vpop.f32.mrf.mxu0
      %v1742 = vpop.f32.mrf.mxu0
      %v1743 = vadd.f32 0.0, %v1742
      %v1744 = vpop.f32.mrf.mxu0
      %1745 = vmatprep.mubr.bf16.mxu0 0
      %1746 = vmatmul.mubr.bf16.gmra.mxu0 %v1210
      %v1747 = vpop.f32.mrf.mxu0
      %v1748 = vadd.f32 0.0, %v1747
      %v1749 = vpop.f32.mrf.mxu0
      %v1750 = vpop.f32.mrf.mxu0
      %v1751 = vadd.f32 0.0, %v1750
      %v1752 = vpop.f32.mrf.mxu0
      %1753 = vmatprep.mubr.bf16.mxu0 0
      %1754 = vmatmul.mubr.bf16.gmra.mxu0 %v1213
      %v1755 = vpop.f32.mrf.mxu0
      %v1756 = vadd.f32 0.0, %v1755
      %v1757 = vpop.f32.mrf.mxu0
      %v1758 = vpop.f32.mrf.mxu0
      %v1759 = vadd.f32 0.0, %v1758
      %v1760 = vpop.f32.mrf.mxu0
      %1761 = vmatprep.mubr.bf16.mxu0 0
      %1762 = vmatmul.mubr.bf16.gmra.mxu0 %v1216
      %v1763 = vpop.f32.mrf.mxu0
      %v1764 = vadd.f32 0.0, %v1763
      %v1765 = vpop.f32.mrf.mxu0
      %v1766 = vpop.f32.mrf.mxu0
      %v1767 = vadd.f32 0.0, %v1766
      %v1768 = vpop.f32.mrf.mxu0
      %1769 = vdwg.mxu0
      %v1770 = vadd.f32 %v434, %v1260
      %v1771 = vadd.f32 %v435, %v1263
      %v1772 = vadd.f32 %v436, %v1268
      %v1773 = vadd.f32 %v437, %v1271
      %v1774 = vadd.f32 %v438, %v1276
      %v1775 = vadd.f32 %v439, %v1279
      %v1776 = vadd.f32 %v440, %v1284
      %v1777 = vadd.f32 %v441, %v1287
      %v1778 = vadd.f32 %v442, %v1292
      %v1779 = vadd.f32 %v443, %v1295
      %v1780 = vadd.f32 %v444, %v1300
      %v1781 = vadd.f32 %v445, %v1303
      %v1782 = vadd.f32 %v446, %v1308
      %v1783 = vadd.f32 %v447, %v1311
      %v1784 = vadd.f32 %v448, %v1316
      %v1785 = vadd.f32 %v449, %v1319
      %v1786 = vadd.f32 %v450, %v1324
      %v1787 = vadd.f32 %v451, %v1327
      %v1788 = vadd.f32 %v452, %v1332
      %v1789 = vadd.f32 %v453, %v1335
      %v1790 = vadd.f32 %v454, %v1340
      %v1791 = vadd.f32 %v455, %v1343
      %v1792 = vadd.f32 %v456, %v1348
      %v1793 = vadd.f32 %v457, %v1351
      %v1794 = vadd.f32 %v458, %v1356
      %v1795 = vadd.f32 %v459, %v1359
      %v1796 = vadd.f32 %v460, %v1364
      %v1797 = vadd.f32 %v461, %v1367
      %v1798 = vadd.f32 %v462, %v1372
      %v1799 = vadd.f32 %v463, %v1375
      %v1800 = vadd.f32 %v464, %v1380
      %v1801 = vadd.f32 %v465, %v1383
      %v1802 = vadd.f32 %v466, %v1388
      %v1803 = vadd.f32 %v467, %v1391
      %v1804 = vadd.f32 %v468, %v1396
      %v1805 = vadd.f32 %v469, %v1399
      %v1806 = vadd.f32 %v470, %v1404
      %v1807 = vadd.f32 %v471, %v1407
      %v1808 = vadd.f32 %v472, %v1412
      %v1809 = vadd.f32 %v473, %v1415
      %v1810 = vadd.f32 %v474, %v1420
      %v1811 = vadd.f32 %v475, %v1423
      %v1812 = vadd.f32 %v476, %v1428
      %v1813 = vadd.f32 %v477, %v1431
      %v1814 = vadd.f32 %v478, %v1436
      %v1815 = vadd.f32 %v479, %v1439
      %v1816 = vadd.f32 %v480, %v1444
      %v1817 = vadd.f32 %v481, %v1447
      %v1818 = vadd.f32 %v482, %v1452
      %v1819 = vadd.f32 %v483, %v1455
      %v1820 = vadd.f32 %v484, %v1460
      %v1821 = vadd.f32 %v485, %v1463
      %v1822 = vadd.f32 %v486, %v1468
      %v1823 = vadd.f32 %v487, %v1471
      %v1824 = vadd.f32 %v488, %v1476
      %v1825 = vadd.f32 %v489, %v1479
      %v1826 = vadd.f32 %v490, %v1484
      %v1827 = vadd.f32 %v491, %v1487
      %v1828 = vadd.f32 %v492, %v1492
      %v1829 = vadd.f32 %v493, %v1495
      %v1830 = vadd.f32 %v494, %v1500
      %v1831 = vadd.f32 %v495, %v1503
      %v1832 = vadd.f32 %v496, %v1508
      %v1833 = vadd.f32 %v497, %v1511
      %v1834 = vadd.f32 %v498, %v1516
      %v1835 = vadd.f32 %v499, %v1519
      %v1836 = vadd.f32 %v500, %v1524
      %v1837 = vadd.f32 %v501, %v1527
      %v1838 = vadd.f32 %v502, %v1532
      %v1839 = vadd.f32 %v503, %v1535
      %v1840 = vadd.f32 %v504, %v1540
      %v1841 = vadd.f32 %v505, %v1543
      %v1842 = vadd.f32 %v506, %v1548
      %v1843 = vadd.f32 %v507, %v1551
      %v1844 = vadd.f32 %v508, %v1556
      %v1845 = vadd.f32 %v509, %v1559
      %v1846 = vadd.f32 %v510, %v1564
      %v1847 = vadd.f32 %v511, %v1567
      %v1848 = vadd.f32 %v512, %v1572
      %v1849 = vadd.f32 %v513, %v1575
      %v1850 = vadd.f32 %v514, %v1580
      %v1851 = vadd.f32 %v515, %v1583
      %v1852 = vadd.f32 %v516, %v1588
      %v1853 = vadd.f32 %v517, %v1591
      %v1854 = vadd.f32 %v518, %v1596
      %v1855 = vadd.f32 %v519, %v1599
      %v1856 = vadd.f32 %v520, %v1604
      %v1857 = vadd.f32 %v521, %v1607
      %v1858 = vadd.f32 %v522, %v1612
      %v1859 = vadd.f32 %v523, %v1615
      %v1860 = vadd.f32 %v524, %v1620
      %v1861 = vadd.f32 %v525, %v1623
      %v1862 = vadd.f32 %v526, %v1628
      %v1863 = vadd.f32 %v527, %v1631
      %v1864 = vadd.f32 %v528, %v1636
      %v1865 = vadd.f32 %v529, %v1639
      %v1866 = vadd.f32 %v530, %v1644
      %v1867 = vadd.f32 %v531, %v1647
      %v1868 = vadd.f32 %v532, %v1652
      %v1869 = vadd.f32 %v533, %v1655
      %v1870 = vadd.f32 %v534, %v1660
      %v1871 = vadd.f32 %v535, %v1663
      %v1872 = vadd.f32 %v536, %v1668
      %v1873 = vadd.f32 %v537, %v1671
      %v1874 = vadd.f32 %v538, %v1676
      %v1875 = vadd.f32 %v539, %v1679
      %v1876 = vadd.f32 %v540, %v1684
      %v1877 = vadd.f32 %v541, %v1687
      %v1878 = vadd.f32 %v542, %v1692
      %v1879 = vadd.f32 %v543, %v1695
      %v1880 = vadd.f32 %v544, %v1700
      %v1881 = vadd.f32 %v545, %v1703
      %v1882 = vadd.f32 %v546, %v1708
      %v1883 = vadd.f32 %v547, %v1711
      %v1884 = vadd.f32 %v548, %v1716
      %v1885 = vadd.f32 %v549, %v1719
      %v1886 = vadd.f32 %v550, %v1724
      %v1887 = vadd.f32 %v551, %v1727
      %v1888 = vadd.f32 %v552, %v1732
      %v1889 = vadd.f32 %v553, %v1735
      %v1890 = vadd.f32 %v554, %v1740
      %v1891 = vadd.f32 %v555, %v1743
      %v1892 = vadd.f32 %v556, %v1748
      %v1893 = vadd.f32 %v557, %v1751
      %v1894 = vadd.f32 %v558, %v1756
      %v1895 = vadd.f32 %v559, %v1759
      %v1896 = vadd.f32 %v560, %v1764
      %v1897 = vadd.f32 %v561, %v1767
      %vm1898 = vcmask 23552
      %1899 = vst.msk [vmem:[#allocation2] sm:$0xff] %vm1898, %v1770
      %1900 = vst.msk [vmem:[#allocation2 + $0x8] sm:$0xff] %vm1898, %v1771
      %1901 = vst.msk [vmem:[#allocation2 + $0x10] sm:$0xff] %vm1898, %v1772
      %1902 = vst.msk [vmem:[#allocation2 + $0x18] sm:$0xff] %vm1898, %v1773
      %1903 = vst.msk [vmem:[#allocation2 + $0x20] sm:$0xff] %vm1898, %v1774
      %1904 = vst.msk [vmem:[#allocation2 + $0x28] sm:$0xff] %vm1898, %v1775
      %1905 = vst.msk [vmem:[#allocation2 + $0x30] sm:$0xff] %vm1898, %v1776
      %1906 = vst.msk [vmem:[#allocation2 + $0x38] sm:$0xff] %vm1898, %v1777
      %1907 = vst.msk [vmem:[#allocation2 + $0x40] sm:$0xff] %vm1898, %v1778
      %1908 = vst.msk [vmem:[#allocation2 + $0x48] sm:$0xff] %vm1898, %v1779
      %1909 = vst.msk [vmem:[#allocation2 + $0x50] sm:$0xff] %vm1898, %v1780
      %1910 = vst.msk [vmem:[#allocation2 + $0x58] sm:$0xff] %vm1898, %v1781
      %1911 = vst.msk [vmem:[#allocation2 + $0x60] sm:$0xff] %vm1898, %v1782
      %1912 = vst.msk [vmem:[#allocation2 + $0x68] sm:$0xff] %vm1898, %v1783
      %1913 = vst.msk [vmem:[#allocation2 + $0x70] sm:$0xff] %vm1898, %v1784
      %1914 = vst.msk [vmem:[#allocation2 + $0x78] sm:$0xff] %vm1898, %v1785
      %1915 = vst.msk [vmem:[#allocation2 + $0x80] sm:$0xff] %vm1898, %v1786
      %1916 = vst.msk [vmem:[#allocation2 + $0x88] sm:$0xff] %vm1898, %v1787
      %1917 = vst.msk [vmem:[#allocation2 + $0x90] sm:$0xff] %vm1898, %v1788
      %1918 = vst.msk [vmem:[#allocation2 + $0x98] sm:$0xff] %vm1898, %v1789
      %1919 = vst.msk [vmem:[#allocation2 + $0xa0] sm:$0xff] %vm1898, %v1790
      %1920 = vst.msk [vmem:[#allocation2 + $0xa8] sm:$0xff] %vm1898, %v1791
      %1921 = vst.msk [vmem:[#allocation2 + $0xb0] sm:$0xff] %vm1898, %v1792
      %1922 = vst.msk [vmem:[#allocation2 + $0xb8] sm:$0xff] %vm1898, %v1793
      %1923 = vst.msk [vmem:[#allocation2 + $0xc0] sm:$0xff] %vm1898, %v1794
      %1924 = vst.msk [vmem:[#allocation2 + $0xc8] sm:$0xff] %vm1898, %v1795
      %1925 = vst.msk [vmem:[#allocation2 + $0xd0] sm:$0xff] %vm1898, %v1796
      %1926 = vst.msk [vmem:[#allocation2 + $0xd8] sm:$0xff] %vm1898, %v1797
      %1927 = vst.msk [vmem:[#allocation2 + $0xe0] sm:$0xff] %vm1898, %v1798
      %1928 = vst.msk [vmem:[#allocation2 + $0xe8] sm:$0xff] %vm1898, %v1799
      %1929 = vst.msk [vmem:[#allocation2 + $0xf0] sm:$0xff] %vm1898, %v1800
      %1930 = vst.msk [vmem:[#allocation2 + $0xf8] sm:$0xff] %vm1898, %v1801
      %1931 = vst.msk [vmem:[#allocation2 + $0x100] sm:$0xff] %vm1898, %v1802
      %1932 = vst.msk [vmem:[#allocation2 + $0x108] sm:$0xff] %vm1898, %v1803
      %1933 = vst.msk [vmem:[#allocation2 + $0x110] sm:$0xff] %vm1898, %v1804
      %1934 = vst.msk [vmem:[#allocation2 + $0x118] sm:$0xff] %vm1898, %v1805
      %1935 = vst.msk [vmem:[#allocation2 + $0x120] sm:$0xff] %vm1898, %v1806
      %1936 = vst.msk [vmem:[#allocation2 + $0x128] sm:$0xff] %vm1898, %v1807
      %1937 = vst.msk [vmem:[#allocation2 + $0x130] sm:$0xff] %vm1898, %v1808
      %1938 = vst.msk [vmem:[#allocation2 + $0x138] sm:$0xff] %vm1898, %v1809
      %1939 = vst.msk [vmem:[#allocation2 + $0x140] sm:$0xff] %vm1898, %v1810
      %1940 = vst.msk [vmem:[#allocation2 + $0x148] sm:$0xff] %vm1898, %v1811
      %1941 = vst.msk [vmem:[#allocation2 + $0x150] sm:$0xff] %vm1898, %v1812
      %1942 = vst.msk [vmem:[#allocation2 + $0x158] sm:$0xff] %vm1898, %v1813
      %1943 = vst.msk [vmem:[#allocation2 + $0x160] sm:$0xff] %vm1898, %v1814
      %1944 = vst.msk [vmem:[#allocation2 + $0x168] sm:$0xff] %vm1898, %v1815
      %1945 = vst.msk [vmem:[#allocation2 + $0x170] sm:$0xff] %vm1898, %v1816
      %1946 = vst.msk [vmem:[#allocation2 + $0x178] sm:$0xff] %vm1898, %v1817
      %1947 = vst.msk [vmem:[#allocation2 + $0x180] sm:$0xff] %vm1898, %v1818
      %1948 = vst.msk [vmem:[#allocation2 + $0x188] sm:$0xff] %vm1898, %v1819
      %1949 = vst.msk [vmem:[#allocation2 + $0x190] sm:$0xff] %vm1898, %v1820
      %1950 = vst.msk [vmem:[#allocation2 + $0x198] sm:$0xff] %vm1898, %v1821
      %1951 = vst.msk [vmem:[#allocation2 + $0x1a0] sm:$0xff] %vm1898, %v1822
      %1952 = vst.msk [vmem:[#allocation2 + $0x1a8] sm:$0xff] %vm1898, %v1823
      %1953 = vst.msk [vmem:[#allocation2 + $0x1b0] sm:$0xff] %vm1898, %v1824
      %1954 = vst.msk [vmem:[#allocation2 + $0x1b8] sm:$0xff] %vm1898, %v1825
      %1955 = vst.msk [vmem:[#allocation2 + $0x1c0] sm:$0xff] %vm1898, %v1826
      %1956 = vst.msk [vmem:[#allocation2 + $0x1c8] sm:$0xff] %vm1898, %v1827
      %1957 = vst.msk [vmem:[#allocation2 + $0x1d0] sm:$0xff] %vm1898, %v1828
      %1958 = vst.msk [vmem:[#allocation2 + $0x1d8] sm:$0xff] %vm1898, %v1829
      %1959 = vst.msk [vmem:[#allocation2 + $0x1e0] sm:$0xff] %vm1898, %v1830
      %1960 = vst.msk [vmem:[#allocation2 + $0x1e8] sm:$0xff] %vm1898, %v1831
      %1961 = vst.msk [vmem:[#allocation2 + $0x1f0] sm:$0xff] %vm1898, %v1832
      %1962 = vst.msk [vmem:[#allocation2 + $0x1f8] sm:$0xff] %vm1898, %v1833
      %1963 = vst.msk [vmem:[#allocation2 + $0x200] sm:$0xff] %vm1898, %v1834
      %1964 = vst.msk [vmem:[#allocation2 + $0x208] sm:$0xff] %vm1898, %v1835
      %1965 = vst.msk [vmem:[#allocation2 + $0x210] sm:$0xff] %vm1898, %v1836
      %1966 = vst.msk [vmem:[#allocation2 + $0x218] sm:$0xff] %vm1898, %v1837
      %1967 = vst.msk [vmem:[#allocation2 + $0x220] sm:$0xff] %vm1898, %v1838
      %1968 = vst.msk [vmem:[#allocation2 + $0x228] sm:$0xff] %vm1898, %v1839
      %1969 = vst.msk [vmem:[#allocation2 + $0x230] sm:$0xff] %vm1898, %v1840
      %1970 = vst.msk [vmem:[#allocation2 + $0x238] sm:$0xff] %vm1898, %v1841
      %1971 = vst.msk [vmem:[#allocation2 + $0x240] sm:$0xff] %vm1898, %v1842
      %1972 = vst.msk [vmem:[#allocation2 + $0x248] sm:$0xff] %vm1898, %v1843
      %1973 = vst.msk [vmem:[#allocation2 + $0x250] sm:$0xff] %vm1898, %v1844
      %1974 = vst.msk [vmem:[#allocation2 + $0x258] sm:$0xff] %vm1898, %v1845
      %1975 = vst.msk [vmem:[#allocation2 + $0x260] sm:$0xff] %vm1898, %v1846
      %1976 = vst.msk [vmem:[#allocation2 + $0x268] sm:$0xff] %vm1898, %v1847
      %1977 = vst.msk [vmem:[#allocation2 + $0x270] sm:$0xff] %vm1898, %v1848
      %1978 = vst.msk [vmem:[#allocation2 + $0x278] sm:$0xff] %vm1898, %v1849
      %1979 = vst.msk [vmem:[#allocation2 + $0x280] sm:$0xff] %vm1898, %v1850
      %1980 = vst.msk [vmem:[#allocation2 + $0x288] sm:$0xff] %vm1898, %v1851
      %1981 = vst.msk [vmem:[#allocation2 + $0x290] sm:$0xff] %vm1898, %v1852
      %1982 = vst.msk [vmem:[#allocation2 + $0x298] sm:$0xff] %vm1898, %v1853
      %1983 = vst.msk [vmem:[#allocation2 + $0x2a0] sm:$0xff] %vm1898, %v1854
      %1984 = vst.msk [vmem:[#allocation2 + $0x2a8] sm:$0xff] %vm1898, %v1855
      %1985 = vst.msk [vmem:[#allocation2 + $0x2b0] sm:$0xff] %vm1898, %v1856
      %1986 = vst.msk [vmem:[#allocation2 + $0x2b8] sm:$0xff] %vm1898, %v1857
      %1987 = vst.msk [vmem:[#allocation2 + $0x2c0] sm:$0xff] %vm1898, %v1858
      %1988 = vst.msk [vmem:[#allocation2 + $0x2c8] sm:$0xff] %vm1898, %v1859
      %1989 = vst.msk [vmem:[#allocation2 + $0x2d0] sm:$0xff] %vm1898, %v1860
      %1990 = vst.msk [vmem:[#allocation2 + $0x2d8] sm:$0xff] %vm1898, %v1861
      %1991 = vst.msk [vmem:[#allocation2 + $0x2e0] sm:$0xff] %vm1898, %v1862
      %1992 = vst.msk [vmem:[#allocation2 + $0x2e8] sm:$0xff] %vm1898, %v1863
      %1993 = vst.msk [vmem:[#allocation2 + $0x2f0] sm:$0xff] %vm1898, %v1864
      %1994 = vst.msk [vmem:[#allocation2 + $0x2f8] sm:$0xff] %vm1898, %v1865
      %1995 = vst.msk [vmem:[#allocation2 + $0x300] sm:$0xff] %vm1898, %v1866
      %1996 = vst.msk [vmem:[#allocation2 + $0x308] sm:$0xff] %vm1898, %v1867
      %1997 = vst.msk [vmem:[#allocation2 + $0x310] sm:$0xff] %vm1898, %v1868
      %1998 = vst.msk [vmem:[#allocation2 + $0x318] sm:$0xff] %vm1898, %v1869
      %1999 = vst.msk [vmem:[#allocation2 + $0x320] sm:$0xff] %vm1898, %v1870
      %2000 = vst.msk [vmem:[#allocation2 + $0x328] sm:$0xff] %vm1898, %v1871
      %2001 = vst.msk [vmem:[#allocation2 + $0x330] sm:$0xff] %vm1898, %v1872
      %2002 = vst.msk [vmem:[#allocation2 + $0x338] sm:$0xff] %vm1898, %v1873
      %2003 = vst.msk [vmem:[#allocation2 + $0x340] sm:$0xff] %vm1898, %v1874
      %2004 = vst.msk [vmem:[#allocation2 + $0x348] sm:$0xff] %vm1898, %v1875
      %2005 = vst.msk [vmem:[#allocation2 + $0x350] sm:$0xff] %vm1898, %v1876
      %2006 = vst.msk [vmem:[#allocation2 + $0x358] sm:$0xff] %vm1898, %v1877
      %2007 = vst.msk [vmem:[#allocation2 + $0x360] sm:$0xff] %vm1898, %v1878
      %2008 = vst.msk [vmem:[#allocation2 + $0x368] sm:$0xff] %vm1898, %v1879
      %2009 = vst.msk [vmem:[#allocation2 + $0x370] sm:$0xff] %vm1898, %v1880
      %2010 = vst.msk [vmem:[#allocation2 + $0x378] sm:$0xff] %vm1898, %v1881
      %2011 = vst.msk [vmem:[#allocation2 + $0x380] sm:$0xff] %vm1898, %v1882
      %2012 = vst.msk [vmem:[#allocation2 + $0x388] sm:$0xff] %vm1898, %v1883
      %2013 = vst.msk [vmem:[#allocation2 + $0x390] sm:$0xff] %vm1898, %v1884
      %2014 = vst.msk [vmem:[#allocation2 + $0x398] sm:$0xff] %vm1898, %v1885
      %2015 = vst.msk [vmem:[#allocation2 + $0x3a0] sm:$0xff] %vm1898, %v1886
      %2016 = vst.msk [vmem:[#allocation2 + $0x3a8] sm:$0xff] %vm1898, %v1887
      %2017 = vst.msk [vmem:[#allocation2 + $0x3b0] sm:$0xff] %vm1898, %v1888
      %2018 = vst.msk [vmem:[#allocation2 + $0x3b8] sm:$0xff] %vm1898, %v1889
      %2019 = vst.msk [vmem:[#allocation2 + $0x3c0] sm:$0xff] %vm1898, %v1890
      %2020 = vst.msk [vmem:[#allocation2 + $0x3c8] sm:$0xff] %vm1898, %v1891
      %2021 = vst.msk [vmem:[#allocation2 + $0x3d0] sm:$0xff] %vm1898, %v1892
      %2022 = vst.msk [vmem:[#allocation2 + $0x3d8] sm:$0xff] %vm1898, %v1893
      %2023 = vst.msk [vmem:[#allocation2 + $0x3e0] sm:$0xff] %vm1898, %v1894
      %2024 = vst.msk [vmem:[#allocation2 + $0x3e8] sm:$0xff] %vm1898, %v1895
      %2025 = vst.msk [vmem:[#allocation2 + $0x3f0] sm:$0xff] %vm1898, %v1896
      %2026 = vst.msk [vmem:[#allocation2 + $0x3f8] sm:$0xff] %vm1898, %v1897
      // Predicated region
      $region41: #{_fused_matmul_call.1} parent=35 // pred_check
        %p2027 = pneg %p301
      $region42: #{_fused_matmul_call.1} parent=35 // pred_check_branch
        %2029 = sbr.rel (%p2027) target = $region44
      $region43: #{_fused_matmul_call.1} parent=35 // pred_region
        %v2030 = vld [vmem:[#allocation2] sm:$0xff]
        %v2031 = vld [vmem:[#allocation2 + $0x8] sm:$0xff]
        %v2032 = vld [vmem:[#allocation2 + $0x10] sm:$0xff]
        %v2033 = vld [vmem:[#allocation2 + $0x18] sm:$0xff]
        %v2034 = vld [vmem:[#allocation2 + $0x20] sm:$0xff]
        %v2035 = vld [vmem:[#allocation2 + $0x28] sm:$0xff]
        %v2036 = vld [vmem:[#allocation2 + $0x30] sm:$0xff]
        %v2037 = vld [vmem:[#allocation2 + $0x38] sm:$0xff]
        %v2038 = vld [vmem:[#allocation2 + $0x40] sm:$0xff]
        %v2039 = vld [vmem:[#allocation2 + $0x48] sm:$0xff]
        %v2040 = vld [vmem:[#allocation2 + $0x50] sm:$0xff]
        %v2041 = vld [vmem:[#allocation2 + $0x58] sm:$0xff]
        %v2042 = vld [vmem:[#allocation2 + $0x60] sm:$0xff]
        %v2043 = vld [vmem:[#allocation2 + $0x68] sm:$0xff]
        %v2044 = vld [vmem:[#allocation2 + $0x70] sm:$0xff]
        %v2045 = vld [vmem:[#allocation2 + $0x78] sm:$0xff]
        %v2046 = vld [vmem:[#allocation2 + $0x80] sm:$0xff]
        %v2047 = vld [vmem:[#allocation2 + $0x88] sm:$0xff]
        %v2048 = vld [vmem:[#allocation2 + $0x90] sm:$0xff]
        %v2049 = vld [vmem:[#allocation2 + $0x98] sm:$0xff]
        %v2050 = vld [vmem:[#allocation2 + $0xa0] sm:$0xff]
        %v2051 = vld [vmem:[#allocation2 + $0xa8] sm:$0xff]
        %v2052 = vld [vmem:[#allocation2 + $0xb0] sm:$0xff]
        %v2053 = vld [vmem:[#allocation2 + $0xb8] sm:$0xff]
        %v2054 = vld [vmem:[#allocation2 + $0xc0] sm:$0xff]
        %v2055 = vld [vmem:[#allocation2 + $0xc8] sm:$0xff]
        %v2056 = vld [vmem:[#allocation2 + $0xd0] sm:$0xff]
        %v2057 = vld [vmem:[#allocation2 + $0xd8] sm:$0xff]
        %v2058 = vld [vmem:[#allocation2 + $0xe0] sm:$0xff]
        %v2059 = vld [vmem:[#allocation2 + $0xe8] sm:$0xff]
        %v2060 = vld [vmem:[#allocation2 + $0xf0] sm:$0xff]
        %v2061 = vld [vmem:[#allocation2 + $0xf8] sm:$0xff]
        %v2062 = vld [vmem:[#allocation2 + $0x100] sm:$0xff]
        %v2063 = vld [vmem:[#allocation2 + $0x108] sm:$0xff]
        %v2064 = vld [vmem:[#allocation2 + $0x110] sm:$0xff]
        %v2065 = vld [vmem:[#allocation2 + $0x118] sm:$0xff]
        %v2066 = vld [vmem:[#allocation2 + $0x120] sm:$0xff]
        %v2067 = vld [vmem:[#allocation2 + $0x128] sm:$0xff]
        %v2068 = vld [vmem:[#allocation2 + $0x130] sm:$0xff]
        %v2069 = vld [vmem:[#allocation2 + $0x138] sm:$0xff]
        %v2070 = vld [vmem:[#allocation2 + $0x140] sm:$0xff]
        %v2071 = vld [vmem:[#allocation2 + $0x148] sm:$0xff]
        %v2072 = vld [vmem:[#allocation2 + $0x150] sm:$0xff]
        %v2073 = vld [vmem:[#allocation2 + $0x158] sm:$0xff]
        %v2074 = vld [vmem:[#allocation2 + $0x160] sm:$0xff]
        %v2075 = vld [vmem:[#allocation2 + $0x168] sm:$0xff]
        %v2076 = vld [vmem:[#allocation2 + $0x170] sm:$0xff]
        %v2077 = vld [vmem:[#allocation2 + $0x178] sm:$0xff]
        %v2078 = vld [vmem:[#allocation2 + $0x180] sm:$0xff]
        %v2079 = vld [vmem:[#allocation2 + $0x188] sm:$0xff]
        %v2080 = vld [vmem:[#allocation2 + $0x190] sm:$0xff]
        %v2081 = vld [vmem:[#allocation2 + $0x198] sm:$0xff]
        %v2082 = vld [vmem:[#allocation2 + $0x1a0] sm:$0xff]
        %v2083 = vld [vmem:[#allocation2 + $0x1a8] sm:$0xff]
        %v2084 = vld [vmem:[#allocation2 + $0x1b0] sm:$0xff]
        %v2085 = vld [vmem:[#allocation2 + $0x1b8] sm:$0xff]
        %v2086 = vld [vmem:[#allocation2 + $0x1c0] sm:$0xff]
        %v2087 = vld [vmem:[#allocation2 + $0x1c8] sm:$0xff]
        %v2088 = vld [vmem:[#allocation2 + $0x1d0] sm:$0xff]
        %v2089 = vld [vmem:[#allocation2 + $0x1d8] sm:$0xff]
        %v2090 = vld [vmem:[#allocation2 + $0x1e0] sm:$0xff]
        %v2091 = vld [vmem:[#allocation2 + $0x1e8] sm:$0xff]
        %v2092 = vld [vmem:[#allocation2 + $0x1f0] sm:$0xff]
        %v2093 = vld [vmem:[#allocation2 + $0x1f8] sm:$0xff]
        %v2094 = vld [vmem:[#allocation2 + $0x200] sm:$0xff]
        %v2095 = vld [vmem:[#allocation2 + $0x208] sm:$0xff]
        %v2096 = vld [vmem:[#allocation2 + $0x210] sm:$0xff]
        %v2097 = vld [vmem:[#allocation2 + $0x218] sm:$0xff]
        %v2098 = vld [vmem:[#allocation2 + $0x220] sm:$0xff]
        %v2099 = vld [vmem:[#allocation2 + $0x228] sm:$0xff]
        %v2100 = vld [vmem:[#allocation2 + $0x230] sm:$0xff]
        %v2101 = vld [vmem:[#allocation2 + $0x238] sm:$0xff]
        %v2102 = vld [vmem:[#allocation2 + $0x240] sm:$0xff]
        %v2103 = vld [vmem:[#allocation2 + $0x248] sm:$0xff]
        %v2104 = vld [vmem:[#allocation2 + $0x250] sm:$0xff]
        %v2105 = vld [vmem:[#allocation2 + $0x258] sm:$0xff]
        %v2106 = vld [vmem:[#allocation2 + $0x260] sm:$0xff]
        %v2107 = vld [vmem:[#allocation2 + $0x268] sm:$0xff]
        %v2108 = vld [vmem:[#allocation2 + $0x270] sm:$0xff]
        %v2109 = vld [vmem:[#allocation2 + $0x278] sm:$0xff]
        %v2110 = vld [vmem:[#allocation2 + $0x280] sm:$0xff]
        %v2111 = vld [vmem:[#allocation2 + $0x288] sm:$0xff]
        %v2112 = vld [vmem:[#allocation2 + $0x290] sm:$0xff]
        %v2113 = vld [vmem:[#allocation2 + $0x298] sm:$0xff]
        %v2114 = vld [vmem:[#allocation2 + $0x2a0] sm:$0xff]
        %v2115 = vld [vmem:[#allocation2 + $0x2a8] sm:$0xff]
        %v2116 = vld [vmem:[#allocation2 + $0x2b0] sm:$0xff]
        %v2117 = vld [vmem:[#allocation2 + $0x2b8] sm:$0xff]
        %v2118 = vld [vmem:[#allocation2 + $0x2c0] sm:$0xff]
        %v2119 = vld [vmem:[#allocation2 + $0x2c8] sm:$0xff]
        %v2120 = vld [vmem:[#allocation2 + $0x2d0] sm:$0xff]
        %v2121 = vld [vmem:[#allocation2 + $0x2d8] sm:$0xff]
        %v2122 = vld [vmem:[#allocation2 + $0x2e0] sm:$0xff]
        %v2123 = vld [vmem:[#allocation2 + $0x2e8] sm:$0xff]
        %v2124 = vld [vmem:[#allocation2 + $0x2f0] sm:$0xff]
        %v2125 = vld [vmem:[#allocation2 + $0x2f8] sm:$0xff]
        %v2126 = vld [vmem:[#allocation2 + $0x300] sm:$0xff]
        %v2127 = vld [vmem:[#allocation2 + $0x308] sm:$0xff]
        %v2128 = vld [vmem:[#allocation2 + $0x310] sm:$0xff]
        %v2129 = vld [vmem:[#allocation2 + $0x318] sm:$0xff]
        %v2130 = vld [vmem:[#allocation2 + $0x320] sm:$0xff]
        %v2131 = vld [vmem:[#allocation2 + $0x328] sm:$0xff]
        %v2132 = vld [vmem:[#allocation2 + $0x330] sm:$0xff]
        %v2133 = vld [vmem:[#allocation2 + $0x338] sm:$0xff]
        %v2134 = vld [vmem:[#allocation2 + $0x340] sm:$0xff]
        %v2135 = vld [vmem:[#allocation2 + $0x348] sm:$0xff]
        %v2136 = vld [vmem:[#allocation2 + $0x350] sm:$0xff]
        %v2137 = vld [vmem:[#allocation2 + $0x358] sm:$0xff]
        %v2138 = vld [vmem:[#allocation2 + $0x360] sm:$0xff]
        %v2139 = vld [vmem:[#allocation2 + $0x368] sm:$0xff]
        %v2140 = vld [vmem:[#allocation2 + $0x370] sm:$0xff]
        %v2141 = vld [vmem:[#allocation2 + $0x378] sm:$0xff]
        %v2142 = vld [vmem:[#allocation2 + $0x380] sm:$0xff]
        %v2143 = vld [vmem:[#allocation2 + $0x388] sm:$0xff]
        %v2144 = vld [vmem:[#allocation2 + $0x390] sm:$0xff]
        %v2145 = vld [vmem:[#allocation2 + $0x398] sm:$0xff]
        %v2146 = vld [vmem:[#allocation2 + $0x3a0] sm:$0xff]
        %v2147 = vld [vmem:[#allocation2 + $0x3a8] sm:$0xff]
        %v2148 = vld [vmem:[#allocation2 + $0x3b0] sm:$0xff]
        %v2149 = vld [vmem:[#allocation2 + $0x3b8] sm:$0xff]
        %v2150 = vld [vmem:[#allocation2 + $0x3c0] sm:$0xff]
        %v2151 = vld [vmem:[#allocation2 + $0x3c8] sm:$0xff]
        %v2152 = vld [vmem:[#allocation2 + $0x3d0] sm:$0xff]
        %v2153 = vld [vmem:[#allocation2 + $0x3d8] sm:$0xff]
        %v2154 = vld [vmem:[#allocation2 + $0x3e0] sm:$0xff]
        %v2155 = vld [vmem:[#allocation2 + $0x3e8] sm:$0xff]
        %v2156 = vld [vmem:[#allocation2 + $0x3f0] sm:$0xff]
        %v2157 = vld [vmem:[#allocation2 + $0x3f8] sm:$0xff]
        %v2158 = vld [vmem:[%s287] sm:$0x1]
        %v2160 = vlaneseq
        %v2161 = vshrl.u32 %v2160, 7
        %v2162 = vsub.s32 0, %v2161
        %v2163 = vrot.slane %v2158, %v2162
        %v2165 = vmul.f32 %v2030, %v2163
        %v2166 = vmul.f32 %v2031, %v2163
        %v2167 = vmul.f32 %v2032, %v2163
        %v2168 = vmul.f32 %v2033, %v2163
        %v2169 = vmul.f32 %v2034, %v2163
        %v2170 = vmul.f32 %v2035, %v2163
        %v2171 = vmul.f32 %v2036, %v2163
        %v2172 = vmul.f32 %v2037, %v2163
        %v2173 = vmul.f32 %v2038, %v2163
        %v2174 = vmul.f32 %v2039, %v2163
        %v2175 = vmul.f32 %v2040, %v2163
        %v2176 = vmul.f32 %v2041, %v2163
        %v2177 = vmul.f32 %v2042, %v2163
        %v2178 = vmul.f32 %v2043, %v2163
        %v2179 = vmul.f32 %v2044, %v2163
        %v2180 = vmul.f32 %v2045, %v2163
        %v2181 = vmul.f32 %v2046, %v2163
        %v2182 = vmul.f32 %v2047, %v2163
        %v2183 = vmul.f32 %v2048, %v2163
        %v2184 = vmul.f32 %v2049, %v2163
        %v2185 = vmul.f32 %v2050, %v2163
        %v2186 = vmul.f32 %v2051, %v2163
        %v2187 = vmul.f32 %v2052, %v2163
        %v2188 = vmul.f32 %v2053, %v2163
        %v2189 = vmul.f32 %v2054, %v2163
        %v2190 = vmul.f32 %v2055, %v2163
        %v2191 = vmul.f32 %v2056, %v2163
        %v2192 = vmul.f32 %v2057, %v2163
        %v2193 = vmul.f32 %v2058, %v2163
        %v2194 = vmul.f32 %v2059, %v2163
        %v2195 = vmul.f32 %v2060, %v2163
        %v2196 = vmul.f32 %v2061, %v2163
        %v2197 = vmul.f32 %v2062, %v2163
        %v2198 = vmul.f32 %v2063, %v2163
        %v2199 = vmul.f32 %v2064, %v2163
        %v2200 = vmul.f32 %v2065, %v2163
        %v2201 = vmul.f32 %v2066, %v2163
        %v2202 = vmul.f32 %v2067, %v2163
        %v2203 = vmul.f32 %v2068, %v2163
        %v2204 = vmul.f32 %v2069, %v2163
        %v2205 = vmul.f32 %v2070, %v2163
        %v2206 = vmul.f32 %v2071, %v2163
        %v2207 = vmul.f32 %v2072, %v2163
        %v2208 = vmul.f32 %v2073, %v2163
        %v2209 = vmul.f32 %v2074, %v2163
        %v2210 = vmul.f32 %v2075, %v2163
        %v2211 = vmul.f32 %v2076, %v2163
        %v2212 = vmul.f32 %v2077, %v2163
        %v2213 = vmul.f32 %v2078, %v2163
        %v2214 = vmul.f32 %v2079, %v2163
        %v2215 = vmul.f32 %v2080, %v2163
        %v2216 = vmul.f32 %v2081, %v2163
        %v2217 = vmul.f32 %v2082, %v2163
        %v2218 = vmul.f32 %v2083, %v2163
        %v2219 = vmul.f32 %v2084, %v2163
        %v2220 = vmul.f32 %v2085, %v2163
        %v2221 = vmul.f32 %v2086, %v2163
        %v2222 = vmul.f32 %v2087, %v2163
        %v2223 = vmul.f32 %v2088, %v2163
        %v2224 = vmul.f32 %v2089, %v2163
        %v2225 = vmul.f32 %v2090, %v2163
        %v2226 = vmul.f32 %v2091, %v2163
        %v2227 = vmul.f32 %v2092, %v2163
        %v2228 = vmul.f32 %v2093, %v2163
        %v2229 = vmul.f32 %v2094, %v2163
        %v2230 = vmul.f32 %v2095, %v2163
        %v2231 = vmul.f32 %v2096, %v2163
        %v2232 = vmul.f32 %v2097, %v2163
        %v2233 = vmul.f32 %v2098, %v2163
        %v2234 = vmul.f32 %v2099, %v2163
        %v2235 = vmul.f32 %v2100, %v2163
        %v2236 = vmul.f32 %v2101, %v2163
        %v2237 = vmul.f32 %v2102, %v2163
        %v2238 = vmul.f32 %v2103, %v2163
        %v2239 = vmul.f32 %v2104, %v2163
        %v2240 = vmul.f32 %v2105, %v2163
        %v2241 = vmul.f32 %v2106, %v2163
        %v2242 = vmul.f32 %v2107, %v2163
        %v2243 = vmul.f32 %v2108, %v2163
        %v2244 = vmul.f32 %v2109, %v2163
        %v2245 = vmul.f32 %v2110, %v2163
        %v2246 = vmul.f32 %v2111, %v2163
        %v2247 = vmul.f32 %v2112, %v2163
        %v2248 = vmul.f32 %v2113, %v2163
        %v2249 = vmul.f32 %v2114, %v2163
        %v2250 = vmul.f32 %v2115, %v2163
        %v2251 = vmul.f32 %v2116, %v2163
        %v2252 = vmul.f32 %v2117, %v2163
        %v2253 = vmul.f32 %v2118, %v2163
        %v2254 = vmul.f32 %v2119, %v2163
        %v2255 = vmul.f32 %v2120, %v2163
        %v2256 = vmul.f32 %v2121, %v2163
        %v2257 = vmul.f32 %v2122, %v2163
        %v2258 = vmul.f32 %v2123, %v2163
        %v2259 = vmul.f32 %v2124, %v2163
        %v2260 = vmul.f32 %v2125, %v2163
        %v2261 = vmul.f32 %v2126, %v2163
        %v2262 = vmul.f32 %v2127, %v2163
        %v2263 = vmul.f32 %v2128, %v2163
        %v2264 = vmul.f32 %v2129, %v2163
        %v2265 = vmul.f32 %v2130, %v2163
        %v2266 = vmul.f32 %v2131, %v2163
        %v2267 = vmul.f32 %v2132, %v2163
        %v2268 = vmul.f32 %v2133, %v2163
        %v2269 = vmul.f32 %v2134, %v2163
        %v2270 = vmul.f32 %v2135, %v2163
        %v2271 = vmul.f32 %v2136, %v2163
        %v2272 = vmul.f32 %v2137, %v2163
        %v2273 = vmul.f32 %v2138, %v2163
        %v2274 = vmul.f32 %v2139, %v2163
        %v2275 = vmul.f32 %v2140, %v2163
        %v2276 = vmul.f32 %v2141, %v2163
        %v2277 = vmul.f32 %v2142, %v2163
        %v2278 = vmul.f32 %v2143, %v2163
        %v2279 = vmul.f32 %v2144, %v2163
        %v2280 = vmul.f32 %v2145, %v2163
        %v2281 = vmul.f32 %v2146, %v2163
        %v2282 = vmul.f32 %v2147, %v2163
        %v2283 = vmul.f32 %v2148, %v2163
        %v2284 = vmul.f32 %v2149, %v2163
        %v2285 = vmul.f32 %v2150, %v2163
        %v2286 = vmul.f32 %v2151, %v2163
        %v2287 = vmul.f32 %v2152, %v2163
        %v2288 = vmul.f32 %v2153, %v2163
        %v2289 = vmul.f32 %v2154, %v2163
        %v2290 = vmul.f32 %v2155, %v2163
        %v2291 = vmul.f32 %v2156, %v2163
        %v2292 = vmul.f32 %v2157, %v2163
        %v2293 = vld [vmem:[%s290] sm:$0x1]
        %v2295 = vlaneseq
        %v2296 = vshrl.u32 %v2295, 7
        %v2297 = vsub.s32 0, %v2296
        %v2298 = vrot.slane %v2293, %v2297
        %v2300 = vadd.f32 %v2165, %v2298
        %v2301 = vadd.f32 %v2166, %v2298
        %v2302 = vadd.f32 %v2167, %v2298
        %v2303 = vadd.f32 %v2168, %v2298
        %v2304 = vadd.f32 %v2169, %v2298
        %v2305 = vadd.f32 %v2170, %v2298
        %v2306 = vadd.f32 %v2171, %v2298
        %v2307 = vadd.f32 %v2172, %v2298
        %v2308 = vadd.f32 %v2173, %v2298
        %v2309 = vadd.f32 %v2174, %v2298
        %v2310 = vadd.f32 %v2175, %v2298
        %v2311 = vadd.f32 %v2176, %v2298
        %v2312 = vadd.f32 %v2177, %v2298
        %v2313 = vadd.f32 %v2178, %v2298
        %v2314 = vadd.f32 %v2179, %v2298
        %v2315 = vadd.f32 %v2180, %v2298
        %v2316 = vadd.f32 %v2181, %v2298
        %v2317 = vadd.f32 %v2182, %v2298
        %v2318 = vadd.f32 %v2183, %v2298
        %v2319 = vadd.f32 %v2184, %v2298
        %v2320 = vadd.f32 %v2185, %v2298
        %v2321 = vadd.f32 %v2186, %v2298
        %v2322 = vadd.f32 %v2187, %v2298
        %v2323 = vadd.f32 %v2188, %v2298
        %v2324 = vadd.f32 %v2189, %v2298
        %v2325 = vadd.f32 %v2190, %v2298
        %v2326 = vadd.f32 %v2191, %v2298
        %v2327 = vadd.f32 %v2192, %v2298
        %v2328 = vadd.f32 %v2193, %v2298
        %v2329 = vadd.f32 %v2194, %v2298
        %v2330 = vadd.f32 %v2195, %v2298
        %v2331 = vadd.f32 %v2196, %v2298
        %v2332 = vadd.f32 %v2197, %v2298
        %v2333 = vadd.f32 %v2198, %v2298
        %v2334 = vadd.f32 %v2199, %v2298
        %v2335 = vadd.f32 %v2200, %v2298
        %v2336 = vadd.f32 %v2201, %v2298
        %v2337 = vadd.f32 %v2202, %v2298
        %v2338 = vadd.f32 %v2203, %v2298
        %v2339 = vadd.f32 %v2204, %v2298
        %v2340 = vadd.f32 %v2205, %v2298
        %v2341 = vadd.f32 %v2206, %v2298
        %v2342 = vadd.f32 %v2207, %v2298
        %v2343 = vadd.f32 %v2208, %v2298
        %v2344 = vadd.f32 %v2209, %v2298
        %v2345 = vadd.f32 %v2210, %v2298
        %v2346 = vadd.f32 %v2211, %v2298
        %v2347 = vadd.f32 %v2212, %v2298
        %v2348 = vadd.f32 %v2213, %v2298
        %v2349 = vadd.f32 %v2214, %v2298
        %v2350 = vadd.f32 %v2215, %v2298
        %v2351 = vadd.f32 %v2216, %v2298
        %v2352 = vadd.f32 %v2217, %v2298
        %v2353 = vadd.f32 %v2218, %v2298
        %v2354 = vadd.f32 %v2219, %v2298
        %v2355 = vadd.f32 %v2220, %v2298
        %v2356 = vadd.f32 %v2221, %v2298
        %v2357 = vadd.f32 %v2222, %v2298
        %v2358 = vadd.f32 %v2223, %v2298
        %v2359 = vadd.f32 %v2224, %v2298
        %v2360 = vadd.f32 %v2225, %v2298
        %v2361 = vadd.f32 %v2226, %v2298
        %v2362 = vadd.f32 %v2227, %v2298
        %v2363 = vadd.f32 %v2228, %v2298
        %v2364 = vadd.f32 %v2229, %v2298
        %v2365 = vadd.f32 %v2230, %v2298
        %v2366 = vadd.f32 %v2231, %v2298
        %v2367 = vadd.f32 %v2232, %v2298
        %v2368 = vadd.f32 %v2233, %v2298
        %v2369 = vadd.f32 %v2234, %v2298
        %v2370 = vadd.f32 %v2235, %v2298
        %v2371 = vadd.f32 %v2236, %v2298
        %v2372 = vadd.f32 %v2237, %v2298
        %v2373 = vadd.f32 %v2238, %v2298
        %v2374 = vadd.f32 %v2239, %v2298
        %v2375 = vadd.f32 %v2240, %v2298
        %v2376 = vadd.f32 %v2241, %v2298
        %v2377 = vadd.f32 %v2242, %v2298
        %v2378 = vadd.f32 %v2243, %v2298
        %v2379 = vadd.f32 %v2244, %v2298
        %v2380 = vadd.f32 %v2245, %v2298
        %v2381 = vadd.f32 %v2246, %v2298
        %v2382 = vadd.f32 %v2247, %v2298
        %v2383 = vadd.f32 %v2248, %v2298
        %v2384 = vadd.f32 %v2249, %v2298
        %v2385 = vadd.f32 %v2250, %v2298
        %v2386 = vadd.f32 %v2251, %v2298
        %v2387 = vadd.f32 %v2252, %v2298
        %v2388 = vadd.f32 %v2253, %v2298
        %v2389 = vadd.f32 %v2254, %v2298
        %v2390 = vadd.f32 %v2255, %v2298
        %v2391 = vadd.f32 %v2256, %v2298
        %v2392 = vadd.f32 %v2257, %v2298
        %v2393 = vadd.f32 %v2258, %v2298
        %v2394 = vadd.f32 %v2259, %v2298
        %v2395 = vadd.f32 %v2260, %v2298
        %v2396 = vadd.f32 %v2261, %v2298
        %v2397 = vadd.f32 %v2262, %v2298
        %v2398 = vadd.f32 %v2263, %v2298
        %v2399 = vadd.f32 %v2264, %v2298
        %v2400 = vadd.f32 %v2265, %v2298
        %v2401 = vadd.f32 %v2266, %v2298
        %v2402 = vadd.f32 %v2267, %v2298
        %v2403 = vadd.f32 %v2268, %v2298
        %v2404 = vadd.f32 %v2269, %v2298
        %v2405 = vadd.f32 %v2270, %v2298
        %v2406 = vadd.f32 %v2271, %v2298
        %v2407 = vadd.f32 %v2272, %v2298
        %v2408 = vadd.f32 %v2273, %v2298
        %v2409 = vadd.f32 %v2274, %v2298
        %v2410 = vadd.f32 %v2275, %v2298
        %v2411 = vadd.f32 %v2276, %v2298
        %v2412 = vadd.f32 %v2277, %v2298
        %v2413 = vadd.f32 %v2278, %v2298
        %v2414 = vadd.f32 %v2279, %v2298
        %v2415 = vadd.f32 %v2280, %v2298
        %v2416 = vadd.f32 %v2281, %v2298
        %v2417 = vadd.f32 %v2282, %v2298
        %v2418 = vadd.f32 %v2283, %v2298
        %v2419 = vadd.f32 %v2284, %v2298
        %v2420 = vadd.f32 %v2285, %v2298
        %v2421 = vadd.f32 %v2286, %v2298
        %v2422 = vadd.f32 %v2287, %v2298
        %v2423 = vadd.f32 %v2288, %v2298
        %v2424 = vadd.f32 %v2289, %v2298
        %v2425 = vadd.f32 %v2290, %v2298
        %v2426 = vadd.f32 %v2291, %v2298
        %v2427 = vadd.f32 %v2292, %v2298
        %v2428 = vmul.f32 %v2300, 0.2
        %v2429 = vmul.f32 %v2301, 0.2
        %v2430 = vmul.f32 %v2302, 0.2
        %v2431 = vmul.f32 %v2303, 0.2
        %v2432 = vmul.f32 %v2304, 0.2
        %v2433 = vmul.f32 %v2305, 0.2
        %v2434 = vmul.f32 %v2306, 0.2
        %v2435 = vmul.f32 %v2307, 0.2
        %v2436 = vmul.f32 %v2308, 0.2
        %v2437 = vmul.f32 %v2309, 0.2
        %v2438 = vmul.f32 %v2310, 0.2
        %v2439 = vmul.f32 %v2311, 0.2
        %v2440 = vmul.f32 %v2312, 0.2
        %v2441 = vmul.f32 %v2313, 0.2
        %v2442 = vmul.f32 %v2314, 0.2
        %v2443 = vmul.f32 %v2315, 0.2
        %v2444 = vmul.f32 %v2316, 0.2
        %v2445 = vmul.f32 %v2317, 0.2
        %v2446 = vmul.f32 %v2318, 0.2
        %v2447 = vmul.f32 %v2319, 0.2
        %v2448 = vmul.f32 %v2320, 0.2
        %v2449 = vmul.f32 %v2321, 0.2
        %v2450 = vmul.f32 %v2322, 0.2
        %v2451 = vmul.f32 %v2323, 0.2
        %v2452 = vmul.f32 %v2324, 0.2
        %v2453 = vmul.f32 %v2325, 0.2
        %v2454 = vmul.f32 %v2326, 0.2
        %v2455 = vmul.f32 %v2327, 0.2
        %v2456 = vmul.f32 %v2328, 0.2
        %v2457 = vmul.f32 %v2329, 0.2
        %v2458 = vmul.f32 %v2330, 0.2
        %v2459 = vmul.f32 %v2331, 0.2
        %v2460 = vmul.f32 %v2332, 0.2
        %v2461 = vmul.f32 %v2333, 0.2
        %v2462 = vmul.f32 %v2334, 0.2
        %v2463 = vmul.f32 %v2335, 0.2
        %v2464 = vmul.f32 %v2336, 0.2
        %v2465 = vmul.f32 %v2337, 0.2
        %v2466 = vmul.f32 %v2338, 0.2
        %v2467 = vmul.f32 %v2339, 0.2
        %v2468 = vmul.f32 %v2340, 0.2
        %v2469 = vmul.f32 %v2341, 0.2
        %v2470 = vmul.f32 %v2342, 0.2
        %v2471 = vmul.f32 %v2343, 0.2
        %v2472 = vmul.f32 %v2344, 0.2
        %v2473 = vmul.f32 %v2345, 0.2
        %v2474 = vmul.f32 %v2346, 0.2
        %v2475 = vmul.f32 %v2347, 0.2
        %v2476 = vmul.f32 %v2348, 0.2
        %v2477 = vmul.f32 %v2349, 0.2
        %v2478 = vmul.f32 %v2350, 0.2
        %v2479 = vmul.f32 %v2351, 0.2
        %v2480 = vmul.f32 %v2352, 0.2
        %v2481 = vmul.f32 %v2353, 0.2
        %v2482 = vmul.f32 %v2354, 0.2
        %v2483 = vmul.f32 %v2355, 0.2
        %v2484 = vmul.f32 %v2356, 0.2
        %v2485 = vmul.f32 %v2357, 0.2
        %v2486 = vmul.f32 %v2358, 0.2
        %v2487 = vmul.f32 %v2359, 0.2
        %v2488 = vmul.f32 %v2360, 0.2
        %v2489 = vmul.f32 %v2361, 0.2
        %v2490 = vmul.f32 %v2362, 0.2
        %v2491 = vmul.f32 %v2363, 0.2
        %v2492 = vmul.f32 %v2364, 0.2
        %v2493 = vmul.f32 %v2365, 0.2
        %v2494 = vmul.f32 %v2366, 0.2
        %v2495 = vmul.f32 %v2367, 0.2
        %v2496 = vmul.f32 %v2368, 0.2
        %v2497 = vmul.f32 %v2369, 0.2
        %v2498 = vmul.f32 %v2370, 0.2
        %v2499 = vmul.f32 %v2371, 0.2
        %v2500 = vmul.f32 %v2372, 0.2
        %v2501 = vmul.f32 %v2373, 0.2
        %v2502 = vmul.f32 %v2374, 0.2
        %v2503 = vmul.f32 %v2375, 0.2
        %v2504 = vmul.f32 %v2376, 0.2
        %v2505 = vmul.f32 %v2377, 0.2
        %v2506 = vmul.f32 %v2378, 0.2
        %v2507 = vmul.f32 %v2379, 0.2
        %v2508 = vmul.f32 %v2380, 0.2
        %v2509 = vmul.f32 %v2381, 0.2
        %v2510 = vmul.f32 %v2382, 0.2
        %v2511 = vmul.f32 %v2383, 0.2
        %v2512 = vmul.f32 %v2384, 0.2
        %v2513 = vmul.f32 %v2385, 0.2
        %v2514 = vmul.f32 %v2386, 0.2
        %v2515 = vmul.f32 %v2387, 0.2
        %v2516 = vmul.f32 %v2388, 0.2
        %v2517 = vmul.f32 %v2389, 0.2
        %v2518 = vmul.f32 %v2390, 0.2
        %v2519 = vmul.f32 %v2391, 0.2
        %v2520 = vmul.f32 %v2392, 0.2
        %v2521 = vmul.f32 %v2393, 0.2
        %v2522 = vmul.f32 %v2394, 0.2
        %v2523 = vmul.f32 %v2395, 0.2
        %v2524 = vmul.f32 %v2396, 0.2
        %v2525 = vmul.f32 %v2397, 0.2
        %v2526 = vmul.f32 %v2398, 0.2
        %v2527 = vmul.f32 %v2399, 0.2
        %v2528 = vmul.f32 %v2400, 0.2
        %v2529 = vmul.f32 %v2401, 0.2
        %v2530 = vmul.f32 %v2402, 0.2
        %v2531 = vmul.f32 %v2403, 0.2
        %v2532 = vmul.f32 %v2404, 0.2
        %v2533 = vmul.f32 %v2405, 0.2
        %v2534 = vmul.f32 %v2406, 0.2
        %v2535 = vmul.f32 %v2407, 0.2
        %v2536 = vmul.f32 %v2408, 0.2
        %v2537 = vmul.f32 %v2409, 0.2
        %v2538 = vmul.f32 %v2410, 0.2
        %v2539 = vmul.f32 %v2411, 0.2
        %v2540 = vmul.f32 %v2412, 0.2
        %v2541 = vmul.f32 %v2413, 0.2
        %v2542 = vmul.f32 %v2414, 0.2
        %v2543 = vmul.f32 %v2415, 0.2
        %v2544 = vmul.f32 %v2416, 0.2
        %v2545 = vmul.f32 %v2417, 0.2
        %v2546 = vmul.f32 %v2418, 0.2
        %v2547 = vmul.f32 %v2419, 0.2
        %v2548 = vmul.f32 %v2420, 0.2
        %v2549 = vmul.f32 %v2421, 0.2
        %v2550 = vmul.f32 %v2422, 0.2
        %v2551 = vmul.f32 %v2423, 0.2
        %v2552 = vmul.f32 %v2424, 0.2
        %v2553 = vmul.f32 %v2425, 0.2
        %v2554 = vmul.f32 %v2426, 0.2
        %v2555 = vmul.f32 %v2427, 0.2
        %v2556 = vmax.f32 %v2300, %v2428
        %v2557 = vmax.f32 %v2301, %v2429
        %v2558 = vmax.f32 %v2302, %v2430
        %v2559 = vmax.f32 %v2303, %v2431
        %v2560 = vmax.f32 %v2304, %v2432
        %v2561 = vmax.f32 %v2305, %v2433
        %v2562 = vmax.f32 %v2306, %v2434
        %v2563 = vmax.f32 %v2307, %v2435
        %v2564 = vmax.f32 %v2308, %v2436
        %v2565 = vmax.f32 %v2309, %v2437
        %v2566 = vmax.f32 %v2310, %v2438
        %v2567 = vmax.f32 %v2311, %v2439
        %v2568 = vmax.f32 %v2312, %v2440
        %v2569 = vmax.f32 %v2313, %v2441
        %v2570 = vmax.f32 %v2314, %v2442
        %v2571 = vmax.f32 %v2315, %v2443
        %v2572 = vmax.f32 %v2316, %v2444
        %v2573 = vmax.f32 %v2317, %v2445
        %v2574 = vmax.f32 %v2318, %v2446
        %v2575 = vmax.f32 %v2319, %v2447
        %v2576 = vmax.f32 %v2320, %v2448
        %v2577 = vmax.f32 %v2321, %v2449
        %v2578 = vmax.f32 %v2322, %v2450
        %v2579 = vmax.f32 %v2323, %v2451
        %v2580 = vmax.f32 %v2324, %v2452
        %v2581 = vmax.f32 %v2325, %v2453
        %v2582 = vmax.f32 %v2326, %v2454
        %v2583 = vmax.f32 %v2327, %v2455
        %v2584 = vmax.f32 %v2328, %v2456
        %v2585 = vmax.f32 %v2329, %v2457
        %v2586 = vmax.f32 %v2330, %v2458
        %v2587 = vmax.f32 %v2331, %v2459
        %v2588 = vmax.f32 %v2332, %v2460
        %v2589 = vmax.f32 %v2333, %v2461
        %v2590 = vmax.f32 %v2334, %v2462
        %v2591 = vmax.f32 %v2335, %v2463
        %v2592 = vmax.f32 %v2336, %v2464
        %v2593 = vmax.f32 %v2337, %v2465
        %v2594 = vmax.f32 %v2338, %v2466
        %v2595 = vmax.f32 %v2339, %v2467
        %v2596 = vmax.f32 %v2340, %v2468
        %v2597 = vmax.f32 %v2341, %v2469
        %v2598 = vmax.f32 %v2342, %v2470
        %v2599 = vmax.f32 %v2343, %v2471
        %v2600 = vmax.f32 %v2344, %v2472
        %v2601 = vmax.f32 %v2345, %v2473
        %v2602 = vmax.f32 %v2346, %v2474
        %v2603 = vmax.f32 %v2347, %v2475
        %v2604 = vmax.f32 %v2348, %v2476
        %v2605 = vmax.f32 %v2349, %v2477
        %v2606 = vmax.f32 %v2350, %v2478
        %v2607 = vmax.f32 %v2351, %v2479
        %v2608 = vmax.f32 %v2352, %v2480
        %v2609 = vmax.f32 %v2353, %v2481
        %v2610 = vmax.f32 %v2354, %v2482
        %v2611 = vmax.f32 %v2355, %v2483
        %v2612 = vmax.f32 %v2356, %v2484
        %v2613 = vmax.f32 %v2357, %v2485
        %v2614 = vmax.f32 %v2358, %v2486
        %v2615 = vmax.f32 %v2359, %v2487
        %v2616 = vmax.f32 %v2360, %v2488
        %v2617 = vmax.f32 %v2361, %v2489
        %v2618 = vmax.f32 %v2362, %v2490
        %v2619 = vmax.f32 %v2363, %v2491
        %v2620 = vmax.f32 %v2364, %v2492
        %v2621 = vmax.f32 %v2365, %v2493
        %v2622 = vmax.f32 %v2366, %v2494
        %v2623 = vmax.f32 %v2367, %v2495
        %v2624 = vmax.f32 %v2368, %v2496
        %v2625 = vmax.f32 %v2369, %v2497
        %v2626 = vmax.f32 %v2370, %v2498
        %v2627 = vmax.f32 %v2371, %v2499
        %v2628 = vmax.f32 %v2372, %v2500
        %v2629 = vmax.f32 %v2373, %v2501
        %v2630 = vmax.f32 %v2374, %v2502
        %v2631 = vmax.f32 %v2375, %v2503
        %v2632 = vmax.f32 %v2376, %v2504
        %v2633 = vmax.f32 %v2377, %v2505
        %v2634 = vmax.f32 %v2378, %v2506
        %v2635 = vmax.f32 %v2379, %v2507
        %v2636 = vmax.f32 %v2380, %v2508
        %v2637 = vmax.f32 %v2381, %v2509
        %v2638 = vmax.f32 %v2382, %v2510
        %v2639 = vmax.f32 %v2383, %v2511
        %v2640 = vmax.f32 %v2384, %v2512
        %v2641 = vmax.f32 %v2385, %v2513
        %v2642 = vmax.f32 %v2386, %v2514
        %v2643 = vmax.f32 %v2387, %v2515
        %v2644 = vmax.f32 %v2388, %v2516
        %v2645 = vmax.f32 %v2389, %v2517
        %v2646 = vmax.f32 %v2390, %v2518
        %v2647 = vmax.f32 %v2391, %v2519
        %v2648 = vmax.f32 %v2392, %v2520
        %v2649 = vmax.f32 %v2393, %v2521
        %v2650 = vmax.f32 %v2394, %v2522
        %v2651 = vmax.f32 %v2395, %v2523
        %v2652 = vmax.f32 %v2396, %v2524
        %v2653 = vmax.f32 %v2397, %v2525
        %v2654 = vmax.f32 %v2398, %v2526
        %v2655 = vmax.f32 %v2399, %v2527
        %v2656 = vmax.f32 %v2400, %v2528
        %v2657 = vmax.f32 %v2401, %v2529
        %v2658 = vmax.f32 %v2402, %v2530
        %v2659 = vmax.f32 %v2403, %v2531
        %v2660 = vmax.f32 %v2404, %v2532
        %v2661 = vmax.f32 %v2405, %v2533
        %v2662 = vmax.f32 %v2406, %v2534
        %v2663 = vmax.f32 %v2407, %v2535
        %v2664 = vmax.f32 %v2408, %v2536
        %v2665 = vmax.f32 %v2409, %v2537
        %v2666 = vmax.f32 %v2410, %v2538
        %v2667 = vmax.f32 %v2411, %v2539
        %v2668 = vmax.f32 %v2412, %v2540
        %v2669 = vmax.f32 %v2413, %v2541
        %v2670 = vmax.f32 %v2414, %v2542
        %v2671 = vmax.f32 %v2415, %v2543
        %v2672 = vmax.f32 %v2416, %v2544
        %v2673 = vmax.f32 %v2417, %v2545
        %v2674 = vmax.f32 %v2418, %v2546
        %v2675 = vmax.f32 %v2419, %v2547
        %v2676 = vmax.f32 %v2420, %v2548
        %v2677 = vmax.f32 %v2421, %v2549
        %v2678 = vmax.f32 %v2422, %v2550
        %v2679 = vmax.f32 %v2423, %v2551
        %v2680 = vmax.f32 %v2424, %v2552
        %v2681 = vmax.f32 %v2425, %v2553
        %v2682 = vmax.f32 %v2426, %v2554
        %v2683 = vmax.f32 %v2427, %v2555
        %v2684 = vpack.c.bf16 %v2557, %v2556
        %v2685 = vpack.c.bf16 %v2559, %v2558
        %v2686 = vpack.c.bf16 %v2561, %v2560
        %v2687 = vpack.c.bf16 %v2563, %v2562
        %v2688 = vpack.c.bf16 %v2565, %v2564
        %v2689 = vpack.c.bf16 %v2567, %v2566
        %v2690 = vpack.c.bf16 %v2569, %v2568
        %v2691 = vpack.c.bf16 %v2571, %v2570
        %v2692 = vpack.c.bf16 %v2573, %v2572
        %v2693 = vpack.c.bf16 %v2575, %v2574
        %v2694 = vpack.c.bf16 %v2577, %v2576
        %v2695 = vpack.c.bf16 %v2579, %v2578
        %v2696 = vpack.c.bf16 %v2581, %v2580
        %v2697 = vpack.c.bf16 %v2583, %v2582
        %v2698 = vpack.c.bf16 %v2585, %v2584
        %v2699 = vpack.c.bf16 %v2587, %v2586
        %v2700 = vpack.c.bf16 %v2589, %v2588
        %v2701 = vpack.c.bf16 %v2591, %v2590
        %v2702 = vpack.c.bf16 %v2593, %v2592
        %v2703 = vpack.c.bf16 %v2595, %v2594
        %v2704 = vpack.c.bf16 %v2597, %v2596
        %v2705 = vpack.c.bf16 %v2599, %v2598
        %v2706 = vpack.c.bf16 %v2601, %v2600
        %v2707 = vpack.c.bf16 %v2603, %v2602
        %v2708 = vpack.c.bf16 %v2605, %v2604
        %v2709 = vpack.c.bf16 %v2607, %v2606
        %v2710 = vpack.c.bf16 %v2609, %v2608
        %v2711 = vpack.c.bf16 %v2611, %v2610
        %v2712 = vpack.c.bf16 %v2613, %v2612
        %v2713 = vpack.c.bf16 %v2615, %v2614
        %v2714 = vpack.c.bf16 %v2617, %v2616
        %v2715 = vpack.c.bf16 %v2619, %v2618
        %v2716 = vpack.c.bf16 %v2621, %v2620
        %v2717 = vpack.c.bf16 %v2623, %v2622
        %v2718 = vpack.c.bf16 %v2625, %v2624
        %v2719 = vpack.c.bf16 %v2627, %v2626
        %v2720 = vpack.c.bf16 %v2629, %v2628
        %v2721 = vpack.c.bf16 %v2631, %v2630
        %v2722 = vpack.c.bf16 %v2633, %v2632
        %v2723 = vpack.c.bf16 %v2635, %v2634
        %v2724 = vpack.c.bf16 %v2637, %v2636
        %v2725 = vpack.c.bf16 %v2639, %v2638
        %v2726 = vpack.c.bf16 %v2641, %v2640
        %v2727 = vpack.c.bf16 %v2643, %v2642
        %v2728 = vpack.c.bf16 %v2645, %v2644
        %v2729 = vpack.c.bf16 %v2647, %v2646
        %v2730 = vpack.c.bf16 %v2649, %v2648
        %v2731 = vpack.c.bf16 %v2651, %v2650
        %v2732 = vpack.c.bf16 %v2653, %v2652
        %v2733 = vpack.c.bf16 %v2655, %v2654
        %v2734 = vpack.c.bf16 %v2657, %v2656
        %v2735 = vpack.c.bf16 %v2659, %v2658
        %v2736 = vpack.c.bf16 %v2661, %v2660
        %v2737 = vpack.c.bf16 %v2663, %v2662
        %v2738 = vpack.c.bf16 %v2665, %v2664
        %v2739 = vpack.c.bf16 %v2667, %v2666
        %v2740 = vpack.c.bf16 %v2669, %v2668
        %v2741 = vpack.c.bf16 %v2671, %v2670
        %v2742 = vpack.c.bf16 %v2673, %v2672
        %v2743 = vpack.c.bf16 %v2675, %v2674
        %v2744 = vpack.c.bf16 %v2677, %v2676
        %v2745 = vpack.c.bf16 %v2679, %v2678
        %v2746 = vpack.c.bf16 %v2681, %v2680
        %v2747 = vpack.c.bf16 %v2683, %v2682
        %v2812 = vunpack.c.l.b16 %v2684
        %v2813 = vunpack.c.h.b16 %v2684
        %v2814 = vunpack.c.l.b16 %v2685
        %v2815 = vunpack.c.h.b16 %v2685
        %v2816 = vunpack.c.l.b16 %v2686
        %v2817 = vunpack.c.h.b16 %v2686
        %v2818 = vunpack.c.l.b16 %v2687
        %v2819 = vunpack.c.h.b16 %v2687
        %v2820 = vunpack.c.l.b16 %v2688
        %v2821 = vunpack.c.h.b16 %v2688
        %v2822 = vunpack.c.l.b16 %v2689
        %v2823 = vunpack.c.h.b16 %v2689
        %v2824 = vunpack.c.l.b16 %v2690
        %v2825 = vunpack.c.h.b16 %v2690
        %v2826 = vunpack.c.l.b16 %v2691
        %v2827 = vunpack.c.h.b16 %v2691
        %v2828 = vunpack.c.l.b16 %v2692
        %v2829 = vunpack.c.h.b16 %v2692
        %v2830 = vunpack.c.l.b16 %v2693
        %v2831 = vunpack.c.h.b16 %v2693
        %v2832 = vunpack.c.l.b16 %v2694
        %v2833 = vunpack.c.h.b16 %v2694
        %v2834 = vunpack.c.l.b16 %v2695
        %v2835 = vunpack.c.h.b16 %v2695
        %v2836 = vunpack.c.l.b16 %v2696
        %v2837 = vunpack.c.h.b16 %v2696
        %v2838 = vunpack.c.l.b16 %v2697
        %v2839 = vunpack.c.h.b16 %v2697
        %v2840 = vunpack.c.l.b16 %v2698
        %v2841 = vunpack.c.h.b16 %v2698
        %v2842 = vunpack.c.l.b16 %v2699
        %v2843 = vunpack.c.h.b16 %v2699
        %v2844 = vunpack.c.l.b16 %v2700
        %v2845 = vunpack.c.h.b16 %v2700
        %v2846 = vunpack.c.l.b16 %v2701
        %v2847 = vunpack.c.h.b16 %v2701
        %v2848 = vunpack.c.l.b16 %v2702
        %v2849 = vunpack.c.h.b16 %v2702
        %v2850 = vunpack.c.l.b16 %v2703
        %v2851 = vunpack.c.h.b16 %v2703
        %v2852 = vunpack.c.l.b16 %v2704
        %v2853 = vunpack.c.h.b16 %v2704
        %v2854 = vunpack.c.l.b16 %v2705
        %v2855 = vunpack.c.h.b16 %v2705
        %v2856 = vunpack.c.l.b16 %v2706
        %v2857 = vunpack.c.h.b16 %v2706
        %v2858 = vunpack.c.l.b16 %v2707
        %v2859 = vunpack.c.h.b16 %v2707
        %v2860 = vunpack.c.l.b16 %v2708
        %v2861 = vunpack.c.h.b16 %v2708
        %v2862 = vunpack.c.l.b16 %v2709
        %v2863 = vunpack.c.h.b16 %v2709
        %v2864 = vunpack.c.l.b16 %v2710
        %v2865 = vunpack.c.h.b16 %v2710
        %v2866 = vunpack.c.l.b16 %v2711
        %v2867 = vunpack.c.h.b16 %v2711
        %v2868 = vunpack.c.l.b16 %v2712
        %v2869 = vunpack.c.h.b16 %v2712
        %v2870 = vunpack.c.l.b16 %v2713
        %v2871 = vunpack.c.h.b16 %v2713
        %v2872 = vunpack.c.l.b16 %v2714
        %v2873 = vunpack.c.h.b16 %v2714
        %v2874 = vunpack.c.l.b16 %v2715
        %v2875 = vunpack.c.h.b16 %v2715
        %v2876 = vunpack.c.l.b16 %v2716
        %v2877 = vunpack.c.h.b16 %v2716
        %v2878 = vunpack.c.l.b16 %v2717
        %v2879 = vunpack.c.h.b16 %v2717
        %v2880 = vunpack.c.l.b16 %v2718
        %v2881 = vunpack.c.h.b16 %v2718
        %v2882 = vunpack.c.l.b16 %v2719
        %v2883 = vunpack.c.h.b16 %v2719
        %v2884 = vunpack.c.l.b16 %v2720
        %v2885 = vunpack.c.h.b16 %v2720
        %v2886 = vunpack.c.l.b16 %v2721
        %v2887 = vunpack.c.h.b16 %v2721
        %v2888 = vunpack.c.l.b16 %v2722
        %v2889 = vunpack.c.h.b16 %v2722
        %v2890 = vunpack.c.l.b16 %v2723
        %v2891 = vunpack.c.h.b16 %v2723
        %v2892 = vunpack.c.l.b16 %v2724
        %v2893 = vunpack.c.h.b16 %v2724
        %v2894 = vunpack.c.l.b16 %v2725
        %v2895 = vunpack.c.h.b16 %v2725
        %v2896 = vunpack.c.l.b16 %v2726
        %v2897 = vunpack.c.h.b16 %v2726
        %v2898 = vunpack.c.l.b16 %v2727
        %v2899 = vunpack.c.h.b16 %v2727
        %v2900 = vunpack.c.l.b16 %v2728
        %v2901 = vunpack.c.h.b16 %v2728
        %v2902 = vunpack.c.l.b16 %v2729
        %v2903 = vunpack.c.h.b16 %v2729
        %v2904 = vunpack.c.l.b16 %v2730
        %v2905 = vunpack.c.h.b16 %v2730
        %v2906 = vunpack.c.l.b16 %v2731
        %v2907 = vunpack.c.h.b16 %v2731
        %v2908 = vunpack.c.l.b16 %v2732
        %v2909 = vunpack.c.h.b16 %v2732
        %v2910 = vunpack.c.l.b16 %v2733
        %v2911 = vunpack.c.h.b16 %v2733
        %v2912 = vunpack.c.l.b16 %v2734
        %v2913 = vunpack.c.h.b16 %v2734
        %v2914 = vunpack.c.l.b16 %v2735
        %v2915 = vunpack.c.h.b16 %v2735
        %v2916 = vunpack.c.l.b16 %v2736
        %v2917 = vunpack.c.h.b16 %v2736
        %v2918 = vunpack.c.l.b16 %v2737
        %v2919 = vunpack.c.h.b16 %v2737
        %v2920 = vunpack.c.l.b16 %v2738
        %v2921 = vunpack.c.h.b16 %v2738
        %v2922 = vunpack.c.l.b16 %v2739
        %v2923 = vunpack.c.h.b16 %v2739
        %v2924 = vunpack.c.l.b16 %v2740
        %v2925 = vunpack.c.h.b16 %v2740
        %v2926 = vunpack.c.l.b16 %v2741
        %v2927 = vunpack.c.h.b16 %v2741
        %v2928 = vunpack.c.l.b16 %v2742
        %v2929 = vunpack.c.h.b16 %v2742
        %v2930 = vunpack.c.l.b16 %v2743
        %v2931 = vunpack.c.h.b16 %v2743
        %v2932 = vunpack.c.l.b16 %v2744
        %v2933 = vunpack.c.h.b16 %v2744
        %v2934 = vunpack.c.l.b16 %v2745
        %v2935 = vunpack.c.h.b16 %v2745
        %v2936 = vunpack.c.l.b16 %v2746
        %v2937 = vunpack.c.h.b16 %v2746
        %v2938 = vunpack.c.l.b16 %v2747
        %v2939 = vunpack.c.h.b16 %v2747
        %v2940 = vpack.c.b16 %v2812, %v2812
        %v2941 = vpack.c.b16 %v2813, %v2813
        %v2942 = vpack.c.b16 %v2814, %v2814
        %v2943 = vpack.c.b16 %v2815, %v2815
        %v2944 = vpack.c.b16 %v2816, %v2816
        %v2945 = vpack.c.b16 %v2817, %v2817
        %v2946 = vpack.c.b16 %v2818, %v2818
        %v2947 = vpack.c.b16 %v2819, %v2819
        %v2948 = vpack.c.b16 %v2820, %v2820
        %v2949 = vpack.c.b16 %v2821, %v2821
        %v2950 = vpack.c.b16 %v2822, %v2822
        %v2951 = vpack.c.b16 %v2823, %v2823
        %v2952 = vpack.c.b16 %v2824, %v2824
        %v2953 = vpack.c.b16 %v2825, %v2825
        %v2954 = vpack.c.b16 %v2826, %v2826
        %v2955 = vpack.c.b16 %v2827, %v2827
        %v2956 = vpack.c.b16 %v2828, %v2828
        %v2957 = vpack.c.b16 %v2829, %v2829
        %v2958 = vpack.c.b16 %v2830, %v2830
        %v2959 = vpack.c.b16 %v2831, %v2831
        %v2960 = vpack.c.b16 %v2832, %v2832
        %v2961 = vpack.c.b16 %v2833, %v2833
        %v2962 = vpack.c.b16 %v2834, %v2834
        %v2963 = vpack.c.b16 %v2835, %v2835
        %v2964 = vpack.c.b16 %v2836, %v2836
        %v2965 = vpack.c.b16 %v2837, %v2837
        %v2966 = vpack.c.b16 %v2838, %v2838
        %v2967 = vpack.c.b16 %v2839, %v2839
        %v2968 = vpack.c.b16 %v2840, %v2840
        %v2969 = vpack.c.b16 %v2841, %v2841
        %v2970 = vpack.c.b16 %v2842, %v2842
        %v2971 = vpack.c.b16 %v2843, %v2843
        %v2972 = vpack.c.b16 %v2844, %v2844
        %v2973 = vpack.c.b16 %v2845, %v2845
        %v2974 = vpack.c.b16 %v2846, %v2846
        %v2975 = vpack.c.b16 %v2847, %v2847
        %v2976 = vpack.c.b16 %v2848, %v2848
        %v2977 = vpack.c.b16 %v2849, %v2849
        %v2978 = vpack.c.b16 %v2850, %v2850
        %v2979 = vpack.c.b16 %v2851, %v2851
        %v2980 = vpack.c.b16 %v2852, %v2852
        %v2981 = vpack.c.b16 %v2853, %v2853
        %v2982 = vpack.c.b16 %v2854, %v2854
        %v2983 = vpack.c.b16 %v2855, %v2855
        %v2984 = vpack.c.b16 %v2856, %v2856
        %v2985 = vpack.c.b16 %v2857, %v2857
        %v2986 = vpack.c.b16 %v2858, %v2858
        %v2987 = vpack.c.b16 %v2859, %v2859
        %v2988 = vpack.c.b16 %v2860, %v2860
        %v2989 = vpack.c.b16 %v2861, %v2861
        %v2990 = vpack.c.b16 %v2862, %v2862
        %v2991 = vpack.c.b16 %v2863, %v2863
        %v2992 = vpack.c.b16 %v2864, %v2864
        %v2993 = vpack.c.b16 %v2865, %v2865
        %v2994 = vpack.c.b16 %v2866, %v2866
        %v2995 = vpack.c.b16 %v2867, %v2867
        %v2996 = vpack.c.b16 %v2868, %v2868
        %v2997 = vpack.c.b16 %v2869, %v2869
        %v2998 = vpack.c.b16 %v2870, %v2870
        %v2999 = vpack.c.b16 %v2871, %v2871
        %v3000 = vpack.c.b16 %v2872, %v2872
        %v3001 = vpack.c.b16 %v2873, %v2873
        %v3002 = vpack.c.b16 %v2874, %v2874
        %v3003 = vpack.c.b16 %v2875, %v2875
        %v3004 = vpack.c.b16 %v2876, %v2876
        %v3005 = vpack.c.b16 %v2877, %v2877
        %v3006 = vpack.c.b16 %v2878, %v2878
        %v3007 = vpack.c.b16 %v2879, %v2879
        %v3008 = vpack.c.b16 %v2880, %v2880
        %v3009 = vpack.c.b16 %v2881, %v2881
        %v3010 = vpack.c.b16 %v2882, %v2882
        %v3011 = vpack.c.b16 %v2883, %v2883
        %v3012 = vpack.c.b16 %v2884, %v2884
        %v3013 = vpack.c.b16 %v2885, %v2885
        %v3014 = vpack.c.b16 %v2886, %v2886
        %v3015 = vpack.c.b16 %v2887, %v2887
        %v3016 = vpack.c.b16 %v2888, %v2888
        %v3017 = vpack.c.b16 %v2889, %v2889
        %v3018 = vpack.c.b16 %v2890, %v2890
        %v3019 = vpack.c.b16 %v2891, %v2891
        %v3020 = vpack.c.b16 %v2892, %v2892
        %v3021 = vpack.c.b16 %v2893, %v2893
        %v3022 = vpack.c.b16 %v2894, %v2894
        %v3023 = vpack.c.b16 %v2895, %v2895
        %v3024 = vpack.c.b16 %v2896, %v2896
        %v3025 = vpack.c.b16 %v2897, %v2897
        %v3026 = vpack.c.b16 %v2898, %v2898
        %v3027 = vpack.c.b16 %v2899, %v2899
        %v3028 = vpack.c.b16 %v2900, %v2900
        %v3029 = vpack.c.b16 %v2901, %v2901
        %v3030 = vpack.c.b16 %v2902, %v2902
        %v3031 = vpack.c.b16 %v2903, %v2903
        %v3032 = vpack.c.b16 %v2904, %v2904
        %v3033 = vpack.c.b16 %v2905, %v2905
        %v3034 = vpack.c.b16 %v2906, %v2906
        %v3035 = vpack.c.b16 %v2907, %v2907
        %v3036 = vpack.c.b16 %v2908, %v2908
        %v3037 = vpack.c.b16 %v2909, %v2909
        %v3038 = vpack.c.b16 %v2910, %v2910
        %v3039 = vpack.c.b16 %v2911, %v2911
        %v3040 = vpack.c.b16 %v2912, %v2912
        %v3041 = vpack.c.b16 %v2913, %v2913
        %v3042 = vpack.c.b16 %v2914, %v2914
        %v3043 = vpack.c.b16 %v2915, %v2915
        %v3044 = vpack.c.b16 %v2916, %v2916
        %v3045 = vpack.c.b16 %v2917, %v2917
        %v3046 = vpack.c.b16 %v2918, %v2918
        %v3047 = vpack.c.b16 %v2919, %v2919
        %v3048 = vpack.c.b16 %v2920, %v2920
        %v3049 = vpack.c.b16 %v2921, %v2921
        %v3050 = vpack.c.b16 %v2922, %v2922
        %v3051 = vpack.c.b16 %v2923, %v2923
        %v3052 = vpack.c.b16 %v2924, %v2924
        %v3053 = vpack.c.b16 %v2925, %v2925
        %v3054 = vpack.c.b16 %v2926, %v2926
        %v3055 = vpack.c.b16 %v2927, %v2927
        %v3056 = vpack.c.b16 %v2928, %v2928
        %v3057 = vpack.c.b16 %v2929, %v2929
        %v3058 = vpack.c.b16 %v2930, %v2930
        %v3059 = vpack.c.b16 %v2931, %v2931
        %v3060 = vpack.c.b16 %v2932, %v2932
        %v3061 = vpack.c.b16 %v2933, %v2933
        %v3062 = vpack.c.b16 %v2934, %v2934
        %v3063 = vpack.c.b16 %v2935, %v2935
        %v3064 = vpack.c.b16 %v2936, %v2936
        %v3065 = vpack.c.b16 %v2937, %v2937
        %v3066 = vpack.c.b16 %v2938, %v2938
        %v3067 = vpack.c.b16 %v2939, %v2939
        %vm3196 = vcmask 19456
        %3197 = vst.msk [vmem:[%s298] sm:$0xf] %vm3196, %v2940
        %3198 = vst.msk [vmem:[%s298 + $0x4] sm:$0xf] %vm3196, %v2941
        %3199 = vst.msk [vmem:[%s298 + $0x8] sm:$0xf] %vm3196, %v2942
        %3200 = vst.msk [vmem:[%s298 + $0xc] sm:$0xf] %vm3196, %v2943
        %3201 = vst.msk [vmem:[%s298 + $0x10] sm:$0xf] %vm3196, %v2944
        %3202 = vst.msk [vmem:[%s298 + $0x14] sm:$0xf] %vm3196, %v2945
        %3203 = vst.msk [vmem:[%s298 + $0x18] sm:$0xf] %vm3196, %v2946
        %3204 = vst.msk [vmem:[%s298 + $0x1c] sm:$0xf] %vm3196, %v2947
        %3205 = vst.msk [vmem:[%s298 + $0x20] sm:$0xf] %vm3196, %v2948
        %3206 = vst.msk [vmem:[%s298 + $0x24] sm:$0xf] %vm3196, %v2949
        %3207 = vst.msk [vmem:[%s298 + $0x28] sm:$0xf] %vm3196, %v2950
        %3208 = vst.msk [vmem:[%s298 + $0x2c] sm:$0xf] %vm3196, %v2951
        %3209 = vst.msk [vmem:[%s298 + $0x30] sm:$0xf] %vm3196, %v2952
        %3210 = vst.msk [vmem:[%s298 + $0x34] sm:$0xf] %vm3196, %v2953
        %3211 = vst.msk [vmem:[%s298 + $0x38] sm:$0xf] %vm3196, %v2954
        %3212 = vst.msk [vmem:[%s298 + $0x3c] sm:$0xf] %vm3196, %v2955
        %3213 = vst.msk [vmem:[%s298 + $0x40] sm:$0xf] %vm3196, %v2956
        %3214 = vst.msk [vmem:[%s298 + $0x44] sm:$0xf] %vm3196, %v2957
        %3215 = vst.msk [vmem:[%s298 + $0x48] sm:$0xf] %vm3196, %v2958
        %3216 = vst.msk [vmem:[%s298 + $0x4c] sm:$0xf] %vm3196, %v2959
        %3217 = vst.msk [vmem:[%s298 + $0x50] sm:$0xf] %vm3196, %v2960
        %3218 = vst.msk [vmem:[%s298 + $0x54] sm:$0xf] %vm3196, %v2961
        %3219 = vst.msk [vmem:[%s298 + $0x58] sm:$0xf] %vm3196, %v2962
        %3220 = vst.msk [vmem:[%s298 + $0x5c] sm:$0xf] %vm3196, %v2963
        %3221 = vst.msk [vmem:[%s298 + $0x60] sm:$0xf] %vm3196, %v2964
        %3222 = vst.msk [vmem:[%s298 + $0x64] sm:$0xf] %vm3196, %v2965
        %3223 = vst.msk [vmem:[%s298 + $0x68] sm:$0xf] %vm3196, %v2966
        %3224 = vst.msk [vmem:[%s298 + $0x6c] sm:$0xf] %vm3196, %v2967
        %3225 = vst.msk [vmem:[%s298 + $0x70] sm:$0xf] %vm3196, %v2968
        %3226 = vst.msk [vmem:[%s298 + $0x74] sm:$0xf] %vm3196, %v2969
        %3227 = vst.msk [vmem:[%s298 + $0x78] sm:$0xf] %vm3196, %v2970
        %3228 = vst.msk [vmem:[%s298 + $0x7c] sm:$0xf] %vm3196, %v2971
        %3229 = vst.msk [vmem:[%s298 + $0x80] sm:$0xf] %vm3196, %v2972
        %3230 = vst.msk [vmem:[%s298 + $0x84] sm:$0xf] %vm3196, %v2973
        %3231 = vst.msk [vmem:[%s298 + $0x88] sm:$0xf] %vm3196, %v2974
        %3232 = vst.msk [vmem:[%s298 + $0x8c] sm:$0xf] %vm3196, %v2975
        %3233 = vst.msk [vmem:[%s298 + $0x90] sm:$0xf] %vm3196, %v2976
        %3234 = vst.msk [vmem:[%s298 + $0x94] sm:$0xf] %vm3196, %v2977
        %3235 = vst.msk [vmem:[%s298 + $0x98] sm:$0xf] %vm3196, %v2978
        %3236 = vst.msk [vmem:[%s298 + $0x9c] sm:$0xf] %vm3196, %v2979
        %3237 = vst.msk [vmem:[%s298 + $0xa0] sm:$0xf] %vm3196, %v2980
        %3238 = vst.msk [vmem:[%s298 + $0xa4] sm:$0xf] %vm3196, %v2981
        %3239 = vst.msk [vmem:[%s298 + $0xa8] sm:$0xf] %vm3196, %v2982
        %3240 = vst.msk [vmem:[%s298 + $0xac] sm:$0xf] %vm3196, %v2983
        %3241 = vst.msk [vmem:[%s298 + $0xb0] sm:$0xf] %vm3196, %v2984
        %3242 = vst.msk [vmem:[%s298 + $0xb4] sm:$0xf] %vm3196, %v2985
        %3243 = vst.msk [vmem:[%s298 + $0xb8] sm:$0xf] %vm3196, %v2986
        %3244 = vst.msk [vmem:[%s298 + $0xbc] sm:$0xf] %vm3196, %v2987
        %3245 = vst.msk [vmem:[%s298 + $0xc0] sm:$0xf] %vm3196, %v2988
        %3246 = vst.msk [vmem:[%s298 + $0xc4] sm:$0xf] %vm3196, %v2989
        %3247 = vst.msk [vmem:[%s298 + $0xc8] sm:$0xf] %vm3196, %v2990
        %3248 = vst.msk [vmem:[%s298 + $0xcc] sm:$0xf] %vm3196, %v2991
        %3249 = vst.msk [vmem:[%s298 + $0xd0] sm:$0xf] %vm3196, %v2992
        %3250 = vst.msk [vmem:[%s298 + $0xd4] sm:$0xf] %vm3196, %v2993
        %3251 = vst.msk [vmem:[%s298 + $0xd8] sm:$0xf] %vm3196, %v2994
        %3252 = vst.msk [vmem:[%s298 + $0xdc] sm:$0xf] %vm3196, %v2995
        %3253 = vst.msk [vmem:[%s298 + $0xe0] sm:$0xf] %vm3196, %v2996
        %3254 = vst.msk [vmem:[%s298 + $0xe4] sm:$0xf] %vm3196, %v2997
        %3255 = vst.msk [vmem:[%s298 + $0xe8] sm:$0xf] %vm3196, %v2998
        %3256 = vst.msk [vmem:[%s298 + $0xec] sm:$0xf] %vm3196, %v2999
        %3257 = vst.msk [vmem:[%s298 + $0xf0] sm:$0xf] %vm3196, %v3000
        %3258 = vst.msk [vmem:[%s298 + $0xf4] sm:$0xf] %vm3196, %v3001
        %3259 = vst.msk [vmem:[%s298 + $0xf8] sm:$0xf] %vm3196, %v3002
        %3260 = vst.msk [vmem:[%s298 + $0xfc] sm:$0xf] %vm3196, %v3003
        %3261 = vst.msk [vmem:[%s298 + $0x100] sm:$0xf] %vm3196, %v3004
        %3262 = vst.msk [vmem:[%s298 + $0x104] sm:$0xf] %vm3196, %v3005
        %3263 = vst.msk [vmem:[%s298 + $0x108] sm:$0xf] %vm3196, %v3006
        %3264 = vst.msk [vmem:[%s298 + $0x10c] sm:$0xf] %vm3196, %v3007
        %3265 = vst.msk [vmem:[%s298 + $0x110] sm:$0xf] %vm3196, %v3008
        %3266 = vst.msk [vmem:[%s298 + $0x114] sm:$0xf] %vm3196, %v3009
        %3267 = vst.msk [vmem:[%s298 + $0x118] sm:$0xf] %vm3196, %v3010
        %3268 = vst.msk [vmem:[%s298 + $0x11c] sm:$0xf] %vm3196, %v3011
        %3269 = vst.msk [vmem:[%s298 + $0x120] sm:$0xf] %vm3196, %v3012
        %3270 = vst.msk [vmem:[%s298 + $0x124] sm:$0xf] %vm3196, %v3013
        %3271 = vst.msk [vmem:[%s298 + $0x128] sm:$0xf] %vm3196, %v3014
        %3272 = vst.msk [vmem:[%s298 + $0x12c] sm:$0xf] %vm3196, %v3015
        %3273 = vst.msk [vmem:[%s298 + $0x130] sm:$0xf] %vm3196, %v3016
        %3274 = vst.msk [vmem:[%s298 + $0x134] sm:$0xf] %vm3196, %v3017
        %3275 = vst.msk [vmem:[%s298 + $0x138] sm:$0xf] %vm3196, %v3018
        %3276 = vst.msk [vmem:[%s298 + $0x13c] sm:$0xf] %vm3196, %v3019
        %3277 = vst.msk [vmem:[%s298 + $0x140] sm:$0xf] %vm3196, %v3020
        %3278 = vst.msk [vmem:[%s298 + $0x144] sm:$0xf] %vm3196, %v3021
        %3279 = vst.msk [vmem:[%s298 + $0x148] sm:$0xf] %vm3196, %v3022
        %3280 = vst.msk [vmem:[%s298 + $0x14c] sm:$0xf] %vm3196, %v3023
        %3281 = vst.msk [vmem:[%s298 + $0x150] sm:$0xf] %vm3196, %v3024
        %3282 = vst.msk [vmem:[%s298 + $0x154] sm:$0xf] %vm3196, %v3025
        %3283 = vst.msk [vmem:[%s298 + $0x158] sm:$0xf] %vm3196, %v3026
        %3284 = vst.msk [vmem:[%s298 + $0x15c] sm:$0xf] %vm3196, %v3027
        %3285 = vst.msk [vmem:[%s298 + $0x160] sm:$0xf] %vm3196, %v3028
        %3286 = vst.msk [vmem:[%s298 + $0x164] sm:$0xf] %vm3196, %v3029
        %3287 = vst.msk [vmem:[%s298 + $0x168] sm:$0xf] %vm3196, %v3030
        %3288 = vst.msk [vmem:[%s298 + $0x16c] sm:$0xf] %vm3196, %v3031
        %3289 = vst.msk [vmem:[%s298 + $0x170] sm:$0xf] %vm3196, %v3032
        %3290 = vst.msk [vmem:[%s298 + $0x174] sm:$0xf] %vm3196, %v3033
        %3291 = vst.msk [vmem:[%s298 + $0x178] sm:$0xf] %vm3196, %v3034
        %3292 = vst.msk [vmem:[%s298 + $0x17c] sm:$0xf] %vm3196, %v3035
        %3293 = vst.msk [vmem:[%s298 + $0x180] sm:$0xf] %vm3196, %v3036
        %3294 = vst.msk [vmem:[%s298 + $0x184] sm:$0xf] %vm3196, %v3037
        %3295 = vst.msk [vmem:[%s298 + $0x188] sm:$0xf] %vm3196, %v3038
        %3296 = vst.msk [vmem:[%s298 + $0x18c] sm:$0xf] %vm3196, %v3039
        %3297 = vst.msk [vmem:[%s298 + $0x190] sm:$0xf] %vm3196, %v3040
        %3298 = vst.msk [vmem:[%s298 + $0x194] sm:$0xf] %vm3196, %v3041
        %3299 = vst.msk [vmem:[%s298 + $0x198] sm:$0xf] %vm3196, %v3042
        %3300 = vst.msk [vmem:[%s298 + $0x19c] sm:$0xf] %vm3196, %v3043
        %3301 = vst.msk [vmem:[%s298 + $0x1a0] sm:$0xf] %vm3196, %v3044
        %3302 = vst.msk [vmem:[%s298 + $0x1a4] sm:$0xf] %vm3196, %v3045
        %3303 = vst.msk [vmem:[%s298 + $0x1a8] sm:$0xf] %vm3196, %v3046
        %3304 = vst.msk [vmem:[%s298 + $0x1ac] sm:$0xf] %vm3196, %v3047
        %3305 = vst.msk [vmem:[%s298 + $0x1b0] sm:$0xf] %vm3196, %v3048
        %3306 = vst.msk [vmem:[%s298 + $0x1b4] sm:$0xf] %vm3196, %v3049
        %3307 = vst.msk [vmem:[%s298 + $0x1b8] sm:$0xf] %vm3196, %v3050
        %3308 = vst.msk [vmem:[%s298 + $0x1bc] sm:$0xf] %vm3196, %v3051
        %3309 = vst.msk [vmem:[%s298 + $0x1c0] sm:$0xf] %vm3196, %v3052
        %3310 = vst.msk [vmem:[%s298 + $0x1c4] sm:$0xf] %vm3196, %v3053
        %3311 = vst.msk [vmem:[%s298 + $0x1c8] sm:$0xf] %vm3196, %v3054
        %3312 = vst.msk [vmem:[%s298 + $0x1cc] sm:$0xf] %vm3196, %v3055
        %3313 = vst.msk [vmem:[%s298 + $0x1d0] sm:$0xf] %vm3196, %v3056
        %3314 = vst.msk [vmem:[%s298 + $0x1d4] sm:$0xf] %vm3196, %v3057
        %3315 = vst.msk [vmem:[%s298 + $0x1d8] sm:$0xf] %vm3196, %v3058
        %3316 = vst.msk [vmem:[%s298 + $0x1dc] sm:$0xf] %vm3196, %v3059
        %3317 = vst.msk [vmem:[%s298 + $0x1e0] sm:$0xf] %vm3196, %v3060
        %3318 = vst.msk [vmem:[%s298 + $0x1e4] sm:$0xf] %vm3196, %v3061
        %3319 = vst.msk [vmem:[%s298 + $0x1e8] sm:$0xf] %vm3196, %v3062
        %3320 = vst.msk [vmem:[%s298 + $0x1ec] sm:$0xf] %vm3196, %v3063
        %3321 = vst.msk [vmem:[%s298 + $0x1f0] sm:$0xf] %vm3196, %v3064
        %3322 = vst.msk [vmem:[%s298 + $0x1f4] sm:$0xf] %vm3196, %v3065
        %3323 = vst.msk [vmem:[%s298 + $0x1f8] sm:$0xf] %vm3196, %v3066
        %3324 = vst.msk [vmem:[%s298 + $0x1fc] sm:$0xf] %vm3196, %v3067
      $region44: #{_fused_matmul_call.1} parent=35 // pred_fallthru
        _
      %s3325 = smul.u32 128, %s20
      %p3326 = scmp.lt.s32.totalorder %s3325, 4095
      %s3327 = scalar_select %p3326, %s3325, 4095
      %p3328 = scmp.lt.s32.totalorder %s21, 0
      %s3329 = scalar_select %p3328, %s21, 0
      %s3330 = sadd.s32 %s3329, %s3327
      %s3331 = smul.addr %s3330, 4
      %s3332 = scalar_lea.vmem %s4, %s3331
      // Predicated region
      $region45: #{_fused_matmul_call.1} parent=35 // pred_check
        %p3333 = pneg %p162
      $region46: #{_fused_matmul_call.1} parent=35 // pred_check_branch
        %3335 = sbr.rel (%p3333) target = $region48
      $region47: #{_fused_matmul_call.1} parent=35 // pred_region
        %s3336 = smul.u32 128, %s20
      $region48: #{_fused_matmul_call.1} parent=35 // pred_fallthru
        _
    $region36: #{_fused_matmul_call.1} parent=5 // pred_fallthru
      _
    %p3337 = scmp.le.s32.totalorder 2, %s10
    // Predicated region
    $region49: #{_fused_matmul_call.1} parent=5 // pred_check
      %p3338 = pneg %p3337
    $region50: #{_fused_matmul_call.1} parent=5 // pred_check_branch
      %3340 = sbr.rel (%p3338) target = $region52
    $region51: #{_fused_matmul_call.1} parent=5 // pred_region
      %s3341 = ssub.s32 %s10, 2
      // Predicated region
      $region53: #{_fused_matmul_call.1} parent=51 // pred_check
        %p3342 = pneg %p168
      $region54: #{_fused_matmul_call.1} parent=51 // pred_check_branch
        %3344 = sbr.rel (%p3342) target = $region56
      $region55: #{_fused_matmul_call.1} parent=51 // pred_region
        %s3345 = smul.u32 128, %s23
        %p3346 = scmp.lt.s32.totalorder %s3345, 4095
        %s3347 = scalar_select %p3346, %s3345, 4095
        %p3348 = scmp.lt.s32.totalorder %s24, 0
        %s3349 = scalar_select %p3348, %s24, 0
        %s3350 = sadd.s32 %s3349, %s3347
        %s3351 = smul.addr %s3350, 4
        %s3352 = scalar_lea.vmem %s4, %s3351
      $region56: #{_fused_matmul_call.1} parent=51 // pred_fallthru
        _
    $region52: #{_fused_matmul_call.1} parent=5 // pred_fallthru
      _
  $region6: #{_fused_matmul_call.1} parent=0 // loop_footer
    %s14 = sadd.s32 1, %s10
  $region7: #{_fused_matmul_call.1} parent=0 // loop_footer_branch
    %9 = sbr.rel target = $region3
  $region8: #{_fused_matmul_call.1} parent=0 // loop_exit
    _

</llo_original>
